<compile_context>
chip_gen: v6e
topology: v6e:2x2x1
jax: 0.10.0
libtpu: 0.0.40
codegen_flags: <defaults>
</compile_context>

<pallas_src>
import math
from functools import partial
from itertools import combinations

import jax
import jax.numpy as jnp
from jax import lax
from jax.experimental import pallas as pl
from jax.experimental.pallas import tpu as pltpu

NCOLS = 8        # packed node constants: [P_set, Q_set, v0, th0, A, slack, slack|pv, pad]
SLAB_ROWS = 16   # packed per-MLP vector slab rows
LANE = 128
LOSS_DECAY = 0.96


def _round_up(x, m):
    return -(-x // m) * m


# ---------------- kernel helpers (traced inside the Pallas kernel) ----------------
def _leaky_relu(x):
    return jnp.where(x > 0, x, 0.1 * x)


def _layer_norm_masked(x, gamma, beta, real_n, eps=1e-5):
    """LayerNorm over the last dim where only the first `real_n` lanes are live.

    Padded lanes of `x` are exactly zero (weights/biases are zero-padded), so
    the sums over the padded width equal the sums over the real width;
    gamma/beta are zero on padded lanes so the output stays zero there.
    """
    inv = 1.0 / float(real_n)
    mu = jnp.sum(x, axis=-1, keepdims=True) * inv
    var = jnp.maximum(jnp.sum(x * x, axis=-1, keepdims=True) * inv - mu * mu, 0.0)
    return (x - mu) * lax.rsqrt(var + eps) * gamma + beta


def _lb_mid(h1, slab, w2, real_h):
    """LearningBlock up to (and including) the second activation.

    slab rows: 4:b1 5:g1 6:be1 7:b2 8:g2 9:be2 (zero-padded past real_h).
    h1 is the pre-bias first-layer sum; w2 is bf16 with f32 accumulation.
    """
    b1, g1, be1 = slab[4:5, :], slab[5:6, :], slab[6:7, :]
    b2, g2, be2 = slab[7:8, :], slab[8:9, :], slab[9:10, :]
    h = _leaky_relu(_layer_norm_masked(h1 + b1, g1, be1, real_h))
    h = jnp.dot(h.astype(jnp.bfloat16), w2, preferred_element_type=jnp.float32) + b2
    return _leaky_relu(_layer_norm_masked(h, g2, be2, real_h))


# ---------------- the Pallas kernel (one graph per grid point, K loop inside) ----------------
def _gns_kernel(node_ref, edge_ref, ypack_ref, gdst_ref, ginc_ref,
                e_w1m_ref, e_w2_ref, e_w3_ref, e_slab_ref,
                n_rows_ref, n_w1m_ref, n_w1mn_ref, n_w2_ref, n_w3m_ref, n_slab_ref,
                vth_out, loss_out, *, d, he_real, hn_real, hn_pad):
    K = e_w1m_ref.shape[0]
    Np = node_ref.shape[1]

    # --- hoisted constants (sliced / broadcast once, reused across all K steps) ---
    nconst = node_ref[0]                       # (Np, 8) f32
    p_set, q_set = nconst[:, 0:1], nconst[:, 1:2]
    v0, th0 = nconst[:, 2:3], nconst[:, 3:4]
    a_inv = nconst[:, 4:5]
    slack = nconst[:, 5:6]                     # 1.0 at slack buses (and padded buses)
    slackpv = nconst[:, 6:7]                   # 1.0 at slack|PV buses (and padded buses)

    edge_c = edge_ref[0]                       # (Ep, 4) f32: [ysr, ysi, yc, line_mask]
    ysr, ysi, yc = edge_c[:, 0:1], edge_c[:, 1:2], edge_c[:, 2:3]
    lmask = edge_c[:, 3:4]

    ypack = ypack_ref[0]                       # (2*Np, Np) f32 = [Yr; Yi]
    gdst = gdst_ref[...]                       # (Ep, Np) bf16 one-hot gather of m[dst]
    ginc = ginc_ref[...]                       # (Np, Ep) bf16 scatter-add to both endpoints

    def step(k, carry):
        v, th, m, loss = carry

        # ---- power-flow residual (f32), single fused [Yr; Yi] @ [vr|vi] matvec ----
        vr = v * jnp.cos(th)
        vi = v * jnp.sin(th)
        V2 = jnp.concatenate([vr, vi], axis=-1)                            # (Np, 2)
        YV = jnp.dot(ypack, V2, preferred_element_type=jnp.float32)        # (2Np, 2)
        Ir = YV[0:Np, 0:1] - YV[Np:, 1:2]
        Ii = YV[0:Np, 1:2] + YV[Np:, 0:1]
        P_calc = vr * Ir + vi * Ii
        Q_calc = vi * Ir - vr * Ii
        dP = jnp.where(slack > 0.5, 0.0, p_set - P_calc)
        dQ = jnp.where(slackpv > 0.5, 0.0, q_set - Q_calc)

        m_bf = m.astype(jnp.bfloat16)

        # ---- edge MLP on all pairs (masked), scalar features as rank-1 VPU updates ----
        m_j = jnp.dot(gdst, m_bf, preferred_element_type=jnp.float32).astype(jnp.bfloat16)
        e_slab = e_slab_ref[k]                                             # (16, He) f32
        h1_e = (ysr * e_slab[0:1, :] + ysi * e_slab[1:2, :] + yc * e_slab[2:3, :]
                + jnp.dot(m_j, e_w1m_ref[k], preferred_element_type=jnp.float32))
        h2_e = _lb_mid(h1_e, e_slab, e_w2_ref[k], he_real)
        phi = (jnp.dot(h2_e.astype(jnp.bfloat16), e_w3_ref[k],
                       preferred_element_type=jnp.float32)
               + e_slab[10:11, 0:d])
        phi = phi * lmask                                                  # zero non-edges
        agg = jnp.dot(ginc, phi.astype(jnp.bfloat16), preferred_element_type=jnp.float32)
        M_neigh = agg * a_inv
        mn_bf = M_neigh.astype(jnp.bfloat16)

        # ---- node MLPs: lane-fused first layer across the 3 heads (theta, v, m) ----
        rows = n_rows_ref[k]                                               # (4, 3*Hn) f32
        h1_all = (v * rows[0:1, :] + th * rows[1:2, :]
                  + dP * rows[2:3, :] + dQ * rows[3:4, :]
                  + jnp.dot(m_bf, n_w1m_ref[k], preferred_element_type=jnp.float32)
                  + jnp.dot(mn_bf, n_w1mn_ref[k], preferred_element_type=jnp.float32))

        def head(i):
            slab = n_slab_ref[3 * k + i]                                   # (16, Hn) f32
            h1 = h1_all[:, i * hn_pad:(i + 1) * hn_pad]                    # lane-aligned slice
            return slab, _lb_mid(h1, slab, n_w2_ref[3 * k + i], hn_real)

        slab_t, h2_t = head(0)
        slab_v, h2_v = head(1)
        slab_m, h2_m = head(2)

        # theta / v heads: 1-output final layer as multiply + lane reduce (slab row 11 = w3^T)
        dth = jnp.sum(h2_t * slab_t[11:12, :], axis=-1, keepdims=True) + slab_t[10:11, 0:1]
        dv = jnp.sum(h2_v * slab_v[11:12, :], axis=-1, keepdims=True) + slab_v[10:11, 0:1]
        # m head: (Np, Hn) @ (Hn, d)
        dm = (jnp.dot(h2_m.astype(jnp.bfloat16), n_w3m_ref[k],
                      preferred_element_type=jnp.float32)
              + slab_m[10:11, 0:d])
        dm = jnp.tanh(dm)
        mu = jnp.mean(dm, axis=-1, keepdims=True)
        var = jnp.maximum(jnp.mean(dm * dm, axis=-1, keepdims=True) - mu * mu, 0.0)
        dm = (dm - mu) * lax.rsqrt(var + 1e-5)                             # F.layer_norm, no affine

        dth = jnp.where(slack > 0.5, 0.0, dth)
        dv = jnp.where(slackpv > 0.5, 0.0, dv)

        th_new = jnp.mod(th + dth + math.pi, 2.0 * math.pi) - math.pi
        v_new = jnp.clip(v + dv, 0.4, 1.2)
        m_new = m + dm

        # Horner accumulation of sum_k 0.96**(K-1-k) * sum_n(dP^2 + dQ^2)
        loss_new = loss * LOSS_DECAY + jnp.sum(dP * dP + dQ * dQ, keepdims=True)
        return v_new, th_new, m_new, loss_new

    m0 = jnp.zeros((Np, d), jnp.float32)
    loss0 = jnp.zeros((1, 1), jnp.float32)
    v_f, th_f, _, loss_f = lax.fori_loop(0, K, step, (v0, th0, m0, loss0))

    # state written exactly once per graph
    vth_out[0] = jnp.concatenate([v_f, th_f], axis=-1)
    loss_out[0] = loss_f


# ---------------- parameter init (deterministic, PyTorch-like) ----------------
def _init_lb(key, K, din, dh, dout):
    k1, k2, k3, k4, k5, k6 = jax.random.split(key, 6)
    s1 = 1.0 / math.sqrt(din)
    s2 = 1.0 / math.sqrt(dh)
    return {
        "w1": jax.random.uniform(k1, (K, din, dh), jnp.float32, -s1, s1),
        "b1": jax.random.uniform(k2, (K, 1, dh), jnp.float32, -s1, s1),
        "g1": jnp.ones((K, 1, dh), jnp.float32),
        "be1": jnp.zeros((K, 1, dh), jnp.float32),
        "w2": jax.random.uniform(k3, (K, dh, dh), jnp.float32, -s2, s2),
        "b2": jax.random.uniform(k4, (K, 1, dh), jnp.float32, -s2, s2),
        "g2": jnp.ones((K, 1, dh), jnp.float32),
        "be2": jnp.zeros((K, 1, dh), jnp.float32),
        "w3": jax.random.uniform(k5, (K, dh, dout), jnp.float32, -s2, s2),
        "b3": jax.random.uniform(k6, (K, 1, dout), jnp.float32, -s2, s2),
    }


def make_params(key, d, K):
    edge_in = d + 3
    node_in = 4 + 2 * d
    ks = jax.random.split(key, 4)
    return {
        "edge": _init_lb(ks[0], K, edge_in, edge_in, d),
        "theta": _init_lb(ks[1], K, node_in, node_in, 1),
        "v": _init_lb(ks[2], K, node_in, node_in, 1),
        "m": _init_lb(ks[3], K, node_in, node_in, d),
    }


# ---------------- weight packing (lane-padded, all K steps resident) ----------------
def _padw(w, r, c):
    return jnp.pad(w, ((0, 0), (0, r - w.shape[1]), (0, c - w.shape[2])))


def _pack_edge_weights(pe, d, K, he):
    w1 = pe["w1"]                                               # (K, d+3, d+3)
    e_w1m = _padw(w1[:, :d, :], d, he).astype(jnp.bfloat16)     # applied to m_j
    rows = _padw(w1[:, d:, :], 3, he)                           # w1 rows for [ysr, ysi, yc]
    pv = lambda x: _padw(x, 1, he)
    slab = jnp.concatenate(
        [rows, jnp.zeros((K, 1, he), jnp.float32),
         pv(pe["b1"]), pv(pe["g1"]), pv(pe["be1"]),
         pv(pe["b2"]), pv(pe["g2"]), pv(pe["be2"]), pv(pe["b3"]),
         jnp.zeros((K, SLAB_ROWS - 11, he), jnp.float32)], axis=1)          # (K, 16, he)
    e_w2 = _padw(pe["w2"], he, he).astype(jnp.bfloat16)
    e_w3 = _padw(pe["w3"], he, d).astype(jnp.bfloat16)
    return e_w1m, e_w2, e_w3, slab


def _pack_node_weights(params, d, K, hn):
    rows, w1m, w1mn, w2s, slabs = [], [], [], [], []
    n_w3m = None
    for name in ("theta", "v", "m"):
        p = params[name]
        w1 = p["w1"]                                            # (K, 4+2d, 4+2d)
        rows.append(_padw(w1[:, 0:4, :], 4, hn))                # rows for [v, th, dP, dQ]
        w1m.append(_padw(w1[:, 4:4 + d, :], d, hn))
        w1mn.append(_padw(w1[:, 4 + d:, :], d, hn))
        w2s.append(_padw(p["w2"], hn, hn))
        pv = lambda x: _padw(x, 1, hn)
        if name == "m":
            n_w3m = _padw(p["w3"], hn, d).astype(jnp.bfloat16)  # (K, hn, d)
            w3_row = jnp.zeros((K, 1, hn), jnp.float32)
        else:
            w3_row = pv(jnp.swapaxes(p["w3"], 1, 2))            # w3^T as a slab row
        slab = jnp.concatenate(
            [jnp.zeros((K, 4, hn), jnp.float32),
             pv(p["b1"]), pv(p["g1"]), pv(p["be1"]),
             pv(p["b2"]), pv(p["g2"]), pv(p["be2"]),
             pv(p["b3"]), w3_row,
             jnp.zeros((K, SLAB_ROWS - 12, hn), jnp.float32)], axis=1)      # (K, 16, hn)
        slabs.append(slab)
    n_rows = jnp.concatenate(rows, axis=-1)                                 # (K, 4, 3*hn)
    n_w1m = jnp.concatenate(w1m, axis=-1).astype(jnp.bfloat16)              # (K, d, 3*hn)
    n_w1mn = jnp.concatenate(w1mn, axis=-1).astype(jnp.bfloat16)            # (K, d, 3*hn)
    n_w2 = jnp.stack(w2s, axis=1).reshape(K * 3, hn, hn).astype(jnp.bfloat16)
    n_slab = jnp.stack(slabs, axis=1).reshape(K * 3, SLAB_ROWS, hn)
    return n_rows, n_w1m, n_w1mn, n_w2, n_w3m, n_slab


# ---------------- wrapper (glue JAX + pallas_call) ----------------
def gns_msg_forward(params, bus_type, Line, Yr, Yi, Ysr, Ysi, Yc, P_set, Q_set, V0,
                    Ustart=None, n_nodes_per_graph=None, *, d, K):
    # TODO(synk): ragged n_nodes_per_graph branch and the norm(mu/sigma) branch are not
    # implemented; compacted (real-lines-only) edge sets via scalar prefetch are a TODO.
    assert n_nodes_per_graph is None
    B, N = bus_type.shape
    E = N * (N - 1) // 2
    Np = _round_up(max(N, 8), 8)
    Ep = _round_up(max(E, 16), 16)

    he_real, hn_real = d + 3, 4 + 2 * d
    he = _round_up(he_real, LANE)
    hn = _round_up(hn_real, LANE)

    # static all-pairs gather/scatter matrices, shared by every graph
    pairs = list(combinations(range(N), 2))
    src = jnp.array([p[0] for p in pairs], dtype=jnp.int32)
    dst = jnp.array([p[1] for p in pairs], dtype=jnp.int32)
    Gsrc = jax.nn.one_hot(src, Np, dtype=jnp.float32)           # (E, Np)
    Gdst = jax.nn.one_hot(dst, Np, dtype=jnp.float32)           # (E, Np): gathers m[dst]

    line_f = Line.astype(jnp.float32)                           # (B, E)
    deg = line_f @ (Gsrc + Gdst)                                # (B, Np)
    A = 1.0 / jnp.maximum(deg, 1.0)

    Gdst_p = jnp.pad(Gdst, ((0, Ep - E), (0, 0))).astype(jnp.bfloat16)              # (Ep, Np)
    Ginc_p = jnp.pad((Gsrc + Gdst).T, ((0, 0), (0, Ep - E))).astype(jnp.bfloat16)   # (Np, Ep)

    slack = (bus_type == 1).astype(jnp.float32)
    slackpv = ((bus_type == 1) | (bus_type == 2)).astype(jnp.float32)

    def padn(x, cval=0.0):
        return jnp.pad(x.astype(jnp.float32), ((0, 0), (0, Np - N)), constant_values=cval)

    node_const = jnp.stack(
        [padn(P_set), padn(Q_set), padn(V0[..., 0]), padn(V0[..., 1]),
         A, padn(slack, 1.0), padn(slackpv, 1.0), jnp.zeros((B, Np), jnp.float32)],
        axis=-1)                                                # (B, Np, 8)

    def pade(x):
        return jnp.pad(x.astype(jnp.float32), ((0, 0), (0, Ep - E)))

    edge_const = jnp.stack([pade(Ysr), pade(Ysi), pade(Yc), pade(line_f)], axis=-1)  # (B, Ep, 4)

    def padmat(Y):
        return jnp.pad(Y.astype(jnp.float32), ((0, 0), (0, Np - N), (0, Np - N)))

    ypack = jnp.concatenate([padmat(Yr), padmat(Yi)], axis=1)   # (B, 2*Np, Np)

    e_w1m, e_w2, e_w3, e_slab = _pack_edge_weights(params["edge"], d, K, he)
    n_rows, n_w1m, n_w1mn, n_w2, n_w3m, n_slab = _pack_node_weights(params, d, K, hn)

    data = [node_const, edge_const, ypack]
    shared = [Gdst_p, Ginc_p]
    weights = [e_w1m, e_w2, e_w3, e_slab, n_rows, n_w1m, n_w1mn, n_w2, n_w3m, n_slab]

    def bspec(x):   # per-graph data: indexed by the batch grid axis
        nd = x.ndim
        return pl.BlockSpec((1,) + x.shape[1:], lambda b, _nd=nd: (b,) + (0,) * (_nd - 1))

    def cspec(x):   # grid-constant data / weights (all K steps resident in VMEM)
        nd = x.ndim
        return pl.BlockSpec(x.shape, lambda b, _nd=nd: (0,) * _nd)

    in_specs = [bspec(x) for x in data] + [cspec(x) for x in shared + weights]

    out_shape = (jax.ShapeDtypeStruct((B, Np, 2), jnp.float32),   # [v, theta], written once
                 jax.ShapeDtypeStruct((B, 1, 1), jnp.float32))    # per-graph partial phys loss
    out_specs = (pl.BlockSpec((1, Np, 2), lambda b: (b, 0, 0)),
                 pl.BlockSpec((1, 1, 1), lambda b: (b, 0, 0)))

    # scoped-VMEM budget from (8,128)/(16,128)-padded block sizes, capped for v7x (64 MiB phys)
    def padded_bytes(shape, dtype):
        s = list(shape)
        item = jnp.dtype(dtype).itemsize
        s[-1] = _round_up(s[-1], LANE)
        if len(s) >= 2:
            s[-2] = _round_up(s[-2], 8 if item >= 4 else 16)
        return int(math.prod(s)) * item

    ws = 0
    for x in data:
        ws += 2 * padded_bytes((1,) + x.shape[1:], x.dtype)
    for x in shared + weights:
        ws += 2 * padded_bytes(x.shape, x.dtype)
    ws += 2 * padded_bytes((1, Np, 2), jnp.float32) + 2 * padded_bytes((1, 1, 1), jnp.float32)
    vmem_limit = int(min(48 * 2 ** 20, max(ws + (8 << 20), 24 << 20)))

    kernel = partial(_gns_kernel, d=d, he_real=he_real, hn_real=hn_real, hn_pad=hn)

    vth, loss_part = pl.pallas_call(
        kernel,
        out_shape=out_shape,
        grid_spec=pltpu.PrefetchScalarGridSpec(
            num_scalar_prefetch=0,
            grid=(B,),                      # one independent graph per grid point
            in_specs=in_specs,
            out_specs=out_specs),
        compiler_params=pltpu.CompilerParams(
            dimension_semantics=("parallel",),
            vmem_limit_bytes=vmem_limit),
    )(*data, *shared, *weights)

    output = vth[:, :N, :]                                        # drop padded buses
    phys_loss = (jnp.sum(loss_part) / (B * N)).reshape(1)
    return output, phys_loss


if __name__ == "__main__":
    B, N, d, K = 2, 8, 8, 3     # small shapes; module defaults are d=32, K=30
    E = N * (N - 1) // 2        # all-pairs edge count = 28

    key = jax.random.PRNGKey(0)
    kp, k1, k2, k3, k4, k5, k6, k7, k8, k9 = jax.random.split(key, 10)

    params = make_params(kp, d, K)

    bus_type = jax.random.randint(k1, (B, N), 1, 4)   # {1: slack, 2: PV, 3: PQ}
    bus_type = bus_type.at[:, 0].set(1)               # one slack bus per graph
    Line = jax.random.bernoulli(k2, 0.5, (B, E))
    Yr = 0.1 * jax.random.normal(k3, (B, N, N), jnp.float32)
    Yi = 0.1 * jax.random.normal(k4, (B, N, N), jnp.float32)
    Ysr = 0.1 * jax.random.normal(k5, (B, E), jnp.float32)
    Ysi = 0.1 * jax.random.normal(k6, (B, E), jnp.float32)
    Yc = 0.1 * jax.random.normal(k7, (B, E), jnp.float32)
    P_set = 0.1 * jax.random.normal(k8, (B, N), jnp.float32)
    Q_set = 0.1 * jax.random.normal(k9, (B, N), jnp.float32)
    V0 = jnp.stack([jnp.ones((B, N)), jnp.zeros((B, N))], axis=-1).astype(jnp.float32)

    out, loss = gns_msg_forward(params, bus_type, Line, Yr, Yi, Ysr, Ysi, Yc,
                                P_set, Q_set, V0, Ustart=None,
                                n_nodes_per_graph=None, d=d, K=K)
    jax.block_until_ready((out, loss))
    print("KERNEL_OK")
</pallas_src>

<mosaic_0001>
module attributes {stable_mosaic.version = 11 : i64} {
  func.func @_gns_kernel(%arg0: i32, %arg1: memref<1x8x8xf32, #tpu.memory_space<vmem>>, %arg2: memref<1x32x4xf32, #tpu.memory_space<vmem>>, %arg3: memref<1x16x8xf32, #tpu.memory_space<vmem>>, %arg4: memref<32x8xbf16, #tpu.memory_space<vmem>>, %arg5: memref<8x32xbf16, #tpu.memory_space<vmem>>, %arg6: memref<3x8x128xbf16, #tpu.memory_space<vmem>>, %arg7: memref<3x128x128xbf16, #tpu.memory_space<vmem>>, %arg8: memref<3x128x8xbf16, #tpu.memory_space<vmem>>, %arg9: memref<3x16x128xf32, #tpu.memory_space<vmem>>, %arg10: memref<3x4x384xf32, #tpu.memory_space<vmem>>, %arg11: memref<3x8x384xbf16, #tpu.memory_space<vmem>>, %arg12: memref<3x8x384xbf16, #tpu.memory_space<vmem>>, %arg13: memref<9x128x128xbf16, #tpu.memory_space<vmem>>, %arg14: memref<3x128x8xbf16, #tpu.memory_space<vmem>>, %arg15: memref<9x16x128xf32, #tpu.memory_space<vmem>>, %arg16: memref<1x8x2xf32, #tpu.memory_space<vmem>>, %arg17: memref<1x1x1xf32, #tpu.memory_space<vmem>>) attributes {dimension_semantics = [#tpu.dimension_semantics<parallel>], iteration_bounds = array<i64: 2>, scalar_prefetch = 0 : i64, scratch_operands = 0 : i64, tpu.core_type = #tpu.core_type<tc>, window_params = [{transform_indices = @transform_0, window_bounds = array<i64: 1, 8, 8>}, {transform_indices = @transform_1, window_bounds = array<i64: 1, 32, 4>}, {transform_indices = @transform_2, window_bounds = array<i64: 1, 16, 8>}, {pipeline_mode = #tpu.pipeline_mode<synchronous>, transform_indices = @transform_3, window_bounds = array<i64: 32, 8>}, {pipeline_mode = #tpu.pipeline_mode<synchronous>, transform_indices = @transform_4, window_bounds = array<i64: 8, 32>}, {pipeline_mode = #tpu.pipeline_mode<synchronous>, transform_indices = @transform_5, window_bounds = array<i64: 3, 8, 128>}, {pipeline_mode = #tpu.pipeline_mode<synchronous>, transform_indices = @transform_6, window_bounds = array<i64: 3, 128, 128>}, {pipeline_mode = #tpu.pipeline_mode<synchronous>, transform_indices = @transform_7, window_bounds = array<i64: 3, 128, 8>}, {pipeline_mode = #tpu.pipeline_mode<synchronous>, transform_indices = @transform_8, window_bounds = array<i64: 3, 16, 128>}, {pipeline_mode = #tpu.pipeline_mode<synchronous>, transform_indices = @transform_9, window_bounds = array<i64: 3, 4, 384>}, {pipeline_mode = #tpu.pipeline_mode<synchronous>, transform_indices = @transform_10, window_bounds = array<i64: 3, 8, 384>}, {pipeline_mode = #tpu.pipeline_mode<synchronous>, transform_indices = @transform_11, window_bounds = array<i64: 3, 8, 384>}, {pipeline_mode = #tpu.pipeline_mode<synchronous>, transform_indices = @transform_12, window_bounds = array<i64: 9, 128, 128>}, {pipeline_mode = #tpu.pipeline_mode<synchronous>, transform_indices = @transform_13, window_bounds = array<i64: 3, 128, 8>}, {pipeline_mode = #tpu.pipeline_mode<synchronous>, transform_indices = @transform_14, window_bounds = array<i64: 9, 16, 128>}, {transform_indices = @transform_15, window_bounds = array<i64: 1, 8, 2>}, {transform_indices = @transform_16, window_bounds = array<i64: 1, 1, 1>}]} {
    %c0 = arith.constant 0 : index
    %c0_0 = arith.constant 0 : index
    %c0_1 = arith.constant 0 : index
    %0 = vector.load %arg1[%c0, %c0_0, %c0_1] : memref<1x8x8xf32, #tpu.memory_space<vmem>>, vector<1x8x8xf32>
    %1 = vector.shape_cast %0 : vector<1x8x8xf32> to vector<8x8xf32>
    %2 = vector.extract_strided_slice %1 {offsets = [0, 0], sizes = [8, 1], strides = [1, 1]} : vector<8x8xf32> to vector<8x1xf32>
    %3 = vector.extract_strided_slice %1 {offsets = [0, 1], sizes = [8, 1], strides = [1, 1]} : vector<8x8xf32> to vector<8x1xf32>
    %4 = vector.extract_strided_slice %1 {offsets = [0, 2], sizes = [8, 1], strides = [1, 1]} : vector<8x8xf32> to vector<8x1xf32>
    %5 = vector.extract_strided_slice %1 {offsets = [0, 3], sizes = [8, 1], strides = [1, 1]} : vector<8x8xf32> to vector<8x1xf32>
    %6 = vector.extract_strided_slice %1 {offsets = [0, 4], sizes = [8, 1], strides = [1, 1]} : vector<8x8xf32> to vector<8x1xf32>
    %7 = vector.extract_strided_slice %1 {offsets = [0, 5], sizes = [8, 1], strides = [1, 1]} : vector<8x8xf32> to vector<8x1xf32>
    %8 = vector.extract_strided_slice %1 {offsets = [0, 6], sizes = [8, 1], strides = [1, 1]} : vector<8x8xf32> to vector<8x1xf32>
    %c0_2 = arith.constant 0 : index
    %c0_3 = arith.constant 0 : index
    %c0_4 = arith.constant 0 : index
    %9 = vector.load %arg2[%c0_2, %c0_3, %c0_4] : memref<1x32x4xf32, #tpu.memory_space<vmem>>, vector<1x32x4xf32>
    %10 = vector.shape_cast %9 : vector<1x32x4xf32> to vector<32x4xf32>
    %11 = vector.extract_strided_slice %10 {offsets = [0, 0], sizes = [32, 1], strides = [1, 1]} : vector<32x4xf32> to vector<32x1xf32>
    %12 = vector.extract_strided_slice %10 {offsets = [0, 1], sizes = [32, 1], strides = [1, 1]} : vector<32x4xf32> to vector<32x1xf32>
    %13 = vector.extract_strided_slice %10 {offsets = [0, 2], sizes = [32, 1], strides = [1, 1]} : vector<32x4xf32> to vector<32x1xf32>
    %14 = vector.extract_strided_slice %10 {offsets = [0, 3], sizes = [32, 1], strides = [1, 1]} : vector<32x4xf32> to vector<32x1xf32>
    %c0_5 = arith.constant 0 : index
    %c0_6 = arith.constant 0 : index
    %c0_7 = arith.constant 0 : index
    %15 = vector.load %arg3[%c0_5, %c0_6, %c0_7] : memref<1x16x8xf32, #tpu.memory_space<vmem>>, vector<1x16x8xf32>
    %16 = vector.shape_cast %15 : vector<1x16x8xf32> to vector<16x8xf32>
    %c0_8 = arith.constant 0 : index
    %c0_9 = arith.constant 0 : index
    %17 = vector.load %arg4[%c0_8, %c0_9] : memref<32x8xbf16, #tpu.memory_space<vmem>>, vector<32x8xbf16>
    %c0_10 = arith.constant 0 : index
    %c0_11 = arith.constant 0 : index
    %18 = vector.load %arg5[%c0_10, %c0_11] : memref<8x32xbf16, #tpu.memory_space<vmem>>, vector<8x32xbf16>
    %cst = arith.constant 0.000000e+00 : f32
    %19 = vector.broadcast %cst : f32 to vector<8x8xf32>
    %cst_12 = arith.constant 0.000000e+00 : f32
    %20 = vector.broadcast %cst_12 : f32 to vector<1x1xf32>
    %c0_i32 = arith.constant 0 : i32
    %c3_i32 = arith.constant 3 : i32
    %21 = arith.addi %c0_i32, %c3_i32 : i32
    %c1_i32 = arith.constant 1 : i32
    %22:4 = scf.for %arg18 = %c0_i32 to %21 step %c1_i32 iter_args(%arg19 = %4, %arg20 = %5, %arg21 = %19, %arg22 = %20) -> (vector<8x1xf32>, vector<8x1xf32>, vector<8x8xf32>, vector<1x1xf32>)  : i32 {
      %30 = math.cos %arg20 : vector<8x1xf32>
      %31 = arith.mulf %arg19, %30 : vector<8x1xf32>
      %32 = math.sin %arg20 : vector<8x1xf32>
      %33 = arith.mulf %arg19, %32 : vector<8x1xf32>
      %34 = tpu.concatenate %31, %33 in 1 : vector<8x1xf32>, vector<8x1xf32> -> vector<8x2xf32>
      %cst_20 = arith.constant dense<0.000000e+00> : vector<16x2xf32>
      %35 = tpu.matmul %16, %34, %cst_20 {dimension_numbers = #tpu.dot_dimension_numbers<[1], [0], [0], [1], [0, 0, 1, 1], [], []>} : vector<16x8xf32>, vector<8x2xf32>, vector<16x2xf32> -> vector<16x2xf32>
      %36 = vector.extract_strided_slice %35 {offsets = [0, 0], sizes = [8, 1], strides = [1, 1]} : vector<16x2xf32> to vector<8x1xf32>
      %37 = vector.extract_strided_slice %35 {offsets = [8, 1], sizes = [8, 1], strides = [1, 1]} : vector<16x2xf32> to vector<8x1xf32>
      %38 = arith.subf %36, %37 : vector<8x1xf32>
      %39 = vector.extract_strided_slice %35 {offsets = [0, 1], sizes = [8, 1], strides = [1, 1]} : vector<16x2xf32> to vector<8x1xf32>
      %40 = vector.extract_strided_slice %35 {offsets = [8, 0], sizes = [8, 1], strides = [1, 1]} : vector<16x2xf32> to vector<8x1xf32>
      %41 = arith.addf %39, %40 : vector<8x1xf32>
      %42 = arith.mulf %31, %38 : vector<8x1xf32>
      %43 = arith.mulf %33, %41 : vector<8x1xf32>
      %44 = arith.addf %42, %43 : vector<8x1xf32>
      %45 = arith.mulf %33, %38 : vector<8x1xf32>
      %46 = arith.mulf %31, %41 : vector<8x1xf32>
      %47 = arith.subf %45, %46 : vector<8x1xf32>
      %cst_21 = arith.constant 5.000000e-01 : f32
      %48 = vector.broadcast %cst_21 : f32 to vector<8x1xf32>
      %49 = arith.cmpf ogt, %7, %48 : vector<8x1xf32>
      %50 = arith.subf %2, %44 : vector<8x1xf32>
      %cst_22 = arith.constant 0.000000e+00 : f32
      %51 = vector.broadcast %cst_22 : f32 to vector<8x1xf32>
      %52 = arith.select %49, %51, %50 : vector<8x1xi1>, vector<8x1xf32>
      %cst_23 = arith.constant 5.000000e-01 : f32
      %53 = vector.broadcast %cst_23 : f32 to vector<8x1xf32>
      %54 = arith.cmpf ogt, %8, %53 : vector<8x1xf32>
      %55 = arith.subf %3, %47 : vector<8x1xf32>
      %cst_24 = arith.constant 0.000000e+00 : f32
      %56 = vector.broadcast %cst_24 : f32 to vector<8x1xf32>
      %57 = arith.select %54, %56, %55 : vector<8x1xi1>, vector<8x1xf32>
      %58 = arith.truncf %arg21 : vector<8x8xf32> to vector<8x8xbf16>
      %cst_25 = arith.constant dense<0.000000e+00> : vector<32x8xf32>
      %59 = tpu.matmul %17, %58, %cst_25 {dimension_numbers = #tpu.dot_dimension_numbers<[1], [0], [0], [1], [0, 0, 1, 1], [], []>} : vector<32x8xbf16>, vector<8x8xbf16>, vector<32x8xf32> -> vector<32x8xf32>
      %60 = arith.truncf %59 : vector<32x8xf32> to vector<32x8xbf16>
      %61 = arith.index_cast %arg18 : i32 to index
      %c0_26 = arith.constant 0 : index
      %c0_27 = arith.constant 0 : index
      %62 = vector.load %arg9[%61, %c0_26, %c0_27] : memref<3x16x128xf32, #tpu.memory_space<vmem>>, vector<1x16x128xf32>
      %63 = vector.shape_cast %62 : vector<1x16x128xf32> to vector<16x128xf32>
      %64 = vector.extract_strided_slice %63 {offsets = [0, 0], sizes = [1, 128], strides = [1, 1]} : vector<16x128xf32> to vector<1x128xf32>
      %65 = vector.broadcast %11 : vector<32x1xf32> to vector<32x128xf32>
      %66 = vector.broadcast %64 : vector<1x128xf32> to vector<32x128xf32>
      %67 = arith.mulf %65, %66 : vector<32x128xf32>
      %68 = vector.extract_strided_slice %63 {offsets = [1, 0], sizes = [1, 128], strides = [1, 1]} : vector<16x128xf32> to vector<1x128xf32>
      %69 = vector.broadcast %12 : vector<32x1xf32> to vector<32x128xf32>
      %70 = vector.broadcast %68 : vector<1x128xf32> to vector<32x128xf32>
      %71 = arith.mulf %69, %70 : vector<32x128xf32>
      %72 = arith.addf %67, %71 : vector<32x128xf32>
      %73 = vector.extract_strided_slice %63 {offsets = [2, 0], sizes = [1, 128], strides = [1, 1]} : vector<16x128xf32> to vector<1x128xf32>
      %74 = vector.broadcast %13 : vector<32x1xf32> to vector<32x128xf32>
      %75 = vector.broadcast %73 : vector<1x128xf32> to vector<32x128xf32>
      %76 = arith.mulf %74, %75 : vector<32x128xf32>
      %77 = arith.addf %72, %76 : vector<32x128xf32>
      %78 = arith.index_cast %arg18 : i32 to index
      %c0_28 = arith.constant 0 : index
      %c0_29 = arith.constant 0 : index
      %79 = vector.load %arg6[%78, %c0_28, %c0_29] : memref<3x8x128xbf16, #tpu.memory_space<vmem>>, vector<1x8x128xbf16>
      %80 = vector.shape_cast %79 : vector<1x8x128xbf16> to vector<8x128xbf16>
      %cst_30 = arith.constant dense<0.000000e+00> : vector<32x128xf32>
      %81 = tpu.matmul %60, %80, %cst_30 {dimension_numbers = #tpu.dot_dimension_numbers<[1], [0], [0], [1], [0, 0, 1, 1], [], []>} : vector<32x8xbf16>, vector<8x128xbf16>, vector<32x128xf32> -> vector<32x128xf32>
      %82 = arith.addf %77, %81 : vector<32x128xf32>
      %83 = arith.index_cast %arg18 : i32 to index
      %c0_31 = arith.constant 0 : index
      %c0_32 = arith.constant 0 : index
      %84 = vector.load %arg7[%83, %c0_31, %c0_32] : memref<3x128x128xbf16, #tpu.memory_space<vmem>>, vector<1x128x128xbf16>
      %85 = vector.shape_cast %84 : vector<1x128x128xbf16> to vector<128x128xbf16>
      %86 = vector.extract_strided_slice %63 {offsets = [4, 0], sizes = [1, 128], strides = [1, 1]} : vector<16x128xf32> to vector<1x128xf32>
      %87 = vector.extract_strided_slice %63 {offsets = [5, 0], sizes = [1, 128], strides = [1, 1]} : vector<16x128xf32> to vector<1x128xf32>
      %88 = vector.extract_strided_slice %63 {offsets = [6, 0], sizes = [1, 128], strides = [1, 1]} : vector<16x128xf32> to vector<1x128xf32>
      %89 = vector.extract_strided_slice %63 {offsets = [7, 0], sizes = [1, 128], strides = [1, 1]} : vector<16x128xf32> to vector<1x128xf32>
      %90 = vector.extract_strided_slice %63 {offsets = [8, 0], sizes = [1, 128], strides = [1, 1]} : vector<16x128xf32> to vector<1x128xf32>
      %91 = vector.extract_strided_slice %63 {offsets = [9, 0], sizes = [1, 128], strides = [1, 1]} : vector<16x128xf32> to vector<1x128xf32>
      %92 = vector.broadcast %86 : vector<1x128xf32> to vector<32x128xf32>
      %93 = arith.addf %82, %92 : vector<32x128xf32>
      %cst_33 = arith.constant dense<0.000000e+00> : vector<32xf32>
      %94 = vector.multi_reduction <add>, %93, %cst_33 [1] : vector<32x128xf32> to vector<32xf32>
      %95 = vector.shape_cast %94 : vector<32xf32> to vector<32x1xf32>
      %cst_34 = arith.constant 0.0909090936 : f32
      %96 = vector.broadcast %cst_34 : f32 to vector<32x1xf32>
      %97 = arith.mulf %95, %96 : vector<32x1xf32>
      %98 = arith.mulf %93, %93 : vector<32x128xf32>
      %cst_35 = arith.constant dense<0.000000e+00> : vector<32xf32>
      %99 = vector.multi_reduction <add>, %98, %cst_35 [1] : vector<32x128xf32> to vector<32xf32>
      %100 = vector.shape_cast %99 : vector<32xf32> to vector<32x1xf32>
      %cst_36 = arith.constant 0.0909090936 : f32
      %101 = vector.broadcast %cst_36 : f32 to vector<32x1xf32>
      %102 = arith.mulf %100, %101 : vector<32x1xf32>
      %103 = arith.mulf %97, %97 : vector<32x1xf32>
      %104 = arith.subf %102, %103 : vector<32x1xf32>
      %cst_37 = arith.constant 0.000000e+00 : f32
      %105 = vector.broadcast %cst_37 : f32 to vector<32x1xf32>
      %106 = arith.maximumf %104, %105 : vector<32x1xf32>
      %107 = vector.broadcast %97 : vector<32x1xf32> to vector<32x128xf32>
      %108 = arith.subf %93, %107 : vector<32x128xf32>
      %cst_38 = arith.constant 9.99999974E-6 : f32
      %109 = vector.broadcast %cst_38 : f32 to vector<32x1xf32>
      %110 = arith.addf %106, %109 : vector<32x1xf32>
      %111 = math.rsqrt %110 : vector<32x1xf32>
      %112 = vector.broadcast %111 : vector<32x1xf32> to vector<32x128xf32>
      %113 = arith.mulf %108, %112 : vector<32x128xf32>
      %114 = vector.broadcast %87 : vector<1x128xf32> to vector<32x128xf32>
      %115 = arith.mulf %113, %114 : vector<32x128xf32>
      %116 = vector.broadcast %88 : vector<1x128xf32> to vector<32x128xf32>
      %117 = arith.addf %115, %116 : vector<32x128xf32>
      %cst_39 = arith.constant 0.000000e+00 : f32
      %118 = vector.broadcast %cst_39 : f32 to vector<32x128xf32>
      %119 = arith.cmpf ogt, %117, %118 : vector<32x128xf32>
      %cst_40 = arith.constant 1.000000e-01 : f32
      %120 = vector.broadcast %cst_40 : f32 to vector<32x128xf32>
      %121 = arith.mulf %120, %117 : vector<32x128xf32>
      %122 = arith.select %119, %117, %121 : vector<32x128xi1>, vector<32x128xf32>
      %123 = arith.truncf %122 : vector<32x128xf32> to vector<32x128xbf16>
      %cst_41 = arith.constant dense<0.000000e+00> : vector<32x128xf32>
      %124 = tpu.matmul %123, %85, %cst_41 {dimension_numbers = #tpu.dot_dimension_numbers<[1], [0], [0], [1], [0, 0, 1, 1], [], []>} : vector<32x128xbf16>, vector<128x128xbf16>, vector<32x128xf32> -> vector<32x128xf32>
      %125 = vector.broadcast %89 : vector<1x128xf32> to vector<32x128xf32>
      %126 = arith.addf %124, %125 : vector<32x128xf32>
      %cst_42 = arith.constant dense<0.000000e+00> : vector<32xf32>
      %127 = vector.multi_reduction <add>, %126, %cst_42 [1] : vector<32x128xf32> to vector<32xf32>
      %128 = vector.shape_cast %127 : vector<32xf32> to vector<32x1xf32>
      %cst_43 = arith.constant 0.0909090936 : f32
      %129 = vector.broadcast %cst_43 : f32 to vector<32x1xf32>
      %130 = arith.mulf %128, %129 : vector<32x1xf32>
      %131 = arith.mulf %126, %126 : vector<32x128xf32>
      %cst_44 = arith.constant dense<0.000000e+00> : vector<32xf32>
      %132 = vector.multi_reduction <add>, %131, %cst_44 [1] : vector<32x128xf32> to vector<32xf32>
      %133 = vector.shape_cast %132 : vector<32xf32> to vector<32x1xf32>
      %cst_45 = arith.constant 0.0909090936 : f32
      %134 = vector.broadcast %cst_45 : f32 to vector<32x1xf32>
      %135 = arith.mulf %133, %134 : vector<32x1xf32>
      %136 = arith.mulf %130, %130 : vector<32x1xf32>
      %137 = arith.subf %135, %136 : vector<32x1xf32>
      %cst_46 = arith.constant 0.000000e+00 : f32
      %138 = vector.broadcast %cst_46 : f32 to vector<32x1xf32>
      %139 = arith.maximumf %137, %138 : vector<32x1xf32>
      %140 = vector.broadcast %130 : vector<32x1xf32> to vector<32x128xf32>
      %141 = arith.subf %126, %140 : vector<32x128xf32>
      %cst_47 = arith.constant 9.99999974E-6 : f32
      %142 = vector.broadcast %cst_47 : f32 to vector<32x1xf32>
      %143 = arith.addf %139, %142 : vector<32x1xf32>
      %144 = math.rsqrt %143 : vector<32x1xf32>
      %145 = vector.broadcast %144 : vector<32x1xf32> to vector<32x128xf32>
      %146 = arith.mulf %141, %145 : vector<32x128xf32>
      %147 = vector.broadcast %90 : vector<1x128xf32> to vector<32x128xf32>
      %148 = arith.mulf %146, %147 : vector<32x128xf32>
      %149 = vector.broadcast %91 : vector<1x128xf32> to vector<32x128xf32>
      %150 = arith.addf %148, %149 : vector<32x128xf32>
      %cst_48 = arith.constant 0.000000e+00 : f32
      %151 = vector.broadcast %cst_48 : f32 to vector<32x128xf32>
      %152 = arith.cmpf ogt, %150, %151 : vector<32x128xf32>
      %cst_49 = arith.constant 1.000000e-01 : f32
      %153 = vector.broadcast %cst_49 : f32 to vector<32x128xf32>
      %154 = arith.mulf %153, %150 : vector<32x128xf32>
      %155 = arith.select %152, %150, %154 : vector<32x128xi1>, vector<32x128xf32>
      %156 = arith.truncf %155 : vector<32x128xf32> to vector<32x128xbf16>
      %157 = arith.index_cast %arg18 : i32 to index
      %c0_50 = arith.constant 0 : index
      %c0_51 = arith.constant 0 : index
      %158 = vector.load %arg8[%157, %c0_50, %c0_51] : memref<3x128x8xbf16, #tpu.memory_space<vmem>>, vector<1x128x8xbf16>
      %159 = vector.shape_cast %158 : vector<1x128x8xbf16> to vector<128x8xbf16>
      %cst_52 = arith.constant dense<0.000000e+00> : vector<32x8xf32>
      %160 = tpu.matmul %156, %159, %cst_52 {dimension_numbers = #tpu.dot_dimension_numbers<[1], [0], [0], [1], [0, 0, 1, 1], [], []>} : vector<32x128xbf16>, vector<128x8xbf16>, vector<32x8xf32> -> vector<32x8xf32>
      %161 = vector.extract_strided_slice %63 {offsets = [10, 0], sizes = [1, 8], strides = [1, 1]} : vector<16x128xf32> to vector<1x8xf32>
      %162 = vector.broadcast %161 : vector<1x8xf32> to vector<32x8xf32>
      %163 = arith.addf %160, %162 : vector<32x8xf32>
      %164 = vector.broadcast %14 : vector<32x1xf32> to vector<32x8xf32>
      %165 = arith.mulf %163, %164 : vector<32x8xf32>
      %166 = arith.truncf %165 : vector<32x8xf32> to vector<32x8xbf16>
      %cst_53 = arith.constant dense<0.000000e+00> : vector<8x8xf32>
      %167 = tpu.matmul %18, %166, %cst_53 {dimension_numbers = #tpu.dot_dimension_numbers<[1], [0], [0], [1], [0, 0, 1, 1], [], []>} : vector<8x32xbf16>, vector<32x8xbf16>, vector<8x8xf32> -> vector<8x8xf32>
      %168 = vector.broadcast %6 : vector<8x1xf32> to vector<8x8xf32>
      %169 = arith.mulf %167, %168 : vector<8x8xf32>
      %170 = arith.truncf %169 : vector<8x8xf32> to vector<8x8xbf16>
      %171 = arith.index_cast %arg18 : i32 to index
      %c0_54 = arith.constant 0 : index
      %c0_55 = arith.constant 0 : index
      %172 = vector.load %arg10[%171, %c0_54, %c0_55] : memref<3x4x384xf32, #tpu.memory_space<vmem>>, vector<1x4x384xf32>
      %173 = vector.shape_cast %172 : vector<1x4x384xf32> to vector<4x384xf32>
      %174 = vector.extract_strided_slice %173 {offsets = [0, 0], sizes = [1, 384], strides = [1, 1]} : vector<4x384xf32> to vector<1x384xf32>
      %175 = vector.broadcast %arg19 : vector<8x1xf32> to vector<8x384xf32>
      %176 = vector.broadcast %174 : vector<1x384xf32> to vector<8x384xf32>
      %177 = arith.mulf %175, %176 : vector<8x384xf32>
      %178 = vector.extract_strided_slice %173 {offsets = [1, 0], sizes = [1, 384], strides = [1, 1]} : vector<4x384xf32> to vector<1x384xf32>
      %179 = vector.broadcast %arg20 : vector<8x1xf32> to vector<8x384xf32>
      %180 = vector.broadcast %178 : vector<1x384xf32> to vector<8x384xf32>
      %181 = arith.mulf %179, %180 : vector<8x384xf32>
      %182 = arith.addf %177, %181 : vector<8x384xf32>
      %183 = vector.extract_strided_slice %173 {offsets = [2, 0], sizes = [1, 384], strides = [1, 1]} : vector<4x384xf32> to vector<1x384xf32>
      %184 = vector.broadcast %52 : vector<8x1xf32> to vector<8x384xf32>
      %185 = vector.broadcast %183 : vector<1x384xf32> to vector<8x384xf32>
      %186 = arith.mulf %184, %185 : vector<8x384xf32>
      %187 = arith.addf %182, %186 : vector<8x384xf32>
      %188 = vector.extract_strided_slice %173 {offsets = [3, 0], sizes = [1, 384], strides = [1, 1]} : vector<4x384xf32> to vector<1x384xf32>
      %189 = vector.broadcast %57 : vector<8x1xf32> to vector<8x384xf32>
      %190 = vector.broadcast %188 : vector<1x384xf32> to vector<8x384xf32>
      %191 = arith.mulf %189, %190 : vector<8x384xf32>
      %192 = arith.addf %187, %191 : vector<8x384xf32>
      %193 = arith.index_cast %arg18 : i32 to index
      %c0_56 = arith.constant 0 : index
      %c0_57 = arith.constant 0 : index
      %194 = vector.load %arg11[%193, %c0_56, %c0_57] : memref<3x8x384xbf16, #tpu.memory_space<vmem>>, vector<1x8x384xbf16>
      %195 = vector.shape_cast %194 : vector<1x8x384xbf16> to vector<8x384xbf16>
      %cst_58 = arith.constant dense<0.000000e+00> : vector<8x384xf32>
      %196 = tpu.matmul %58, %195, %cst_58 {dimension_numbers = #tpu.dot_dimension_numbers<[1], [0], [0], [1], [0, 0, 1, 1], [], []>} : vector<8x8xbf16>, vector<8x384xbf16>, vector<8x384xf32> -> vector<8x384xf32>
      %197 = arith.addf %192, %196 : vector<8x384xf32>
      %198 = arith.index_cast %arg18 : i32 to index
      %c0_59 = arith.constant 0 : index
      %c0_60 = arith.constant 0 : index
      %199 = vector.load %arg12[%198, %c0_59, %c0_60] : memref<3x8x384xbf16, #tpu.memory_space<vmem>>, vector<1x8x384xbf16>
      %200 = vector.shape_cast %199 : vector<1x8x384xbf16> to vector<8x384xbf16>
      %cst_61 = arith.constant dense<0.000000e+00> : vector<8x384xf32>
      %201 = tpu.matmul %170, %200, %cst_61 {dimension_numbers = #tpu.dot_dimension_numbers<[1], [0], [0], [1], [0, 0, 1, 1], [], []>} : vector<8x8xbf16>, vector<8x384xbf16>, vector<8x384xf32> -> vector<8x384xf32>
      %202 = arith.addf %197, %201 : vector<8x384xf32>
      %c3_i32_62 = arith.constant 3 : i32
      %203 = arith.muli %c3_i32_62, %arg18 : i32
      %c0_i32_63 = arith.constant 0 : i32
      %204 = arith.addi %203, %c0_i32_63 : i32
      %205 = arith.index_cast %204 : i32 to index
      %c0_64 = arith.constant 0 : index
      %c0_65 = arith.constant 0 : index
      %206 = vector.load %arg15[%205, %c0_64, %c0_65] : memref<9x16x128xf32, #tpu.memory_space<vmem>>, vector<1x16x128xf32>
      %207 = vector.shape_cast %206 : vector<1x16x128xf32> to vector<16x128xf32>
      %208 = vector.extract_strided_slice %202 {offsets = [0, 0], sizes = [8, 128], strides = [1, 1]} : vector<8x384xf32> to vector<8x128xf32>
      %c3_i32_66 = arith.constant 3 : i32
      %209 = arith.muli %c3_i32_66, %arg18 : i32
      %c0_i32_67 = arith.constant 0 : i32
      %210 = arith.addi %209, %c0_i32_67 : i32
      %211 = arith.index_cast %210 : i32 to index
      %c0_68 = arith.constant 0 : index
      %c0_69 = arith.constant 0 : index
      %212 = vector.load %arg13[%211, %c0_68, %c0_69] : memref<9x128x128xbf16, #tpu.memory_space<vmem>>, vector<1x128x128xbf16>
      %213 = vector.shape_cast %212 : vector<1x128x128xbf16> to vector<128x128xbf16>
      %214 = vector.extract_strided_slice %207 {offsets = [4, 0], sizes = [1, 128], strides = [1, 1]} : vector<16x128xf32> to vector<1x128xf32>
      %215 = vector.extract_strided_slice %207 {offsets = [5, 0], sizes = [1, 128], strides = [1, 1]} : vector<16x128xf32> to vector<1x128xf32>
      %216 = vector.extract_strided_slice %207 {offsets = [6, 0], sizes = [1, 128], strides = [1, 1]} : vector<16x128xf32> to vector<1x128xf32>
      %217 = vector.extract_strided_slice %207 {offsets = [7, 0], sizes = [1, 128], strides = [1, 1]} : vector<16x128xf32> to vector<1x128xf32>
      %218 = vector.extract_strided_slice %207 {offsets = [8, 0], sizes = [1, 128], strides = [1, 1]} : vector<16x128xf32> to vector<1x128xf32>
      %219 = vector.extract_strided_slice %207 {offsets = [9, 0], sizes = [1, 128], strides = [1, 1]} : vector<16x128xf32> to vector<1x128xf32>
      %220 = vector.broadcast %214 : vector<1x128xf32> to vector<8x128xf32>
      %221 = arith.addf %208, %220 : vector<8x128xf32>
      %cst_70 = arith.constant dense<0.000000e+00> : vector<8xf32>
      %222 = vector.multi_reduction <add>, %221, %cst_70 [1] : vector<8x128xf32> to vector<8xf32>
      %223 = vector.shape_cast %222 : vector<8xf32> to vector<8x1xf32>
      %cst_71 = arith.constant 5.000000e-02 : f32
      %224 = vector.broadcast %cst_71 : f32 to vector<8x1xf32>
      %225 = arith.mulf %223, %224 : vector<8x1xf32>
      %226 = arith.mulf %221, %221 : vector<8x128xf32>
      %cst_72 = arith.constant dense<0.000000e+00> : vector<8xf32>
      %227 = vector.multi_reduction <add>, %226, %cst_72 [1] : vector<8x128xf32> to vector<8xf32>
      %228 = vector.shape_cast %227 : vector<8xf32> to vector<8x1xf32>
      %cst_73 = arith.constant 5.000000e-02 : f32
      %229 = vector.broadcast %cst_73 : f32 to vector<8x1xf32>
      %230 = arith.mulf %228, %229 : vector<8x1xf32>
      %231 = arith.mulf %225, %225 : vector<8x1xf32>
      %232 = arith.subf %230, %231 : vector<8x1xf32>
      %cst_74 = arith.constant 0.000000e+00 : f32
      %233 = vector.broadcast %cst_74 : f32 to vector<8x1xf32>
      %234 = arith.maximumf %232, %233 : vector<8x1xf32>
      %235 = vector.broadcast %225 : vector<8x1xf32> to vector<8x128xf32>
      %236 = arith.subf %221, %235 : vector<8x128xf32>
      %cst_75 = arith.constant 9.99999974E-6 : f32
      %237 = vector.broadcast %cst_75 : f32 to vector<8x1xf32>
      %238 = arith.addf %234, %237 : vector<8x1xf32>
      %239 = math.rsqrt %238 : vector<8x1xf32>
      %240 = vector.broadcast %239 : vector<8x1xf32> to vector<8x128xf32>
      %241 = arith.mulf %236, %240 : vector<8x128xf32>
      %242 = vector.broadcast %215 : vector<1x128xf32> to vector<8x128xf32>
      %243 = arith.mulf %241, %242 : vector<8x128xf32>
      %244 = vector.broadcast %216 : vector<1x128xf32> to vector<8x128xf32>
      %245 = arith.addf %243, %244 : vector<8x128xf32>
      %cst_76 = arith.constant 0.000000e+00 : f32
      %246 = vector.broadcast %cst_76 : f32 to vector<8x128xf32>
      %247 = arith.cmpf ogt, %245, %246 : vector<8x128xf32>
      %cst_77 = arith.constant 1.000000e-01 : f32
      %248 = vector.broadcast %cst_77 : f32 to vector<8x128xf32>
      %249 = arith.mulf %248, %245 : vector<8x128xf32>
      %250 = arith.select %247, %245, %249 : vector<8x128xi1>, vector<8x128xf32>
      %251 = arith.truncf %250 : vector<8x128xf32> to vector<8x128xbf16>
      %cst_78 = arith.constant dense<0.000000e+00> : vector<8x128xf32>
      %252 = tpu.matmul %251, %213, %cst_78 {dimension_numbers = #tpu.dot_dimension_numbers<[1], [0], [0], [1], [0, 0, 1, 1], [], []>} : vector<8x128xbf16>, vector<128x128xbf16>, vector<8x128xf32> -> vector<8x128xf32>
      %253 = vector.broadcast %217 : vector<1x128xf32> to vector<8x128xf32>
      %254 = arith.addf %252, %253 : vector<8x128xf32>
      %cst_79 = arith.constant dense<0.000000e+00> : vector<8xf32>
      %255 = vector.multi_reduction <add>, %254, %cst_79 [1] : vector<8x128xf32> to vector<8xf32>
      %256 = vector.shape_cast %255 : vector<8xf32> to vector<8x1xf32>
      %cst_80 = arith.constant 5.000000e-02 : f32
      %257 = vector.broadcast %cst_80 : f32 to vector<8x1xf32>
      %258 = arith.mulf %256, %257 : vector<8x1xf32>
      %259 = arith.mulf %254, %254 : vector<8x128xf32>
      %cst_81 = arith.constant dense<0.000000e+00> : vector<8xf32>
      %260 = vector.multi_reduction <add>, %259, %cst_81 [1] : vector<8x128xf32> to vector<8xf32>
      %261 = vector.shape_cast %260 : vector<8xf32> to vector<8x1xf32>
      %cst_82 = arith.constant 5.000000e-02 : f32
      %262 = vector.broadcast %cst_82 : f32 to vector<8x1xf32>
      %263 = arith.mulf %261, %262 : vector<8x1xf32>
      %264 = arith.mulf %258, %258 : vector<8x1xf32>
      %265 = arith.subf %263, %264 : vector<8x1xf32>
      %cst_83 = arith.constant 0.000000e+00 : f32
      %266 = vector.broadcast %cst_83 : f32 to vector<8x1xf32>
      %267 = arith.maximumf %265, %266 : vector<8x1xf32>
      %268 = vector.broadcast %258 : vector<8x1xf32> to vector<8x128xf32>
      %269 = arith.subf %254, %268 : vector<8x128xf32>
      %cst_84 = arith.constant 9.99999974E-6 : f32
      %270 = vector.broadcast %cst_84 : f32 to vector<8x1xf32>
      %271 = arith.addf %267, %270 : vector<8x1xf32>
      %272 = math.rsqrt %271 : vector<8x1xf32>
      %273 = vector.broadcast %272 : vector<8x1xf32> to vector<8x128xf32>
      %274 = arith.mulf %269, %273 : vector<8x128xf32>
      %275 = vector.broadcast %218 : vector<1x128xf32> to vector<8x128xf32>
      %276 = arith.mulf %274, %275 : vector<8x128xf32>
      %277 = vector.broadcast %219 : vector<1x128xf32> to vector<8x128xf32>
      %278 = arith.addf %276, %277 : vector<8x128xf32>
      %cst_85 = arith.constant 0.000000e+00 : f32
      %279 = vector.broadcast %cst_85 : f32 to vector<8x128xf32>
      %280 = arith.cmpf ogt, %278, %279 : vector<8x128xf32>
      %cst_86 = arith.constant 1.000000e-01 : f32
      %281 = vector.broadcast %cst_86 : f32 to vector<8x128xf32>
      %282 = arith.mulf %281, %278 : vector<8x128xf32>
      %283 = arith.select %280, %278, %282 : vector<8x128xi1>, vector<8x128xf32>
      %c3_i32_87 = arith.constant 3 : i32
      %284 = arith.muli %c3_i32_87, %arg18 : i32
      %c1_i32_88 = arith.constant 1 : i32
      %285 = arith.addi %284, %c1_i32_88 : i32
      %286 = arith.index_cast %285 : i32 to index
      %c0_89 = arith.constant 0 : index
      %c0_90 = arith.constant 0 : index
      %287 = vector.load %arg15[%286, %c0_89, %c0_90] : memref<9x16x128xf32, #tpu.memory_space<vmem>>, vector<1x16x128xf32>
      %288 = vector.shape_cast %287 : vector<1x16x128xf32> to vector<16x128xf32>
      %289 = vector.extract_strided_slice %202 {offsets = [0, 128], sizes = [8, 128], strides = [1, 1]} : vector<8x384xf32> to vector<8x128xf32>
      %c3_i32_91 = arith.constant 3 : i32
      %290 = arith.muli %c3_i32_91, %arg18 : i32
      %c1_i32_92 = arith.constant 1 : i32
      %291 = arith.addi %290, %c1_i32_92 : i32
      %292 = arith.index_cast %291 : i32 to index
      %c0_93 = arith.constant 0 : index
      %c0_94 = arith.constant 0 : index
      %293 = vector.load %arg13[%292, %c0_93, %c0_94] : memref<9x128x128xbf16, #tpu.memory_space<vmem>>, vector<1x128x128xbf16>
      %294 = vector.shape_cast %293 : vector<1x128x128xbf16> to vector<128x128xbf16>
      %295 = vector.extract_strided_slice %288 {offsets = [4, 0], sizes = [1, 128], strides = [1, 1]} : vector<16x128xf32> to vector<1x128xf32>
      %296 = vector.extract_strided_slice %288 {offsets = [5, 0], sizes = [1, 128], strides = [1, 1]} : vector<16x128xf32> to vector<1x128xf32>
      %297 = vector.extract_strided_slice %288 {offsets = [6, 0], sizes = [1, 128], strides = [1, 1]} : vector<16x128xf32> to vector<1x128xf32>
      %298 = vector.extract_strided_slice %288 {offsets = [7, 0], sizes = [1, 128], strides = [1, 1]} : vector<16x128xf32> to vector<1x128xf32>
      %299 = vector.extract_strided_slice %288 {offsets = [8, 0], sizes = [1, 128], strides = [1, 1]} : vector<16x128xf32> to vector<1x128xf32>
      %300 = vector.extract_strided_slice %288 {offsets = [9, 0], sizes = [1, 128], strides = [1, 1]} : vector<16x128xf32> to vector<1x128xf32>
      %301 = vector.broadcast %295 : vector<1x128xf32> to vector<8x128xf32>
      %302 = arith.addf %289, %301 : vector<8x128xf32>
      %cst_95 = arith.constant dense<0.000000e+00> : vector<8xf32>
      %303 = vector.multi_reduction <add>, %302, %cst_95 [1] : vector<8x128xf32> to vector<8xf32>
      %304 = vector.shape_cast %303 : vector<8xf32> to vector<8x1xf32>
      %cst_96 = arith.constant 5.000000e-02 : f32
      %305 = vector.broadcast %cst_96 : f32 to vector<8x1xf32>
      %306 = arith.mulf %304, %305 : vector<8x1xf32>
      %307 = arith.mulf %302, %302 : vector<8x128xf32>
      %cst_97 = arith.constant dense<0.000000e+00> : vector<8xf32>
      %308 = vector.multi_reduction <add>, %307, %cst_97 [1] : vector<8x128xf32> to vector<8xf32>
      %309 = vector.shape_cast %308 : vector<8xf32> to vector<8x1xf32>
      %cst_98 = arith.constant 5.000000e-02 : f32
      %310 = vector.broadcast %cst_98 : f32 to vector<8x1xf32>
      %311 = arith.mulf %309, %310 : vector<8x1xf32>
      %312 = arith.mulf %306, %306 : vector<8x1xf32>
      %313 = arith.subf %311, %312 : vector<8x1xf32>
      %cst_99 = arith.constant 0.000000e+00 : f32
      %314 = vector.broadcast %cst_99 : f32 to vector<8x1xf32>
      %315 = arith.maximumf %313, %314 : vector<8x1xf32>
      %316 = vector.broadcast %306 : vector<8x1xf32> to vector<8x128xf32>
      %317 = arith.subf %302, %316 : vector<8x128xf32>
      %cst_100 = arith.constant 9.99999974E-6 : f32
      %318 = vector.broadcast %cst_100 : f32 to vector<8x1xf32>
      %319 = arith.addf %315, %318 : vector<8x1xf32>
      %320 = math.rsqrt %319 : vector<8x1xf32>
      %321 = vector.broadcast %320 : vector<8x1xf32> to vector<8x128xf32>
      %322 = arith.mulf %317, %321 : vector<8x128xf32>
      %323 = vector.broadcast %296 : vector<1x128xf32> to vector<8x128xf32>
      %324 = arith.mulf %322, %323 : vector<8x128xf32>
      %325 = vector.broadcast %297 : vector<1x128xf32> to vector<8x128xf32>
      %326 = arith.addf %324, %325 : vector<8x128xf32>
      %cst_101 = arith.constant 0.000000e+00 : f32
      %327 = vector.broadcast %cst_101 : f32 to vector<8x128xf32>
      %328 = arith.cmpf ogt, %326, %327 : vector<8x128xf32>
      %cst_102 = arith.constant 1.000000e-01 : f32
      %329 = vector.broadcast %cst_102 : f32 to vector<8x128xf32>
      %330 = arith.mulf %329, %326 : vector<8x128xf32>
      %331 = arith.select %328, %326, %330 : vector<8x128xi1>, vector<8x128xf32>
      %332 = arith.truncf %331 : vector<8x128xf32> to vector<8x128xbf16>
      %cst_103 = arith.constant dense<0.000000e+00> : vector<8x128xf32>
      %333 = tpu.matmul %332, %294, %cst_103 {dimension_numbers = #tpu.dot_dimension_numbers<[1], [0], [0], [1], [0, 0, 1, 1], [], []>} : vector<8x128xbf16>, vector<128x128xbf16>, vector<8x128xf32> -> vector<8x128xf32>
      %334 = vector.broadcast %298 : vector<1x128xf32> to vector<8x128xf32>
      %335 = arith.addf %333, %334 : vector<8x128xf32>
      %cst_104 = arith.constant dense<0.000000e+00> : vector<8xf32>
      %336 = vector.multi_reduction <add>, %335, %cst_104 [1] : vector<8x128xf32> to vector<8xf32>
      %337 = vector.shape_cast %336 : vector<8xf32> to vector<8x1xf32>
      %cst_105 = arith.constant 5.000000e-02 : f32
      %338 = vector.broadcast %cst_105 : f32 to vector<8x1xf32>
      %339 = arith.mulf %337, %338 : vector<8x1xf32>
      %340 = arith.mulf %335, %335 : vector<8x128xf32>
      %cst_106 = arith.constant dense<0.000000e+00> : vector<8xf32>
      %341 = vector.multi_reduction <add>, %340, %cst_106 [1] : vector<8x128xf32> to vector<8xf32>
      %342 = vector.shape_cast %341 : vector<8xf32> to vector<8x1xf32>
      %cst_107 = arith.constant 5.000000e-02 : f32
      %343 = vector.broadcast %cst_107 : f32 to vector<8x1xf32>
      %344 = arith.mulf %342, %343 : vector<8x1xf32>
      %345 = arith.mulf %339, %339 : vector<8x1xf32>
      %346 = arith.subf %344, %345 : vector<8x1xf32>
      %cst_108 = arith.constant 0.000000e+00 : f32
      %347 = vector.broadcast %cst_108 : f32 to vector<8x1xf32>
      %348 = arith.maximumf %346, %347 : vector<8x1xf32>
      %349 = vector.broadcast %339 : vector<8x1xf32> to vector<8x128xf32>
      %350 = arith.subf %335, %349 : vector<8x128xf32>
      %cst_109 = arith.constant 9.99999974E-6 : f32
      %351 = vector.broadcast %cst_109 : f32 to vector<8x1xf32>
      %352 = arith.addf %348, %351 : vector<8x1xf32>
      %353 = math.rsqrt %352 : vector<8x1xf32>
      %354 = vector.broadcast %353 : vector<8x1xf32> to vector<8x128xf32>
      %355 = arith.mulf %350, %354 : vector<8x128xf32>
      %356 = vector.broadcast %299 : vector<1x128xf32> to vector<8x128xf32>
      %357 = arith.mulf %355, %356 : vector<8x128xf32>
      %358 = vector.broadcast %300 : vector<1x128xf32> to vector<8x128xf32>
      %359 = arith.addf %357, %358 : vector<8x128xf32>
      %cst_110 = arith.constant 0.000000e+00 : f32
      %360 = vector.broadcast %cst_110 : f32 to vector<8x128xf32>
      %361 = arith.cmpf ogt, %359, %360 : vector<8x128xf32>
      %cst_111 = arith.constant 1.000000e-01 : f32
      %362 = vector.broadcast %cst_111 : f32 to vector<8x128xf32>
      %363 = arith.mulf %362, %359 : vector<8x128xf32>
      %364 = arith.select %361, %359, %363 : vector<8x128xi1>, vector<8x128xf32>
      %c3_i32_112 = arith.constant 3 : i32
      %365 = arith.muli %c3_i32_112, %arg18 : i32
      %c2_i32 = arith.constant 2 : i32
      %366 = arith.addi %365, %c2_i32 : i32
      %367 = arith.index_cast %366 : i32 to index
      %c0_113 = arith.constant 0 : index
      %c0_114 = arith.constant 0 : index
      %368 = vector.load %arg15[%367, %c0_113, %c0_114] : memref<9x16x128xf32, #tpu.memory_space<vmem>>, vector<1x16x128xf32>
      %369 = vector.shape_cast %368 : vector<1x16x128xf32> to vector<16x128xf32>
      %370 = vector.extract_strided_slice %202 {offsets = [0, 256], sizes = [8, 128], strides = [1, 1]} : vector<8x384xf32> to vector<8x128xf32>
      %c3_i32_115 = arith.constant 3 : i32
      %371 = arith.muli %c3_i32_115, %arg18 : i32
      %c2_i32_116 = arith.constant 2 : i32
      %372 = arith.addi %371, %c2_i32_116 : i32
      %373 = arith.index_cast %372 : i32 to index
      %c0_117 = arith.constant 0 : index
      %c0_118 = arith.constant 0 : index
      %374 = vector.load %arg13[%373, %c0_117, %c0_118] : memref<9x128x128xbf16, #tpu.memory_space<vmem>>, vector<1x128x128xbf16>
      %375 = vector.shape_cast %374 : vector<1x128x128xbf16> to vector<128x128xbf16>
      %376 = vector.extract_strided_slice %369 {offsets = [4, 0], sizes = [1, 128], strides = [1, 1]} : vector<16x128xf32> to vector<1x128xf32>
      %377 = vector.extract_strided_slice %369 {offsets = [5, 0], sizes = [1, 128], strides = [1, 1]} : vector<16x128xf32> to vector<1x128xf32>
      %378 = vector.extract_strided_slice %369 {offsets = [6, 0], sizes = [1, 128], strides = [1, 1]} : vector<16x128xf32> to vector<1x128xf32>
      %379 = vector.extract_strided_slice %369 {offsets = [7, 0], sizes = [1, 128], strides = [1, 1]} : vector<16x128xf32> to vector<1x128xf32>
      %380 = vector.extract_strided_slice %369 {offsets = [8, 0], sizes = [1, 128], strides = [1, 1]} : vector<16x128xf32> to vector<1x128xf32>
      %381 = vector.extract_strided_slice %369 {offsets = [9, 0], sizes = [1, 128], strides = [1, 1]} : vector<16x128xf32> to vector<1x128xf32>
      %382 = vector.broadcast %376 : vector<1x128xf32> to vector<8x128xf32>
      %383 = arith.addf %370, %382 : vector<8x128xf32>
      %cst_119 = arith.constant dense<0.000000e+00> : vector<8xf32>
      %384 = vector.multi_reduction <add>, %383, %cst_119 [1] : vector<8x128xf32> to vector<8xf32>
      %385 = vector.shape_cast %384 : vector<8xf32> to vector<8x1xf32>
      %cst_120 = arith.constant 5.000000e-02 : f32
      %386 = vector.broadcast %cst_120 : f32 to vector<8x1xf32>
      %387 = arith.mulf %385, %386 : vector<8x1xf32>
      %388 = arith.mulf %383, %383 : vector<8x128xf32>
      %cst_121 = arith.constant dense<0.000000e+00> : vector<8xf32>
      %389 = vector.multi_reduction <add>, %388, %cst_121 [1] : vector<8x128xf32> to vector<8xf32>
      %390 = vector.shape_cast %389 : vector<8xf32> to vector<8x1xf32>
      %cst_122 = arith.constant 5.000000e-02 : f32
      %391 = vector.broadcast %cst_122 : f32 to vector<8x1xf32>
      %392 = arith.mulf %390, %391 : vector<8x1xf32>
      %393 = arith.mulf %387, %387 : vector<8x1xf32>
      %394 = arith.subf %392, %393 : vector<8x1xf32>
      %cst_123 = arith.constant 0.000000e+00 : f32
      %395 = vector.broadcast %cst_123 : f32 to vector<8x1xf32>
      %396 = arith.maximumf %394, %395 : vector<8x1xf32>
      %397 = vector.broadcast %387 : vector<8x1xf32> to vector<8x128xf32>
      %398 = arith.subf %383, %397 : vector<8x128xf32>
      %cst_124 = arith.constant 9.99999974E-6 : f32
      %399 = vector.broadcast %cst_124 : f32 to vector<8x1xf32>
      %400 = arith.addf %396, %399 : vector<8x1xf32>
      %401 = math.rsqrt %400 : vector<8x1xf32>
      %402 = vector.broadcast %401 : vector<8x1xf32> to vector<8x128xf32>
      %403 = arith.mulf %398, %402 : vector<8x128xf32>
      %404 = vector.broadcast %377 : vector<1x128xf32> to vector<8x128xf32>
      %405 = arith.mulf %403, %404 : vector<8x128xf32>
      %406 = vector.broadcast %378 : vector<1x128xf32> to vector<8x128xf32>
      %407 = arith.addf %405, %406 : vector<8x128xf32>
      %cst_125 = arith.constant 0.000000e+00 : f32
      %408 = vector.broadcast %cst_125 : f32 to vector<8x128xf32>
      %409 = arith.cmpf ogt, %407, %408 : vector<8x128xf32>
      %cst_126 = arith.constant 1.000000e-01 : f32
      %410 = vector.broadcast %cst_126 : f32 to vector<8x128xf32>
      %411 = arith.mulf %410, %407 : vector<8x128xf32>
      %412 = arith.select %409, %407, %411 : vector<8x128xi1>, vector<8x128xf32>
      %413 = arith.truncf %412 : vector<8x128xf32> to vector<8x128xbf16>
      %cst_127 = arith.constant dense<0.000000e+00> : vector<8x128xf32>
      %414 = tpu.matmul %413, %375, %cst_127 {dimension_numbers = #tpu.dot_dimension_numbers<[1], [0], [0], [1], [0, 0, 1, 1], [], []>} : vector<8x128xbf16>, vector<128x128xbf16>, vector<8x128xf32> -> vector<8x128xf32>
      %415 = vector.broadcast %379 : vector<1x128xf32> to vector<8x128xf32>
      %416 = arith.addf %414, %415 : vector<8x128xf32>
      %cst_128 = arith.constant dense<0.000000e+00> : vector<8xf32>
      %417 = vector.multi_reduction <add>, %416, %cst_128 [1] : vector<8x128xf32> to vector<8xf32>
      %418 = vector.shape_cast %417 : vector<8xf32> to vector<8x1xf32>
      %cst_129 = arith.constant 5.000000e-02 : f32
      %419 = vector.broadcast %cst_129 : f32 to vector<8x1xf32>
      %420 = arith.mulf %418, %419 : vector<8x1xf32>
      %421 = arith.mulf %416, %416 : vector<8x128xf32>
      %cst_130 = arith.constant dense<0.000000e+00> : vector<8xf32>
      %422 = vector.multi_reduction <add>, %421, %cst_130 [1] : vector<8x128xf32> to vector<8xf32>
      %423 = vector.shape_cast %422 : vector<8xf32> to vector<8x1xf32>
      %cst_131 = arith.constant 5.000000e-02 : f32
      %424 = vector.broadcast %cst_131 : f32 to vector<8x1xf32>
      %425 = arith.mulf %423, %424 : vector<8x1xf32>
      %426 = arith.mulf %420, %420 : vector<8x1xf32>
      %427 = arith.subf %425, %426 : vector<8x1xf32>
      %cst_132 = arith.constant 0.000000e+00 : f32
      %428 = vector.broadcast %cst_132 : f32 to vector<8x1xf32>
      %429 = arith.maximumf %427, %428 : vector<8x1xf32>
      %430 = vector.broadcast %420 : vector<8x1xf32> to vector<8x128xf32>
      %431 = arith.subf %416, %430 : vector<8x128xf32>
      %cst_133 = arith.constant 9.99999974E-6 : f32
      %432 = vector.broadcast %cst_133 : f32 to vector<8x1xf32>
      %433 = arith.addf %429, %432 : vector<8x1xf32>
      %434 = math.rsqrt %433 : vector<8x1xf32>
      %435 = vector.broadcast %434 : vector<8x1xf32> to vector<8x128xf32>
      %436 = arith.mulf %431, %435 : vector<8x128xf32>
      %437 = vector.broadcast %380 : vector<1x128xf32> to vector<8x128xf32>
      %438 = arith.mulf %436, %437 : vector<8x128xf32>
      %439 = vector.broadcast %381 : vector<1x128xf32> to vector<8x128xf32>
      %440 = arith.addf %438, %439 : vector<8x128xf32>
      %cst_134 = arith.constant 0.000000e+00 : f32
      %441 = vector.broadcast %cst_134 : f32 to vector<8x128xf32>
      %442 = arith.cmpf ogt, %440, %441 : vector<8x128xf32>
      %cst_135 = arith.constant 1.000000e-01 : f32
      %443 = vector.broadcast %cst_135 : f32 to vector<8x128xf32>
      %444 = arith.mulf %443, %440 : vector<8x128xf32>
      %445 = arith.select %442, %440, %444 : vector<8x128xi1>, vector<8x128xf32>
      %446 = vector.extract_strided_slice %207 {offsets = [11, 0], sizes = [1, 128], strides = [1, 1]} : vector<16x128xf32> to vector<1x128xf32>
      %447 = vector.broadcast %446 : vector<1x128xf32> to vector<8x128xf32>
      %448 = arith.mulf %283, %447 : vector<8x128xf32>
      %cst_136 = arith.constant dense<0.000000e+00> : vector<8xf32>
      %449 = vector.multi_reduction <add>, %448, %cst_136 [1] : vector<8x128xf32> to vector<8xf32>
      %450 = vector.shape_cast %449 : vector<8xf32> to vector<8x1xf32>
      %451 = vector.extract_strided_slice %207 {offsets = [10, 0], sizes = [1, 1], strides = [1, 1]} : vector<16x128xf32> to vector<1x1xf32>
      %452 = vector.broadcast %451 : vector<1x1xf32> to vector<8x1xf32>
      %453 = arith.addf %450, %452 : vector<8x1xf32>
      %454 = vector.extract_strided_slice %288 {offsets = [11, 0], sizes = [1, 128], strides = [1, 1]} : vector<16x128xf32> to vector<1x128xf32>
      %455 = vector.broadcast %454 : vector<1x128xf32> to vector<8x128xf32>
      %456 = arith.mulf %364, %455 : vector<8x128xf32>
      %cst_137 = arith.constant dense<0.000000e+00> : vector<8xf32>
      %457 = vector.multi_reduction <add>, %456, %cst_137 [1] : vector<8x128xf32> to vector<8xf32>
      %458 = vector.shape_cast %457 : vector<8xf32> to vector<8x1xf32>
      %459 = vector.extract_strided_slice %288 {offsets = [10, 0], sizes = [1, 1], strides = [1, 1]} : vector<16x128xf32> to vector<1x1xf32>
      %460 = vector.broadcast %459 : vector<1x1xf32> to vector<8x1xf32>
      %461 = arith.addf %458, %460 : vector<8x1xf32>
      %462 = arith.truncf %445 : vector<8x128xf32> to vector<8x128xbf16>
      %463 = arith.index_cast %arg18 : i32 to index
      %c0_138 = arith.constant 0 : index
      %c0_139 = arith.constant 0 : index
      %464 = vector.load %arg14[%463, %c0_138, %c0_139] : memref<3x128x8xbf16, #tpu.memory_space<vmem>>, vector<1x128x8xbf16>
      %465 = vector.shape_cast %464 : vector<1x128x8xbf16> to vector<128x8xbf16>
      %cst_140 = arith.constant dense<0.000000e+00> : vector<8x8xf32>
      %466 = tpu.matmul %462, %465, %cst_140 {dimension_numbers = #tpu.dot_dimension_numbers<[1], [0], [0], [1], [0, 0, 1, 1], [], []>} : vector<8x128xbf16>, vector<128x8xbf16>, vector<8x8xf32> -> vector<8x8xf32>
      %467 = vector.extract_strided_slice %369 {offsets = [10, 0], sizes = [1, 8], strides = [1, 1]} : vector<16x128xf32> to vector<1x8xf32>
      %468 = vector.broadcast %467 : vector<1x8xf32> to vector<8x8xf32>
      %469 = arith.addf %466, %468 : vector<8x8xf32>
      %470 = math.tanh %469 : vector<8x8xf32>
      %cst_141 = arith.constant dense<0.000000e+00> : vector<8xf32>
      %471 = vector.multi_reduction <add>, %470, %cst_141 [1] : vector<8x8xf32> to vector<8xf32>
      %472 = vector.shape_cast %471 : vector<8xf32> to vector<8x1xf32>
      %cst_142 = arith.constant 8.000000e+00 : f32
      %473 = vector.broadcast %cst_142 : f32 to vector<8x1xf32>
      %474 = arith.divf %472, %473 : vector<8x1xf32>
      %475 = arith.mulf %470, %470 : vector<8x8xf32>
      %cst_143 = arith.constant dense<0.000000e+00> : vector<8xf32>
      %476 = vector.multi_reduction <add>, %475, %cst_143 [1] : vector<8x8xf32> to vector<8xf32>
      %477 = vector.shape_cast %476 : vector<8xf32> to vector<8x1xf32>
      %cst_144 = arith.constant 8.000000e+00 : f32
      %478 = vector.broadcast %cst_144 : f32 to vector<8x1xf32>
      %479 = arith.divf %477, %478 : vector<8x1xf32>
      %480 = arith.mulf %474, %474 : vector<8x1xf32>
      %481 = arith.subf %479, %480 : vector<8x1xf32>
      %cst_145 = arith.constant 0.000000e+00 : f32
      %482 = vector.broadcast %cst_145 : f32 to vector<8x1xf32>
      %483 = arith.maximumf %481, %482 : vector<8x1xf32>
      %484 = vector.broadcast %474 : vector<8x1xf32> to vector<8x8xf32>
      %485 = arith.subf %470, %484 : vector<8x8xf32>
      %cst_146 = arith.constant 9.99999974E-6 : f32
      %486 = vector.broadcast %cst_146 : f32 to vector<8x1xf32>
      %487 = arith.addf %483, %486 : vector<8x1xf32>
      %488 = math.rsqrt %487 : vector<8x1xf32>
      %489 = vector.broadcast %488 : vector<8x1xf32> to vector<8x8xf32>
      %490 = arith.mulf %485, %489 : vector<8x8xf32>
      %cst_147 = arith.constant 5.000000e-01 : f32
      %491 = vector.broadcast %cst_147 : f32 to vector<8x1xf32>
      %492 = arith.cmpf ogt, %7, %491 : vector<8x1xf32>
      %cst_148 = arith.constant 0.000000e+00 : f32
      %493 = vector.broadcast %cst_148 : f32 to vector<8x1xf32>
      %494 = arith.select %492, %493, %453 : vector<8x1xi1>, vector<8x1xf32>
      %cst_149 = arith.constant 5.000000e-01 : f32
      %495 = vector.broadcast %cst_149 : f32 to vector<8x1xf32>
      %496 = arith.cmpf ogt, %8, %495 : vector<8x1xf32>
      %cst_150 = arith.constant 0.000000e+00 : f32
      %497 = vector.broadcast %cst_150 : f32 to vector<8x1xf32>
      %498 = arith.select %496, %497, %461 : vector<8x1xi1>, vector<8x1xf32>
      %499 = arith.addf %arg20, %494 : vector<8x1xf32>
      %cst_151 = arith.constant 3.14159274 : f32
      %500 = vector.broadcast %cst_151 : f32 to vector<8x1xf32>
      %501 = arith.addf %499, %500 : vector<8x1xf32>
      %cst_152 = arith.constant 6.28318548 : f32
      %502 = vector.broadcast %cst_152 : f32 to vector<8x1xf32>
      %503 = arith.remf %501, %502 : vector<8x1xf32>
      %cst_153 = arith.constant 0.000000e+00 : f32
      %504 = vector.broadcast %cst_153 : f32 to vector<8x1xf32>
      %505 = arith.cmpf one, %503, %504 : vector<8x1xf32>
      %cst_154 = arith.constant 0.000000e+00 : f32
      %506 = vector.broadcast %cst_154 : f32 to vector<8x1xf32>
      %507 = arith.cmpf olt, %503, %506 : vector<8x1xf32>
      %cst_155 = arith.constant 0.000000e+00 : f32
      %508 = arith.cmpf olt, %cst_152, %cst_155 : f32
      %509 = vector.broadcast %508 : i1 to vector<8x1xi1>
      %510 = vector.broadcast %509 : vector<8x1xi1> to vector<8x1xi1>
      %511 = arith.xori %507, %510 : vector<8x1xi1>
      %512 = arith.andi %511, %505 : vector<8x1xi1>
      %513 = vector.broadcast %cst_152 : f32 to vector<8x1xf32>
      %514 = arith.addf %503, %513 : vector<8x1xf32>
      %515 = arith.select %512, %514, %503 : vector<8x1xi1>, vector<8x1xf32>
      %cst_156 = arith.constant 3.14159274 : f32
      %516 = vector.broadcast %cst_156 : f32 to vector<8x1xf32>
      %517 = arith.subf %515, %516 : vector<8x1xf32>
      %518 = arith.addf %arg19, %498 : vector<8x1xf32>
      %cst_157 = arith.constant 4.000000e-01 : f32
      %cst_158 = arith.constant 1.200000e+00 : f32
      %519 = vector.broadcast %cst_157 : f32 to vector<8x1xf32>
      %520 = arith.maximumf %519, %518 : vector<8x1xf32>
      %521 = vector.broadcast %cst_158 : f32 to vector<8x1xf32>
      %522 = arith.minimumf %521, %520 : vector<8x1xf32>
      %523 = arith.addf %arg21, %490 : vector<8x8xf32>
      %cst_159 = arith.constant 0.959999978 : f32
      %524 = vector.broadcast %cst_159 : f32 to vector<1x1xf32>
      %525 = arith.mulf %arg22, %524 : vector<1x1xf32>
      %526 = arith.mulf %52, %52 : vector<8x1xf32>
      %527 = arith.mulf %57, %57 : vector<8x1xf32>
      %528 = arith.addf %526, %527 : vector<8x1xf32>
      %529 = vector.shape_cast %528 : vector<8x1xf32> to vector<1x8x1xf32>
      %cst_160 = arith.constant dense<0.000000e+00> : vector<1xf32>
      %530 = vector.multi_reduction <add>, %529, %cst_160 [1, 2] : vector<1x8x1xf32> to vector<1xf32>
      %531 = vector.shape_cast %530 : vector<1xf32> to vector<1x1x1xf32>
      %532 = vector.extract %531[0, 0, 0] : f32 from vector<1x1x1xf32>
      %533 = vector.broadcast %532 : f32 to vector<1x1xf32>
      %534 = arith.addf %525, %533 : vector<1x1xf32>
      scf.yield %522, %517, %523, %534 : vector<8x1xf32>, vector<8x1xf32>, vector<8x8xf32>, vector<1x1xf32>
    }
    %c3_i32_13 = arith.constant 3 : i32
    %23 = tpu.concatenate %22#0, %22#1 in 1 : vector<8x1xf32>, vector<8x1xf32> -> vector<8x2xf32>
    %c0_14 = arith.constant 0 : index
    %c0_15 = arith.constant 0 : index
    %c0_16 = arith.constant 0 : index
    %24 = vector.load %arg16[%c0_14, %c0_15, %c0_16] : memref<1x8x2xf32, #tpu.memory_space<vmem>>, vector<1x8x2xf32>
    %25 = vector.shape_cast %24 : vector<1x8x2xf32> to vector<8x2xf32>
    %26 = vector.shape_cast %23 : vector<8x2xf32> to vector<1x8x2xf32>
    tpu.vector_store %arg16[%c0_14, %c0_15, %c0_16], %26 {strides = array<i32>} : memref<1x8x2xf32, #tpu.memory_space<vmem>>, vector<1x8x2xf32>,
    %c0_17 = arith.constant 0 : index
    %c0_18 = arith.constant 0 : index
    %c0_19 = arith.constant 0 : index
    %27 = vector.load %arg17[%c0_17, %c0_18, %c0_19] : memref<1x1x1xf32, #tpu.memory_space<vmem>>, vector<1x1x1xf32>
    %28 = vector.shape_cast %27 : vector<1x1x1xf32> to vector<1x1xf32>
    %29 = vector.shape_cast %22#3 : vector<1x1xf32> to vector<1x1x1xf32>
    tpu.vector_store %arg17[%c0_17, %c0_18, %c0_19], %29 {strides = array<i32>} : memref<1x1x1xf32, #tpu.memory_space<vmem>>, vector<1x1x1xf32>,
    return
  }
  func.func @transform_0(%arg0: i32) -> (i32, i32, i32) {
    %c0_i32 = arith.constant 0 : i32
    %c0_i32_0 = arith.constant 0 : i32
    %c0_i32_1 = arith.constant 0 : i32
    return %arg0, %c0_i32, %c0_i32_0 : i32, i32, i32
  }
  func.func @transform_1(%arg0: i32) -> (i32, i32, i32) {
    %c0_i32 = arith.constant 0 : i32
    %c0_i32_0 = arith.constant 0 : i32
    %c0_i32_1 = arith.constant 0 : i32
    return %arg0, %c0_i32, %c0_i32_0 : i32, i32, i32
  }
  func.func @transform_2(%arg0: i32) -> (i32, i32, i32) {
    %c0_i32 = arith.constant 0 : i32
    %c0_i32_0 = arith.constant 0 : i32
    %c0_i32_1 = arith.constant 0 : i32
    return %arg0, %c0_i32, %c0_i32_0 : i32, i32, i32
  }
  func.func @transform_3(%arg0: i32) -> (i32, i32) {
    %c0_i32 = arith.constant 0 : i32
    %c0_i32_0 = arith.constant 0 : i32
    %c0_i32_1 = arith.constant 0 : i32
    return %c0_i32, %c0_i32_0 : i32, i32
  }
  func.func @transform_4(%arg0: i32) -> (i32, i32) {
    %c0_i32 = arith.constant 0 : i32
    %c0_i32_0 = arith.constant 0 : i32
    %c0_i32_1 = arith.constant 0 : i32
    return %c0_i32, %c0_i32_0 : i32, i32
  }
  func.func @transform_5(%arg0: i32) -> (i32, i32, i32) {
    %c0_i32 = arith.constant 0 : i32
    %c0_i32_0 = arith.constant 0 : i32
    %c0_i32_1 = arith.constant 0 : i32
    %c0_i32_2 = arith.constant 0 : i32
    return %c0_i32, %c0_i32_0, %c0_i32_1 : i32, i32, i32
  }
  func.func @transform_6(%arg0: i32) -> (i32, i32, i32) {
    %c0_i32 = arith.constant 0 : i32
    %c0_i32_0 = arith.constant 0 : i32
    %c0_i32_1 = arith.constant 0 : i32
    %c0_i32_2 = arith.constant 0 : i32
    return %c0_i32, %c0_i32_0, %c0_i32_1 : i32, i32, i32
  }
  func.func @transform_7(%arg0: i32) -> (i32, i32, i32) {
    %c0_i32 = arith.constant 0 : i32
    %c0_i32_0 = arith.constant 0 : i32
    %c0_i32_1 = arith.constant 0 : i32
    %c0_i32_2 = arith.constant 0 : i32
    return %c0_i32, %c0_i32_0, %c0_i32_1 : i32, i32, i32
  }
  func.func @transform_8(%arg0: i32) -> (i32, i32, i32) {
    %c0_i32 = arith.constant 0 : i32
    %c0_i32_0 = arith.constant 0 : i32
    %c0_i32_1 = arith.constant 0 : i32
    %c0_i32_2 = arith.constant 0 : i32
    return %c0_i32, %c0_i32_0, %c0_i32_1 : i32, i32, i32
  }
  func.func @transform_9(%arg0: i32) -> (i32, i32, i32) {
    %c0_i32 = arith.constant 0 : i32
    %c0_i32_0 = arith.constant 0 : i32
    %c0_i32_1 = arith.constant 0 : i32
    %c0_i32_2 = arith.constant 0 : i32
    return %c0_i32, %c0_i32_0, %c0_i32_1 : i32, i32, i32
  }
  func.func @transform_10(%arg0: i32) -> (i32, i32, i32) {
    %c0_i32 = arith.constant 0 : i32
    %c0_i32_0 = arith.constant 0 : i32
    %c0_i32_1 = arith.constant 0 : i32
    %c0_i32_2 = arith.constant 0 : i32
    return %c0_i32, %c0_i32_0, %c0_i32_1 : i32, i32, i32
  }
  func.func @transform_11(%arg0: i32) -> (i32, i32, i32) {
    %c0_i32 = arith.constant 0 : i32
    %c0_i32_0 = arith.constant 0 : i32
    %c0_i32_1 = arith.constant 0 : i32
    %c0_i32_2 = arith.constant 0 : i32
    return %c0_i32, %c0_i32_0, %c0_i32_1 : i32, i32, i32
  }
  func.func @transform_12(%arg0: i32) -> (i32, i32, i32) {
    %c0_i32 = arith.constant 0 : i32
    %c0_i32_0 = arith.constant 0 : i32
    %c0_i32_1 = arith.constant 0 : i32
    %c0_i32_2 = arith.constant 0 : i32
    return %c0_i32, %c0_i32_0, %c0_i32_1 : i32, i32, i32
  }
  func.func @transform_13(%arg0: i32) -> (i32, i32, i32) {
    %c0_i32 = arith.constant 0 : i32
    %c0_i32_0 = arith.constant 0 : i32
    %c0_i32_1 = arith.constant 0 : i32
    %c0_i32_2 = arith.constant 0 : i32
    return %c0_i32, %c0_i32_0, %c0_i32_1 : i32, i32, i32
  }
  func.func @transform_14(%arg0: i32) -> (i32, i32, i32) {
    %c0_i32 = arith.constant 0 : i32
    %c0_i32_0 = arith.constant 0 : i32
    %c0_i32_1 = arith.constant 0 : i32
    %c0_i32_2 = arith.constant 0 : i32
    return %c0_i32, %c0_i32_0, %c0_i32_1 : i32, i32, i32
  }
  func.func @transform_15(%arg0: i32) -> (i32, i32, i32) {
    %c0_i32 = arith.constant 0 : i32
    %c0_i32_0 = arith.constant 0 : i32
    %c0_i32_1 = arith.constant 0 : i32
    return %arg0, %c0_i32, %c0_i32_0 : i32, i32, i32
  }
  func.func @transform_16(%arg0: i32) -> (i32, i32, i32) {
    %c0_i32 = arith.constant 0 : i32
    %c0_i32_0 = arith.constant 0 : i32
    %c0_i32_1 = arith.constant 0 : i32
    return %arg0, %c0_i32, %c0_i32_0 : i32, i32, i32
  }
}

</mosaic_0001>

<llo_original>
// kernel: tpu_custom_call.1
$region0: #{tpu_custom_call.1}
  #allocation0 [shape = 'u32[]', space=smem, size = 0x4, offset = 0x4, fixed_abs, tag = 'smem constant byte address 0x4 - core index']
  #allocation1 [shape = 'u32[144,128]{1,0:T(1,128)}', space=vmem, size = 0x12000, scoped, tag = 'internal scratch']
  %s0 = inlined_call_operand.vmem [shape: f32[2,8,8], index: 0, kind: input, shape index: {}]
  %s1 = inlined_call_operand.vmem [shape: f32[2,32,4], index: 1, kind: input, shape index: {}]
  %s2 = inlined_call_operand.vmem [shape: f32[2,16,8], index: 2, kind: input, shape index: {}]
  %s3 = inlined_call_operand.vmem [shape: bf16[32,8], index: 3, kind: input, shape index: {}]
  %s4 = inlined_call_operand.hbm [shape: bf16[8,32], index: 4, kind: input, shape index: {}]
  %s5 = inlined_call_operand.hbm [shape: bf16[3,8,128], index: 5, kind: input, shape index: {}]
  %s6 = inlined_call_operand.vmem [shape: bf16[3,128,128], index: 6, kind: input, shape index: {}]
  %s7 = inlined_call_operand.vmem [shape: bf16[3,128,8], index: 7, kind: input, shape index: {}]
  %s8 = inlined_call_operand.vmem [shape: f32[3,16,128], index: 8, kind: input, shape index: {}]
  %s9 = inlined_call_operand.vmem [shape: f32[3,4,384], index: 9, kind: input, shape index: {}]
  %s10 = inlined_call_operand.vmem [shape: bf16[3,8,384], index: 10, kind: input, shape index: {}]
  %s11 = inlined_call_operand.vmem [shape: bf16[3,8,384], index: 11, kind: input, shape index: {}]
  %s12 = inlined_call_operand.hbm [shape: bf16[9,128,128], index: 12, kind: input, shape index: {}]
  %s13 = inlined_call_operand.vmem [shape: bf16[3,128,8], index: 13, kind: input, shape index: {}]
  %s14 = inlined_call_operand.vmem [shape: f32[9,16,128], index: 14, kind: input, shape index: {}]
  %s15 = inlined_call_operand.vmem [shape: f32[2,8,2], index: 15, kind: output, shape index: {0}]
  %s16 = inlined_call_operand.vmem [shape: f32[2,1,1], index: 16, kind: output, shape index: {1}]
  %17 = xla_tuple %s15, %s16
  %s18 = sld [smem:[#allocation0]]
  $region120: #{tpu_custom_call.1} parent=0
    _
  %s20 = ssub.s32 1, %s18
  %s21 = scalar_select 0, %s20, %s18
  $region1: #{tpu_custom_call.1} parent=0
    #allocation2 [shape = 'u8[2048]{0}', space=vmem, size = 0x800, scoped, tag = 'input window, operand 4, single buffered']
    #allocation3 [shape = 's32[2]{0}', space=sflag, size = 0x8, scoped, tag = 'scoped memory for tpu_custom_call.1']
    #allocation4 [shape = 'u8[6144]{0}', space=vmem, size = 0x1800, scoped, tag = 'input window, operand 5, single buffered']
    #allocation5 [shape = 's32[1]{0}', space=sflag, size = 0x4, scoped, tag = 'scoped memory for tpu_custom_call.1']
    #allocation6 [shape = 'u8[294912]{0}', space=vmem, size = 0x48000, scoped, tag = 'input window, operand 12, single buffered']
    %22 = vsyncpa [#allocation3], 0
    %23 = vsyncpa [#allocation5], 0
    loop: start=0, step=1, limit=4
    $region2: #{tpu_custom_call.1} parent=1 // loop_pre_header
      _
    $region3: #{tpu_custom_call.1} parent=1 // loop_header
      %s25 = sphi 0, %s29
      %p26 = scmp.ge.s32.totalorder %s25, 4
      %s35 = sphi 0, %s37
      %s38 = sphi 0, %s35
      %s39 = sphi 0, %s38
      %s55 = sphi 0, %s39
      %s61 = sphi 0, %s63
      %s64 = sphi 0, %s61
      %s65 = sphi 0, %s64
      %s81 = sphi 0, %s65
      %s87 = sphi 0, %s89
      %s90 = sphi 0, %s87
      %s91 = sphi 0, %s90
      %s107 = sphi 0, %s91
      %s111 = sphi 0, %s111
      %s113 = sphi 0, %s111
      %s114 = sphi 0, %s113
      %s128 = sphi 0, %s114
      %s132 = sphi 0, %s132
      %s134 = sphi 0, %s132
      %s135 = sphi 0, %s134
      %s149 = sphi 0, %s135
      %s153 = sphi 0, %s153
      %s155 = sphi 0, %s153
      %s156 = sphi 0, %s155
      %s170 = sphi 0, %s156
      %s174 = sphi 0, %s174
      %s176 = sphi 0, %s174
      %s177 = sphi 0, %s176
      %s191 = sphi 0, %s177
      %s195 = sphi 0, %s195
      %s197 = sphi 0, %s195
      %s198 = sphi 0, %s197
      %s212 = sphi 0, %s198
      %s216 = sphi 0, %s216
      %s218 = sphi 0, %s216
      %s219 = sphi 0, %s218
      %s233 = sphi 0, %s219
      %s237 = sphi 0, %s237
      %s239 = sphi 0, %s237
      %s240 = sphi 0, %s239
      %s254 = sphi 0, %s240
      %s258 = sphi 0, %s258
      %s260 = sphi 0, %s258
      %s261 = sphi 0, %s260
      %s275 = sphi 0, %s261
      %s279 = sphi 0, %s279
      %s281 = sphi 0, %s279
      %s282 = sphi 0, %s281
      %s296 = sphi 0, %s282
      %s300 = sphi 0, %s300
      %s302 = sphi 0, %s300
      %s303 = sphi 0, %s302
      %s317 = sphi 0, %s303
      %s321 = sphi 0, %s321
      %s323 = sphi 0, %s321
      %s324 = sphi 0, %s323
      %s338 = sphi 0, %s324
      %s342 = sphi 0, %s342
      %s344 = sphi 0, %s342
      %s345 = sphi 0, %s344
      %s359 = sphi 0, %s345
      %s365 = sphi 0, %s367
      %s368 = sphi 0, %s365
      %s369 = sphi 0, %s368
      %s385 = sphi 0, %s369
      %s391 = sphi 0, %s393
      %s394 = sphi 0, %s391
      %s395 = sphi 0, %s394
      %s411 = sphi 0, %s395
    $region4: #{tpu_custom_call.1} parent=1 // loop_header_branch
      %28 = sbr.rel (%p26) target = $region8
    $region5: #{tpu_custom_call.1} parent=1 // loop_body
      %s30 = ssub.s32 %s25, 1
      %s31 = ssub.s32 %s25, 2
      %s32 = sadd.s32 %s25, 1
      %s33 = ssub.s32 %s25, %s32
      %p34 = scmp.eq.s32.totalorder %s33, 0
      %s36 = sadd.s32 %s35, 1
      %s37 = scalar_select %p34, %s35, %s36
      %p40 = pneg %p34
      %p41 = scmp.eq.s32.totalorder %s25, 1
      %p42 = por %p40, %p41
      %p43 = scmp.ne.s32.totalorder %s35, %s38
      %p44 = scmp.eq.s32.totalorder %s25, 0
      %p45 = por %p43, %p44
      %p46 = scmp.ne.s32.totalorder %s35, %s38
      %p47 = scmp.eq.s32.totalorder %s30, 1
      %p48 = por %p46, %p47
      %p49 = scmp.ne.s32.totalorder %s38, %s39
      %p50 = scmp.eq.s32.totalorder %s30, 0
      %p51 = por %p49, %p50
      %p52 = scmp.ne.s32.totalorder %s38, %s39
      %p53 = scmp.eq.s32.totalorder %s31, 1
      %p54 = por %p52, %p53
      %p56 = scmp.ne.s32.totalorder %s39, %s55
      %p57 = scmp.eq.s32.totalorder %s31, 0
      %p58 = por %p56, %p57
      %s59 = ssub.s32 %s25, %s32
      %p60 = scmp.eq.s32.totalorder %s59, 0
      %s62 = sadd.s32 %s61, 1
      %s63 = scalar_select %p60, %s61, %s62
      %p66 = pneg %p60
      %p67 = scmp.eq.s32.totalorder %s25, 1
      %p68 = por %p66, %p67
      %p69 = scmp.ne.s32.totalorder %s61, %s64
      %p70 = scmp.eq.s32.totalorder %s25, 0
      %p71 = por %p69, %p70
      %p72 = scmp.ne.s32.totalorder %s61, %s64
      %p73 = scmp.eq.s32.totalorder %s30, 1
      %p74 = por %p72, %p73
      %p75 = scmp.ne.s32.totalorder %s64, %s65
      %p76 = scmp.eq.s32.totalorder %s30, 0
      %p77 = por %p75, %p76
      %p78 = scmp.ne.s32.totalorder %s64, %s65
      %p79 = scmp.eq.s32.totalorder %s31, 1
      %p80 = por %p78, %p79
      %p82 = scmp.ne.s32.totalorder %s65, %s81
      %p83 = scmp.eq.s32.totalorder %s31, 0
      %p84 = por %p82, %p83
      %s85 = ssub.s32 %s25, %s32
      %p86 = scmp.eq.s32.totalorder %s85, 0
      %s88 = sadd.s32 %s87, 1
      %s89 = scalar_select %p86, %s87, %s88
      %p92 = pneg %p86
      %p93 = scmp.eq.s32.totalorder %s25, 1
      %p94 = por %p92, %p93
      %p95 = scmp.ne.s32.totalorder %s87, %s90
      %p96 = scmp.eq.s32.totalorder %s25, 0
      %p97 = por %p95, %p96
      %p98 = scmp.ne.s32.totalorder %s87, %s90
      %p99 = scmp.eq.s32.totalorder %s30, 1
      %p100 = por %p98, %p99
      %p101 = scmp.ne.s32.totalorder %s90, %s91
      %p102 = scmp.eq.s32.totalorder %s30, 0
      %p103 = por %p101, %p102
      %p104 = scmp.ne.s32.totalorder %s90, %s91
      %p105 = scmp.eq.s32.totalorder %s31, 1
      %p106 = por %p104, %p105
      %p108 = scmp.ne.s32.totalorder %s91, %s107
      %p109 = scmp.eq.s32.totalorder %s31, 0
      %p110 = por %p108, %p109
      %s112 = sadd.s32 %s111, 1
      %p115 = scmp.eq.s32.totalorder %s25, 1
      %p116 = scmp.ne.s32.totalorder %s111, %s113
      %p117 = scmp.eq.s32.totalorder %s25, 0
      %p118 = por %p116, %p117
      %p119 = scmp.ne.s32.totalorder %s111, %s113
      %p120 = scmp.eq.s32.totalorder %s30, 1
      %p121 = por %p119, %p120
      %p122 = scmp.ne.s32.totalorder %s113, %s114
      %p123 = scmp.eq.s32.totalorder %s30, 0
      %p124 = por %p122, %p123
      %p125 = scmp.ne.s32.totalorder %s113, %s114
      %p126 = scmp.eq.s32.totalorder %s31, 1
      %p127 = por %p125, %p126
      %p129 = scmp.ne.s32.totalorder %s114, %s128
      %p130 = scmp.eq.s32.totalorder %s31, 0
      %p131 = por %p129, %p130
      %s133 = sadd.s32 %s132, 1
      %p136 = scmp.eq.s32.totalorder %s25, 1
      %p137 = scmp.ne.s32.totalorder %s132, %s134
      %p138 = scmp.eq.s32.totalorder %s25, 0
      %p139 = por %p137, %p138
      %p140 = scmp.ne.s32.totalorder %s132, %s134
      %p141 = scmp.eq.s32.totalorder %s30, 1
      %p142 = por %p140, %p141
      %p143 = scmp.ne.s32.totalorder %s134, %s135
      %p144 = scmp.eq.s32.totalorder %s30, 0
      %p145 = por %p143, %p144
      %p146 = scmp.ne.s32.totalorder %s134, %s135
      %p147 = scmp.eq.s32.totalorder %s31, 1
      %p148 = por %p146, %p147
      %p150 = scmp.ne.s32.totalorder %s135, %s149
      %p151 = scmp.eq.s32.totalorder %s31, 0
      %p152 = por %p150, %p151
      %s154 = sadd.s32 %s153, 1
      %p157 = scmp.eq.s32.totalorder %s25, 1
      %p158 = scmp.ne.s32.totalorder %s153, %s155
      %p159 = scmp.eq.s32.totalorder %s25, 0
      %p160 = por %p158, %p159
      %p161 = scmp.ne.s32.totalorder %s153, %s155
      %p162 = scmp.eq.s32.totalorder %s30, 1
      %p163 = por %p161, %p162
      %p164 = scmp.ne.s32.totalorder %s155, %s156
      %p165 = scmp.eq.s32.totalorder %s30, 0
      %p166 = por %p164, %p165
      %p167 = scmp.ne.s32.totalorder %s155, %s156
      %p168 = scmp.eq.s32.totalorder %s31, 1
      %p169 = por %p167, %p168
      %p171 = scmp.ne.s32.totalorder %s156, %s170
      %p172 = scmp.eq.s32.totalorder %s31, 0
      %p173 = por %p171, %p172
      %s175 = sadd.s32 %s174, 1
      %p178 = scmp.eq.s32.totalorder %s25, 1
      %p179 = scmp.ne.s32.totalorder %s174, %s176
      %p180 = scmp.eq.s32.totalorder %s25, 0
      %p181 = por %p179, %p180
      %p182 = scmp.ne.s32.totalorder %s174, %s176
      %p183 = scmp.eq.s32.totalorder %s30, 1
      %p184 = por %p182, %p183
      %p185 = scmp.ne.s32.totalorder %s176, %s177
      %p186 = scmp.eq.s32.totalorder %s30, 0
      %p187 = por %p185, %p186
      %p188 = scmp.ne.s32.totalorder %s176, %s177
      %p189 = scmp.eq.s32.totalorder %s31, 1
      %p190 = por %p188, %p189
      %p192 = scmp.ne.s32.totalorder %s177, %s191
      %p193 = scmp.eq.s32.totalorder %s31, 0
      %p194 = por %p192, %p193
      %s196 = sadd.s32 %s195, 1
      %p199 = scmp.eq.s32.totalorder %s25, 1
      %p200 = scmp.ne.s32.totalorder %s195, %s197
      %p201 = scmp.eq.s32.totalorder %s25, 0
      %p202 = por %p200, %p201
      %p203 = scmp.ne.s32.totalorder %s195, %s197
      %p204 = scmp.eq.s32.totalorder %s30, 1
      %p205 = por %p203, %p204
      %p206 = scmp.ne.s32.totalorder %s197, %s198
      %p207 = scmp.eq.s32.totalorder %s30, 0
      %p208 = por %p206, %p207
      %p209 = scmp.ne.s32.totalorder %s197, %s198
      %p210 = scmp.eq.s32.totalorder %s31, 1
      %p211 = por %p209, %p210
      %p213 = scmp.ne.s32.totalorder %s198, %s212
      %p214 = scmp.eq.s32.totalorder %s31, 0
      %p215 = por %p213, %p214
      %s217 = sadd.s32 %s216, 1
      %p220 = scmp.eq.s32.totalorder %s25, 1
      %p221 = scmp.ne.s32.totalorder %s216, %s218
      %p222 = scmp.eq.s32.totalorder %s25, 0
      %p223 = por %p221, %p222
      %p224 = scmp.ne.s32.totalorder %s216, %s218
      %p225 = scmp.eq.s32.totalorder %s30, 1
      %p226 = por %p224, %p225
      %p227 = scmp.ne.s32.totalorder %s218, %s219
      %p228 = scmp.eq.s32.totalorder %s30, 0
      %p229 = por %p227, %p228
      %p230 = scmp.ne.s32.totalorder %s218, %s219
      %p231 = scmp.eq.s32.totalorder %s31, 1
      %p232 = por %p230, %p231
      %p234 = scmp.ne.s32.totalorder %s219, %s233
      %p235 = scmp.eq.s32.totalorder %s31, 0
      %p236 = por %p234, %p235
      %s238 = sadd.s32 %s237, 1
      %p241 = scmp.eq.s32.totalorder %s25, 1
      %p242 = scmp.ne.s32.totalorder %s237, %s239
      %p243 = scmp.eq.s32.totalorder %s25, 0
      %p244 = por %p242, %p243
      %p245 = scmp.ne.s32.totalorder %s237, %s239
      %p246 = scmp.eq.s32.totalorder %s30, 1
      %p247 = por %p245, %p246
      %p248 = scmp.ne.s32.totalorder %s239, %s240
      %p249 = scmp.eq.s32.totalorder %s30, 0
      %p250 = por %p248, %p249
      %p251 = scmp.ne.s32.totalorder %s239, %s240
      %p252 = scmp.eq.s32.totalorder %s31, 1
      %p253 = por %p251, %p252
      %p255 = scmp.ne.s32.totalorder %s240, %s254
      %p256 = scmp.eq.s32.totalorder %s31, 0
      %p257 = por %p255, %p256
      %s259 = sadd.s32 %s258, 1
      %p262 = scmp.eq.s32.totalorder %s25, 1
      %p263 = scmp.ne.s32.totalorder %s258, %s260
      %p264 = scmp.eq.s32.totalorder %s25, 0
      %p265 = por %p263, %p264
      %p266 = scmp.ne.s32.totalorder %s258, %s260
      %p267 = scmp.eq.s32.totalorder %s30, 1
      %p268 = por %p266, %p267
      %p269 = scmp.ne.s32.totalorder %s260, %s261
      %p270 = scmp.eq.s32.totalorder %s30, 0
      %p271 = por %p269, %p270
      %p272 = scmp.ne.s32.totalorder %s260, %s261
      %p273 = scmp.eq.s32.totalorder %s31, 1
      %p274 = por %p272, %p273
      %p276 = scmp.ne.s32.totalorder %s261, %s275
      %p277 = scmp.eq.s32.totalorder %s31, 0
      %p278 = por %p276, %p277
      %s280 = sadd.s32 %s279, 1
      %p283 = scmp.eq.s32.totalorder %s25, 1
      %p284 = scmp.ne.s32.totalorder %s279, %s281
      %p285 = scmp.eq.s32.totalorder %s25, 0
      %p286 = por %p284, %p285
      %p287 = scmp.ne.s32.totalorder %s279, %s281
      %p288 = scmp.eq.s32.totalorder %s30, 1
      %p289 = por %p287, %p288
      %p290 = scmp.ne.s32.totalorder %s281, %s282
      %p291 = scmp.eq.s32.totalorder %s30, 0
      %p292 = por %p290, %p291
      %p293 = scmp.ne.s32.totalorder %s281, %s282
      %p294 = scmp.eq.s32.totalorder %s31, 1
      %p295 = por %p293, %p294
      %p297 = scmp.ne.s32.totalorder %s282, %s296
      %p298 = scmp.eq.s32.totalorder %s31, 0
      %p299 = por %p297, %p298
      %s301 = sadd.s32 %s300, 1
      %p304 = scmp.eq.s32.totalorder %s25, 1
      %p305 = scmp.ne.s32.totalorder %s300, %s302
      %p306 = scmp.eq.s32.totalorder %s25, 0
      %p307 = por %p305, %p306
      %p308 = scmp.ne.s32.totalorder %s300, %s302
      %p309 = scmp.eq.s32.totalorder %s30, 1
      %p310 = por %p308, %p309
      %p311 = scmp.ne.s32.totalorder %s302, %s303
      %p312 = scmp.eq.s32.totalorder %s30, 0
      %p313 = por %p311, %p312
      %p314 = scmp.ne.s32.totalorder %s302, %s303
      %p315 = scmp.eq.s32.totalorder %s31, 1
      %p316 = por %p314, %p315
      %p318 = scmp.ne.s32.totalorder %s303, %s317
      %p319 = scmp.eq.s32.totalorder %s31, 0
      %p320 = por %p318, %p319
      %s322 = sadd.s32 %s321, 1
      %p325 = scmp.eq.s32.totalorder %s25, 1
      %p326 = scmp.ne.s32.totalorder %s321, %s323
      %p327 = scmp.eq.s32.totalorder %s25, 0
      %p328 = por %p326, %p327
      %p329 = scmp.ne.s32.totalorder %s321, %s323
      %p330 = scmp.eq.s32.totalorder %s30, 1
      %p331 = por %p329, %p330
      %p332 = scmp.ne.s32.totalorder %s323, %s324
      %p333 = scmp.eq.s32.totalorder %s30, 0
      %p334 = por %p332, %p333
      %p335 = scmp.ne.s32.totalorder %s323, %s324
      %p336 = scmp.eq.s32.totalorder %s31, 1
      %p337 = por %p335, %p336
      %p339 = scmp.ne.s32.totalorder %s324, %s338
      %p340 = scmp.eq.s32.totalorder %s31, 0
      %p341 = por %p339, %p340
      %s343 = sadd.s32 %s342, 1
      %p346 = scmp.eq.s32.totalorder %s25, 1
      %p347 = scmp.ne.s32.totalorder %s342, %s344
      %p348 = scmp.eq.s32.totalorder %s25, 0
      %p349 = por %p347, %p348
      %p350 = scmp.ne.s32.totalorder %s342, %s344
      %p351 = scmp.eq.s32.totalorder %s30, 1
      %p352 = por %p350, %p351
      %p353 = scmp.ne.s32.totalorder %s344, %s345
      %p354 = scmp.eq.s32.totalorder %s30, 0
      %p355 = por %p353, %p354
      %p356 = scmp.ne.s32.totalorder %s344, %s345
      %p357 = scmp.eq.s32.totalorder %s31, 1
      %p358 = por %p356, %p357
      %p360 = scmp.ne.s32.totalorder %s345, %s359
      %p361 = scmp.eq.s32.totalorder %s31, 0
      %p362 = por %p360, %p361
      %s363 = ssub.s32 %s25, %s32
      %p364 = scmp.eq.s32.totalorder %s363, 0
      %s366 = sadd.s32 %s365, 1
      %s367 = scalar_select %p364, %s365, %s366
      %p370 = pneg %p364
      %p371 = scmp.eq.s32.totalorder %s25, 1
      %p372 = por %p370, %p371
      %p373 = scmp.ne.s32.totalorder %s365, %s368
      %p374 = scmp.eq.s32.totalorder %s25, 0
      %p375 = por %p373, %p374
      %p376 = scmp.ne.s32.totalorder %s365, %s368
      %p377 = scmp.eq.s32.totalorder %s30, 1
      %p378 = por %p376, %p377
      %p379 = scmp.ne.s32.totalorder %s368, %s369
      %p380 = scmp.eq.s32.totalorder %s30, 0
      %p381 = por %p379, %p380
      %p382 = scmp.ne.s32.totalorder %s368, %s369
      %p383 = scmp.eq.s32.totalorder %s31, 1
      %p384 = por %p382, %p383
      %p386 = scmp.ne.s32.totalorder %s369, %s385
      %p387 = scmp.eq.s32.totalorder %s31, 0
      %p388 = por %p386, %p387
      %s389 = ssub.s32 %s25, %s32
      %p390 = scmp.eq.s32.totalorder %s389, 0
      %s392 = sadd.s32 %s391, 1
      %s393 = scalar_select %p390, %s391, %s392
      %p396 = pneg %p390
      %p397 = scmp.eq.s32.totalorder %s25, 1
      %p398 = por %p396, %p397
      %p399 = scmp.ne.s32.totalorder %s391, %s394
      %p400 = scmp.eq.s32.totalorder %s25, 0
      %p401 = por %p399, %p400
      %p402 = scmp.ne.s32.totalorder %s391, %s394
      %p403 = scmp.eq.s32.totalorder %s30, 1
      %p404 = por %p402, %p403
      %p405 = scmp.ne.s32.totalorder %s394, %s395
      %p406 = scmp.eq.s32.totalorder %s30, 0
      %p407 = por %p405, %p406
      %p408 = scmp.ne.s32.totalorder %s394, %s395
      %p409 = scmp.eq.s32.totalorder %s31, 1
      %p410 = por %p408, %p409
      %p412 = scmp.ne.s32.totalorder %s395, %s411
      %p413 = scmp.eq.s32.totalorder %s31, 0
      %p414 = por %p412, %p413
      %p415 = scmp.le.s32.totalorder 1, %s25
      %p416 = scmp.lt.s32.totalorder %s25, 3
      %p417 = pnand %p415, %p416
      %p418 = pneg %p417
      // Predicated region
      $region9: #{tpu_custom_call.1} parent=5 // pred_check
        _
      $region10: #{tpu_custom_call.1} parent=5 // pred_check_branch
        %420 = sbr.rel (%p417) target = $region12
      $region11: #{tpu_custom_call.1} parent=5 // pred_region
        %s421 = ssub.s32 %s25, 1
        // Predicated region
        $region13: #{tpu_custom_call.1} parent=11 // pred_check
          %p422 = pneg %p124
        $region14: #{tpu_custom_call.1} parent=11 // pred_check_branch
          %424 = sbr.rel (%p422) target = $region16
        $region15: #{tpu_custom_call.1} parent=11 // pred_region
          _
        $region16: #{tpu_custom_call.1} parent=11 // pred_fallthru
          _
        // Predicated region
        $region17: #{tpu_custom_call.1} parent=11 // pred_check
          %p425 = pneg %p145
        $region18: #{tpu_custom_call.1} parent=11 // pred_check_branch
          %427 = sbr.rel (%p425) target = $region20
        $region19: #{tpu_custom_call.1} parent=11 // pred_region
          %s429 = ssub.s32 64, 64
          %430 = vsyncadd [#allocation3], %s429
          %s432 = sshll.u32 [#allocation2], 4
          %s433 = int_to_ptr.vmem [resolvable:$true] %s432
          %435 = dma.hbm_to_vmem [thread:$0]  %s4, 64, %s433, [#allocation3]
        $region20: #{tpu_custom_call.1} parent=11 // pred_fallthru
          _
        // Predicated region
        $region21: #{tpu_custom_call.1} parent=11 // pred_check
          %p436 = pneg %p166
        $region22: #{tpu_custom_call.1} parent=11 // pred_check_branch
          %438 = sbr.rel (%p436) target = $region24
        $region23: #{tpu_custom_call.1} parent=11 // pred_region
          %s440 = ssub.s32 192, 192
          %441 = vsyncadd [#allocation5], %s440
          %s442 = sshll.u32 [#allocation4], 4
          %s443 = int_to_ptr.vmem [resolvable:$true] %s442
          %448 = dma.hbm_to_vmem [thread:$0]  %s5, 192, %s443, [#allocation5], 64, 64, 4
        $region24: #{tpu_custom_call.1} parent=11 // pred_fallthru
          _
        // Predicated region
        $region25: #{tpu_custom_call.1} parent=11 // pred_check
          %p449 = pneg %p187
        $region26: #{tpu_custom_call.1} parent=11 // pred_check_branch
          %451 = sbr.rel (%p449) target = $region28
        $region27: #{tpu_custom_call.1} parent=11 // pred_region
          _
        $region28: #{tpu_custom_call.1} parent=11 // pred_fallthru
          _
        // Predicated region
        $region29: #{tpu_custom_call.1} parent=11 // pred_check
          %p452 = pneg %p208
        $region30: #{tpu_custom_call.1} parent=11 // pred_check_branch
          %454 = sbr.rel (%p452) target = $region32
        $region31: #{tpu_custom_call.1} parent=11 // pred_region
          _
        $region32: #{tpu_custom_call.1} parent=11 // pred_fallthru
          _
        // Predicated region
        $region33: #{tpu_custom_call.1} parent=11 // pred_check
          %p455 = pneg %p229
        $region34: #{tpu_custom_call.1} parent=11 // pred_check_branch
          %457 = sbr.rel (%p455) target = $region36
        $region35: #{tpu_custom_call.1} parent=11 // pred_region
          _
        $region36: #{tpu_custom_call.1} parent=11 // pred_fallthru
          _
        // Predicated region
        $region37: #{tpu_custom_call.1} parent=11 // pred_check
          %p458 = pneg %p250
        $region38: #{tpu_custom_call.1} parent=11 // pred_check_branch
          %460 = sbr.rel (%p458) target = $region40
        $region39: #{tpu_custom_call.1} parent=11 // pred_region
          _
        $region40: #{tpu_custom_call.1} parent=11 // pred_fallthru
          _
        // Predicated region
        $region41: #{tpu_custom_call.1} parent=11 // pred_check
          %p461 = pneg %p271
        $region42: #{tpu_custom_call.1} parent=11 // pred_check_branch
          %463 = sbr.rel (%p461) target = $region44
        $region43: #{tpu_custom_call.1} parent=11 // pred_region
          _
        $region44: #{tpu_custom_call.1} parent=11 // pred_fallthru
          _
        // Predicated region
        $region45: #{tpu_custom_call.1} parent=11 // pred_check
          %p464 = pneg %p292
        $region46: #{tpu_custom_call.1} parent=11 // pred_check_branch
          %466 = sbr.rel (%p464) target = $region48
        $region47: #{tpu_custom_call.1} parent=11 // pred_region
          _
        $region48: #{tpu_custom_call.1} parent=11 // pred_fallthru
          _
        // Predicated region
        $region49: #{tpu_custom_call.1} parent=11 // pred_check
          %p467 = pneg %p313
        $region50: #{tpu_custom_call.1} parent=11 // pred_check_branch
          %469 = sbr.rel (%p467) target = $region52
        $region51: #{tpu_custom_call.1} parent=11 // pred_region
          %s471 = ssub.s32 9216, 9216
          %472 = vsyncadd [#allocation5], %s471
          %s473 = sshll.u32 [#allocation6], 4
          %s474 = int_to_ptr.vmem [resolvable:$true] %s473
          %479 = dma.hbm_to_vmem [thread:$0]  %s12, 9216, %s474, [#allocation5], 64, 64, 4
        $region52: #{tpu_custom_call.1} parent=11 // pred_fallthru
          _
        // Predicated region
        $region53: #{tpu_custom_call.1} parent=11 // pred_check
          %p480 = pneg %p334
        $region54: #{tpu_custom_call.1} parent=11 // pred_check_branch
          %482 = sbr.rel (%p480) target = $region56
        $region55: #{tpu_custom_call.1} parent=11 // pred_region
          _
        $region56: #{tpu_custom_call.1} parent=11 // pred_fallthru
          _
        // Predicated region
        $region57: #{tpu_custom_call.1} parent=11 // pred_check
          %p483 = pneg %p355
        $region58: #{tpu_custom_call.1} parent=11 // pred_check_branch
          %485 = sbr.rel (%p483) target = $region60
        $region59: #{tpu_custom_call.1} parent=11 // pred_region
          _
        $region60: #{tpu_custom_call.1} parent=11 // pred_fallthru
          _
      $region12: #{tpu_custom_call.1} parent=5 // pred_fallthru
        _
      %p486 = scmp.lt.s32.totalorder %s25, 2
      // Predicated region
      $region61: #{tpu_custom_call.1} parent=5 // pred_check
        %p487 = pneg %p486
      $region62: #{tpu_custom_call.1} parent=5 // pred_check_branch
        %489 = sbr.rel (%p487) target = $region64
      $region63: #{tpu_custom_call.1} parent=5 // pred_region
        // Predicated region
        $region65: #{tpu_custom_call.1} parent=63 // pred_check
          %p490 = pneg %p45
        $region66: #{tpu_custom_call.1} parent=63 // pred_check_branch
          %492 = sbr.rel (%p490) target = $region68
        $region67: #{tpu_custom_call.1} parent=63 // pred_region
          %p493 = scmp.lt.s32.totalorder %s25, 1
          %s494 = scalar_select %p493, %s25, 1
          %s495 = smul.addr %s494, 8
          %s496 = scalar_lea.vmem %s0, %s495
        $region68: #{tpu_custom_call.1} parent=63 // pred_fallthru
          _
        // Predicated region
        $region69: #{tpu_custom_call.1} parent=63 // pred_check
          %p497 = pneg %p71
        $region70: #{tpu_custom_call.1} parent=63 // pred_check_branch
          %499 = sbr.rel (%p497) target = $region72
        $region71: #{tpu_custom_call.1} parent=63 // pred_region
          %p500 = scmp.lt.s32.totalorder %s25, 1
          %s501 = scalar_select %p500, %s25, 1
          %s502 = smul.addr %s501, 4
          %s503 = smul.addr %s502, 8
          %s504 = scalar_lea.vmem %s1, %s503
        $region72: #{tpu_custom_call.1} parent=63 // pred_fallthru
          _
        // Predicated region
        $region73: #{tpu_custom_call.1} parent=63 // pred_check
          %p505 = pneg %p97
        $region74: #{tpu_custom_call.1} parent=63 // pred_check_branch
          %507 = sbr.rel (%p505) target = $region76
        $region75: #{tpu_custom_call.1} parent=63 // pred_region
          %p508 = scmp.lt.s32.totalorder %s25, 1
          %s509 = scalar_select %p508, %s25, 1
          %s510 = smul.addr %s509, 2
          %s511 = smul.addr %s510, 8
          %s512 = scalar_lea.vmem %s2, %s511
        $region76: #{tpu_custom_call.1} parent=63 // pred_fallthru
          _
      $region64: #{tpu_custom_call.1} parent=5 // pred_fallthru
        _
      %p513 = scmp.le.s32.totalorder 1, %s25
      %p514 = scmp.lt.s32.totalorder %s25, 3
      %p515 = pnand %p513, %p514
      %p516 = pneg %p515
      // Predicated region
      $region77: #{tpu_custom_call.1} parent=5 // pred_check
        _
      $region78: #{tpu_custom_call.1} parent=5 // pred_check_branch
        %518 = sbr.rel (%p515) target = $region80
      $region79: #{tpu_custom_call.1} parent=5 // pred_region
        %s519 = ssub.s32 %s25, 1
        // Predicated region
        $region81: #{tpu_custom_call.1} parent=79 // pred_check
          %p520 = pneg %p145
        $region82: #{tpu_custom_call.1} parent=79 // pred_check_branch
          %522 = sbr.rel (%p520) target = $region84
        $region83: #{tpu_custom_call.1} parent=79 // pred_region
          %523 = dma.done [#allocation3], 64
        $region84: #{tpu_custom_call.1} parent=79 // pred_fallthru
          _
        // Predicated region
        $region85: #{tpu_custom_call.1} parent=79 // pred_check
          %p524 = pneg %p166
        $region86: #{tpu_custom_call.1} parent=79 // pred_check_branch
          %526 = sbr.rel (%p524) target = $region88
        $region87: #{tpu_custom_call.1} parent=79 // pred_region
          %527 = dma.done [#allocation5], 192
        $region88: #{tpu_custom_call.1} parent=79 // pred_fallthru
          _
        // Predicated region
        $region89: #{tpu_custom_call.1} parent=79 // pred_check
          %p528 = pneg %p313
        $region90: #{tpu_custom_call.1} parent=79 // pred_check_branch
          %530 = sbr.rel (%p528) target = $region92
        $region91: #{tpu_custom_call.1} parent=79 // pred_region
          %531 = dma.done [#allocation5], 9216
        $region92: #{tpu_custom_call.1} parent=79 // pred_fallthru
          _
        %p532 = scmp.lt.s32.totalorder %s30, 1
        %s533 = scalar_select %p532, %s30, 1
        %s534 = smul.addr %s533, 8
        %s535 = scalar_lea.vmem %s0, %s534
        %p536 = pneg %p51
        %p537 = pneg %p48
        %p538 = scmp.lt.s32.totalorder %s30, 1
        %s539 = scalar_select %p538, %s30, 1
        %s540 = smul.addr %s539, 4
        %s541 = smul.addr %s540, 8
        %s542 = scalar_lea.vmem %s1, %s541
        %p543 = pneg %p77
        %p544 = pneg %p74
        %p545 = scmp.lt.s32.totalorder %s30, 1
        %s546 = scalar_select %p545, %s30, 1
        %s547 = smul.addr %s546, 2
        %s548 = smul.addr %s547, 8
        %s549 = scalar_lea.vmem %s2, %s548
        %p550 = pneg %p103
        %p551 = pneg %p100
        %p552 = pneg %p124
        %p553 = pneg %p121
        %p554 = pneg %p145
        %p555 = pneg %p142
        %p556 = pneg %p166
        %p557 = pneg %p163
        %p558 = pneg %p187
        %p559 = pneg %p184
        %p560 = pneg %p208
        %p561 = pneg %p205
        %p562 = pneg %p229
        %p563 = pneg %p226
        %p564 = pneg %p250
        %p565 = pneg %p247
        %p566 = pneg %p271
        %p567 = pneg %p268
        %p568 = pneg %p292
        %p569 = pneg %p289
        %p570 = pneg %p313
        %p571 = pneg %p310
        %p572 = pneg %p334
        %p573 = pneg %p331
        %p574 = pneg %p355
        %p575 = pneg %p352
        %p576 = pneg %p381
        %p577 = pneg %p378
        %p578 = scmp.lt.s32.totalorder %s30, 1
        %s579 = scalar_select %p578, %s30, 1
        %s580 = smul.addr %s579, 8
        %s581 = scalar_lea.vmem %s15, %s580
        %p582 = pneg %p407
        %p583 = pneg %p404
        %p584 = scmp.lt.s32.totalorder %s30, 1
        %s585 = scalar_select %p584, %s30, 1
        %s586 = scalar_lea.vmem %s16, %s585
        %p587 = scmp.lt.s32.totalorder %s30, 1
        %s588 = scalar_select %p587, %s30, 1
        %s589 = smul.addr %s588, 8
        %s590 = scalar_lea.vmem %s0, %s589
        %p591 = scmp.lt.s32.totalorder %s30, 1
        %s592 = scalar_select %p591, %s30, 1
        %s593 = smul.addr %s592, 4
        %s594 = smul.addr %s593, 8
        %s595 = scalar_lea.vmem %s1, %s594
        %p596 = scmp.lt.s32.totalorder %s30, 1
        %s597 = scalar_select %p596, %s30, 1
        %s598 = smul.addr %s597, 2
        %s599 = smul.addr %s598, 8
        %s600 = scalar_lea.vmem %s2, %s599
        %p601 = scmp.lt.s32.totalorder %s30, 1
        %s602 = scalar_select %p601, %s30, 1
        %s603 = smul.addr %s602, 8
        %s604 = scalar_lea.vmem %s15, %s603
        %p605 = scmp.lt.s32.totalorder %s30, 1
        %s606 = scalar_select %p605, %s30, 1
        %s607 = scalar_lea.vmem %s16, %s606
        %v609 = vld [vmem:[%s590] sm:$0xff]
        %v610 = vld [vmem:[%s595] sm:$0xff]
        %v611 = vld [vmem:[%s595 + $0x8] sm:$0xff]
        %v612 = vld [vmem:[%s595 + $0x10] sm:$0xff]
        %v613 = vld [vmem:[%s595 + $0x18] sm:$0xff]
        %v614 = vld [vmem:[%s600] sm:$0xff]
        %v615 = vld [vmem:[%s600 + $0x8] sm:$0xff]
        %v616 = vld [vmem:[%s3] sm:$0xf]
        %v617 = vld [vmem:[%s3 + $0x4] sm:$0xf]
        %v618 = vld [vmem:[%s3 + $0x8] sm:$0xf]
        %v619 = vld [vmem:[%s3 + $0xc] sm:$0xf]
        %v620 = vld [vmem:[#allocation2] sm:$0xf]
        loop: start=0, step=1, limit=3
        $region93: #{tpu_custom_call.1} parent=79 // loop_pre_header
          _
        $region94: #{tpu_custom_call.1} parent=79 // loop_header
          %s622 = sphi 0, %s626
          %p623 = scmp.ge.s32.totalorder %s622, 3
          %v627 = vphi %v609, %v2787
          %v628 = vphi %v609, %v2780
          %v629 = vphi 0.0, %v2788
          %v630 = vphi 0.0, %v2812
        $region95: #{tpu_custom_call.1} parent=79 // loop_header_branch
          %625 = sbr.rel (%p623) target = $region99
        $region96: #{tpu_custom_call.1} parent=79 // loop_body
          %v631 = vand.u32 2147483647, %v628
          %vm632 = vcmp.le.f32.partialorder %v631, 0.7853982
          %vm633 = vcmp.lt.s32.totalorder %v628, 0
          %v634 = vand.u32 %v628, 2139095040
          %v635 = vshrl.u32 %v634, 23
          %v636 = vsub.s32 %v635, 127
          %v637 = vand.u32 2147483647, %v628
          %v638 = vand.u32 %v637, 8388607
          %v639 = vor.u32 %v638, 8388608
          %v640 = vsub.s32 0, %v639
          %v641 = vadd.s32 %v636, 1
          %vm642 = vcmp.gt.s32.totalorder %v641, 0
          %v643 = vsel %vm642, %v641, 0
          %v644 = vshrl.u32 %v643, 5
          %v645 = vand.u32 %v643, 31
          %v646 = vsub.s32 32, %v645
          %v647 = vshrl.u32 683565275, %v646
          %v648 = vshll.u32 683565275, %v645
          %v649 = vshrl.u32 2475754826, %v646
          %v650 = vor.u32 %v648, %v649
          %v651 = vshll.u32 2475754826, %v645
          %v652 = vshrl.u32 2131351028, %v646
          %v653 = vor.u32 %v651, %v652
          %v654 = vshll.u32 2131351028, %v645
          %v655 = vshrl.u32 2102212464, %v646
          %v656 = vor.u32 %v654, %v655
          %v657 = vshll.u32 2102212464, %v645
          %v658 = vshrl.u32 920167782, %v646
          %v659 = vor.u32 %v657, %v658
          %v660 = vshll.u32 920167782, %v645
          %v661 = vshrl.u32 1326507024, %v646
          %v662 = vor.u32 %v660, %v661
          %vm663 = vcmp.lt.s32.totalorder %v644, 1
          %vm664 = vcmp.lt.s32.totalorder %v644, 2
          %vm665 = vcmp.lt.s32.totalorder %v644, 3
          %vm666 = vcmp.lt.s32.totalorder %v644, 4
          %v667 = vsel %vm663, %v647, %v650
          %v668 = vsel %vm666, %v656, 2102212464
          %v669 = vsel %vm665, %v653, %v668
          %v670 = vsel %vm664, %v667, %v669
          %v671 = vsel %vm663, %v650, %v653
          %v672 = vsel %vm666, %v659, 920167782
          %v673 = vsel %vm665, %v656, %v672
          %v674 = vsel %vm664, %v671, %v673
          %v675 = vsel %vm663, %v653, %v656
          %v676 = vsel %vm666, %v662, 1326507024
          %v677 = vsel %vm665, %v659, %v676
          %v678 = vsel %vm664, %v675, %v677
          %v679 = vshll.u32 %v639, 8
          %v680 = vmul.u32.u64.compose %v679, %v678
          %v681 = vextract.low.u32 %v680
          %v682 = vextract.high.u32 %v680
          %v683 = vmul.u32.u64.compose %v679, %v674
          %v684 = vextract.low.u32 %v683
          %v685 = vextract.high.u32 %v683
          %v686 = vmul.u32 %v679, %v670
          %v687 = vadd.s32 %v682, %v684
          %vm688 = vc.u32 %v682, %v684
          %v689 = vadd.s32 %v685, 1
          %v690 = vsel %vm688, %v689, %v685
          %v691 = vadd.s32 %v686, %v690
          %v692 = vadd.s32 %v691, 536870912
          %v693 = vshrl.u32 %v692, 30
          %v694 = vshll.u32 %v693, 30
          %v695 = vsub.s32 %v691, %v694
          %vm696 = vcmp.lt.s32.totalorder %v695, 0
          %v697 = vsub.s32 0, %v695
          %v698 = vsel %vm696, %v697, %v695
          %v699 = vclz %v698
          %v700 = vsub.s32 %v699, 2
          %vm701 = vcmp.gt.s32.totalorder 0, %v700
          %v702 = vsel %vm701, 0, %v700
          %v703 = vsub.s32 32, %v702
          %v704 = vshll.u32 %v695, %v702
          %v705 = vshrl.u32 %v687, %v703
          %v706 = vor.u32 %v704, %v705
          %v707 = vsub.s32 4294967266, %v702
          %v708 = vadd.s32 %v707, 127
          %v709 = vshll.u32 %v708, 23
          %v710 = vor.u32 4788187, %v709
          %v711 = vand.u32 2147483647, %v710
          %v713 = vcvt.s32.f32 %v706
          %v714 = vmul.f32 %v713, %v711
          %v715 = vxor.u32 %v714, 2147483648
          %v716 = vsel %vm633, %v715, %v714
          %v717 = vsub.s32 4, %v693
          %v718 = vsel %vm633, %v717, %v693
          %v719 = vsel %vm632, %v628, %v716
          %v720 = vsel %vm632, 0, %v718
          %v721 = vcosq.f32.pop %v719
          %v722 = vsinq.f32.pop %v719
          %vm723 = vweird.f32 %v628
          %v724 = vand.u32 %v720, 3
          %vm725 = vcmp.lt.s32.totalorder %v724, 2
          %vm726 = vcmp.eq.s32.totalorder %v724, 0
          %v727 = vxor.u32 %v722, 2147483648
          %v728 = vsel %vm726, %v721, %v727
          %vm729 = vcmp.eq.s32.totalorder %v724, 2
          %v730 = vxor.u32 %v721, 2147483648
          %v731 = vsel %vm729, %v730, %v722
          %v732 = vsel %vm725, %v728, %v731
          %v733 = vsel %vm723, nan, %v732
          %735 = vrot.lane.b32.xlu0 %v733, 127
          %v736 = vpop.permute.xlu0 %735
          %v738 = vmul.f32 %v627, %v736
          %v739 = vand.u32 2147483647, %v628
          %vm740 = vcmp.le.f32.partialorder %v739, 0.7853982
          %vm741 = vcmp.lt.s32.totalorder %v628, 0
          %v742 = vand.u32 %v628, 2139095040
          %v743 = vshrl.u32 %v742, 23
          %v744 = vsub.s32 %v743, 127
          %v745 = vand.u32 2147483647, %v628
          %v746 = vand.u32 %v745, 8388607
          %v747 = vor.u32 %v746, 8388608
          %v748 = vsub.s32 0, %v747
          %v749 = vadd.s32 %v744, 1
          %vm750 = vcmp.gt.s32.totalorder %v749, 0
          %v751 = vsel %vm750, %v749, 0
          %v752 = vshrl.u32 %v751, 5
          %v753 = vand.u32 %v751, 31
          %v754 = vsub.s32 32, %v753
          %v755 = vshrl.u32 683565275, %v754
          %v756 = vshll.u32 683565275, %v753
          %v757 = vshrl.u32 2475754826, %v754
          %v758 = vor.u32 %v756, %v757
          %v759 = vshll.u32 2475754826, %v753
          %v760 = vshrl.u32 2131351028, %v754
          %v761 = vor.u32 %v759, %v760
          %v762 = vshll.u32 2131351028, %v753
          %v763 = vshrl.u32 2102212464, %v754
          %v764 = vor.u32 %v762, %v763
          %v765 = vshll.u32 2102212464, %v753
          %v766 = vshrl.u32 920167782, %v754
          %v767 = vor.u32 %v765, %v766
          %v768 = vshll.u32 920167782, %v753
          %v769 = vshrl.u32 1326507024, %v754
          %v770 = vor.u32 %v768, %v769
          %vm771 = vcmp.lt.s32.totalorder %v752, 1
          %vm772 = vcmp.lt.s32.totalorder %v752, 2
          %vm773 = vcmp.lt.s32.totalorder %v752, 3
          %vm774 = vcmp.lt.s32.totalorder %v752, 4
          %v775 = vsel %vm771, %v755, %v758
          %v776 = vsel %vm774, %v764, 2102212464
          %v777 = vsel %vm773, %v761, %v776
          %v778 = vsel %vm772, %v775, %v777
          %v779 = vsel %vm771, %v758, %v761
          %v780 = vsel %vm774, %v767, 920167782
          %v781 = vsel %vm773, %v764, %v780
          %v782 = vsel %vm772, %v779, %v781
          %v783 = vsel %vm771, %v761, %v764
          %v784 = vsel %vm774, %v770, 1326507024
          %v785 = vsel %vm773, %v767, %v784
          %v786 = vsel %vm772, %v783, %v785
          %v787 = vshll.u32 %v747, 8
          %v788 = vmul.u32.u64.compose %v787, %v786
          %v789 = vextract.low.u32 %v788
          %v790 = vextract.high.u32 %v788
          %v791 = vmul.u32.u64.compose %v787, %v782
          %v792 = vextract.low.u32 %v791
          %v793 = vextract.high.u32 %v791
          %v794 = vmul.u32 %v787, %v778
          %v795 = vadd.s32 %v790, %v792
          %vm796 = vc.u32 %v790, %v792
          %v797 = vadd.s32 %v793, 1
          %v798 = vsel %vm796, %v797, %v793
          %v799 = vadd.s32 %v794, %v798
          %v800 = vadd.s32 %v799, 536870912
          %v801 = vshrl.u32 %v800, 30
          %v802 = vshll.u32 %v801, 30
          %v803 = vsub.s32 %v799, %v802
          %vm804 = vcmp.lt.s32.totalorder %v803, 0
          %v805 = vsub.s32 0, %v803
          %v806 = vsel %vm804, %v805, %v803
          %v807 = vclz %v806
          %v808 = vsub.s32 %v807, 2
          %vm809 = vcmp.gt.s32.totalorder 0, %v808
          %v810 = vsel %vm809, 0, %v808
          %v811 = vsub.s32 32, %v810
          %v812 = vshll.u32 %v803, %v810
          %v813 = vshrl.u32 %v795, %v811
          %v814 = vor.u32 %v812, %v813
          %v815 = vsub.s32 4294967266, %v810
          %v816 = vadd.s32 %v815, 127
          %v817 = vshll.u32 %v816, 23
          %v818 = vor.u32 4788187, %v817
          %v819 = vand.u32 2147483647, %v818
          %v821 = vcvt.s32.f32 %v814
          %v822 = vmul.f32 %v821, %v819
          %v823 = vxor.u32 %v822, 2147483648
          %v824 = vsel %vm741, %v823, %v822
          %v825 = vsub.s32 4, %v801
          %v826 = vsel %vm741, %v825, %v801
          %v827 = vsel %vm740, %v628, %v824
          %v828 = vsel %vm740, 0, %v826
          %v829 = vcosq.f32.pop %v827
          %v830 = vsinq.f32.pop %v827
          %vm831 = vweird.f32 %v628
          %v832 = vadd.s32 %v828, 3
          %v833 = vand.u32 %v832, 3
          %vm834 = vcmp.lt.s32.totalorder %v833, 2
          %vm835 = vcmp.eq.s32.totalorder %v833, 0
          %v836 = vxor.u32 %v830, 2147483648
          %v837 = vsel %vm835, %v829, %v836
          %vm838 = vcmp.eq.s32.totalorder %v833, 2
          %v839 = vxor.u32 %v829, 2147483648
          %v840 = vsel %vm838, %v839, %v830
          %v841 = vsel %vm834, %v837, %v840
          %v842 = vsel %vm831, nan, %v841
          %844 = vrot.lane.b32.xlu0 %v842, 127
          %v845 = vpop.permute.xlu0 %844
          %v847 = vmul.f32 %v627, %v845
          %849 = vrot.lane.b32.xlu0 %v738, 126
          %v850 = vpop.permute.xlu0 %849
          %853 = vrot.lane.b32.xlu0 %v847, 127
          %v854 = vpop.permute.xlu0 %853
          %vm856 = vcmask 7168
          %v857 = vsel %vm856, %v850, %v854
          %vm858 = vcmask 64512
          %v860 = vsel %vm858, %v614, 0
          %v863 = vsel %vm858, %v615, 0
          %865 = vmatprep.subr.mxu0 0.0
          %866 = vmatpush1.msra.mxu0 0.0
          %867 = vmatprep.subr.mxu0 0.0
          %868 = vmatpush1.msra.mxu0 0.0
          %869 = vmatprep.subr.mxu0 0.0
          %870 = vmatpush1.msra.mxu0 0.0
          %871 = vmatprep.subr.mxu0 0.0
          %872 = vmatpush1.msra.mxu0 0.0
          %873 = vmatprep.subr.mxu0 0.0
          %874 = vmatpush1.msra.mxu0 0.0
          %875 = vmatprep.subr.mxu0 0.0
          %876 = vmatpush1.msra.mxu0 0.0
          %877 = vmatprep.subr.mxu0 0.0
          %878 = vmatpush1.msra.mxu0 0.0
          %879 = vmatprep.subr.mxu0 0.0
          %880 = vmatpush1.msra.mxu0 0.0
          %881 = vmatprep.subr.mxu0 0.0
          %882 = vmatpush1.msra.mxu0 0.0
          %883 = vmatprep.subr.mxu0 0.0
          %884 = vmatpush1.msra.mxu0 0.0
          %885 = vmatprep.subr.mxu0 0.0
          %886 = vmatpush1.msra.mxu0 0.0
          %887 = vmatprep.subr.mxu0 0.0
          %888 = vmatpush1.msra.mxu0 0.0
          %889 = vmatprep.subr.mxu0 0.0
          %890 = vmatpush1.msra.mxu0 0.0
          %891 = vmatprep.subr.mxu0 0.0
          %892 = vmatpush1.msra.mxu0 0.0
          %893 = vmatprep.subr.mxu0 0.0
          %894 = vmatpush1.msra.mxu0 0.0
          %895 = vmatprep.subr.mxu0 0.0
          %896 = vmatpush1.msra.mxu0 %v857
          %897 = vmatprep.subr.mxu0 0.0
          %898 = vmatpush2.msra.mxu0 0.0
          %899 = vmatprep.subr.mxu0 0.0
          %900 = vmatpush2.msra.mxu0 0.0
          %901 = vmatprep.subr.mxu0 0.0
          %902 = vmatpush2.msra.mxu0 0.0
          %903 = vmatprep.subr.mxu0 0.0
          %904 = vmatpush2.msra.mxu0 0.0
          %905 = vmatprep.subr.mxu0 0.0
          %906 = vmatpush2.msra.mxu0 0.0
          %907 = vmatprep.subr.mxu0 0.0
          %908 = vmatpush2.msra.mxu0 0.0
          %909 = vmatprep.subr.mxu0 0.0
          %910 = vmatpush2.msra.mxu0 0.0
          %911 = vmatprep.subr.mxu0 0.0
          %912 = vmatpush2.msra.mxu0 0.0
          %913 = vmatprep.subr.mxu0 0.0
          %914 = vmatpush2.msra.mxu0 0.0
          %915 = vmatprep.subr.mxu0 0.0
          %916 = vmatpush2.msra.mxu0 0.0
          %917 = vmatprep.subr.mxu0 0.0
          %918 = vmatpush2.msra.mxu0 0.0
          %919 = vmatprep.subr.mxu0 0.0
          %920 = vmatpush2.msra.mxu0 0.0
          %921 = vmatprep.subr.mxu0 0.0
          %922 = vmatpush2.msra.mxu0 0.0
          %923 = vmatprep.subr.mxu0 0.0
          %924 = vmatpush2.msra.mxu0 0.0
          %925 = vmatprep.subr.mxu0 0.0
          %926 = vmatpush2.msra.mxu0 0.0
          %927 = vmatprep.subr.mxu0 0.0
          %928 = vmatpush2.msra.mxu0 0.0
          %929 = vmatprep.mubr.f32.mxu0 0.0
          %930 = vmatmul.mubr.f32.gmra.mxu0 %v860
          %v931 = vpop.f32.mrf.mxu0
          %v932 = vadd.f32 0.0, %v931
          %v933 = vpop.f32.mrf.mxu0
          %934 = vmatprep.mubr.f32.mxu0 0.0
          %935 = vmatmul.mubr.f32.gmra.mxu0 %v863
          %v936 = vpop.f32.mrf.mxu0
          %v937 = vadd.f32 0.0, %v936
          %v938 = vpop.f32.mrf.mxu0
          %939 = vdwg.mxu0
          %941 = vrot.lane.b32.xlu0 %v937, 127
          %v942 = vpop.permute.xlu0 %941
          %v944 = vsub.f32 %v932, %v942
          %945 = vrot.lane.b32.xlu0 %v937, 1
          %v946 = vpop.permute.xlu0 %945
          %v948 = vadd.f32 %v932, %v946
          %950 = vrot.lane.b32.xlu0 %v944, 2
          %v951 = vpop.permute.xlu0 %950
          %v953 = vmul.f32 %v738, %v951
          %955 = vrot.lane.b32.xlu0 %v948, 1
          %v956 = vpop.permute.xlu0 %955
          %v958 = vmul.f32 %v847, %v956
          %v959 = vadd.f32 %v953, %v958
          %v960 = vmul.f32 %v847, %v951
          %v961 = vmul.f32 %v738, %v956
          %v962 = vsub.f32 %v960, %v961
          %vm963 = vcmp.gt.f32.partialorder %v609, 0.5
          %965 = vrot.lane.b32.xlu0 %v959, 126
          %v966 = vpop.permute.xlu0 %965
          %v968 = vsub.f32 %v609, %v966
          %970 = vrot.lane.b32.xlu0 %v968, 5
          %v971 = vpop.permute.xlu0 %970
          %v973 = vsel %vm963, 0.0, %v971
          %975 = vrot.lane.b32.xlu0 %v962, 127
          %v976 = vpop.permute.xlu0 %975
          %v978 = vsub.f32 %v609, %v976
          %980 = vrot.lane.b32.xlu0 %v978, 5
          %v981 = vpop.permute.xlu0 %980
          %v983 = vsel %vm963, 0.0, %v981
          %v984 = vpack.c.bf16 %v629, %v629
          %v989 = vunpack.c.l.b16 %v616
          %v990 = vunpack.c.l.b16 %v617
          %v991 = vunpack.c.l.b16 %v618
          %v992 = vunpack.c.l.b16 %v619
          %v993 = vpack.c.b16 %v990, %v989
          %v994 = vpack.c.b16 %v992, %v991
          %v996 = vsel %vm858, %v993, 0
          %v999 = vsel %vm858, %v994, 0
          %vm1001 = vcmask 1043456
          %v1003 = vsel %vm1001, %v984, 0
          %1005 = vmatprep.subr.bf16.mxu0 0
          %1006 = vmatpush1.bf16.msra.mxu0 0
          %1007 = vmatprep.subr.bf16.mxu0 0
          %1008 = vmatpush1.bf16.msra.mxu0 0
          %1009 = vmatprep.subr.bf16.mxu0 0
          %1010 = vmatpush1.bf16.msra.mxu0 0
          %1011 = vmatprep.subr.bf16.mxu0 0
          %1012 = vmatpush1.bf16.msra.mxu0 0
          %1013 = vmatprep.subr.bf16.mxu0 0
          %1014 = vmatpush1.bf16.msra.mxu0 0
          %1015 = vmatprep.subr.bf16.mxu0 0
          %1016 = vmatpush1.bf16.msra.mxu0 0
          %1017 = vmatprep.subr.bf16.mxu0 0
          %1018 = vmatpush1.bf16.msra.mxu0 0
          %1019 = vmatprep.subr.bf16.mxu0 0
          %1020 = vmatpush1.bf16.msra.mxu0 %v1003
          %1021 = vmatprep.subr.bf16.mxu0 0
          %1022 = vmatpush2.bf16.msra.mxu0 0
          %1023 = vmatprep.subr.bf16.mxu0 0
          %1024 = vmatpush2.bf16.msra.mxu0 0
          %1025 = vmatprep.subr.bf16.mxu0 0
          %1026 = vmatpush2.bf16.msra.mxu0 0
          %1027 = vmatprep.subr.bf16.mxu0 0
          %1028 = vmatpush2.bf16.msra.mxu0 0
          %1029 = vmatprep.subr.bf16.mxu0 0
          %1030 = vmatpush2.bf16.msra.mxu0 0
          %1031 = vmatprep.subr.bf16.mxu0 0
          %1032 = vmatpush2.bf16.msra.mxu0 0
          %1033 = vmatprep.subr.bf16.mxu0 0
          %1034 = vmatpush2.bf16.msra.mxu0 0
          %1035 = vmatprep.subr.bf16.mxu0 0
          %1036 = vmatpush2.bf16.msra.mxu0 0
          %1037 = vmatprep.mubr.bf16.mxu0 0
          %1038 = vmatmul.mubr.bf16.gmra.mxu0 %v996
          %v1039 = vpop.f32.mrf.mxu0
          %v1040 = vadd.f32 0.0, %v1039
          %v1041 = vpop.f32.mrf.mxu0
          %v1042 = vpop.f32.mrf.mxu0
          %v1043 = vadd.f32 0.0, %v1042
          %v1044 = vpop.f32.mrf.mxu0
          %1045 = vmatprep.mubr.bf16.mxu0 0
          %1046 = vmatmul.mubr.bf16.gmra.mxu0 %v999
          %v1047 = vpop.f32.mrf.mxu0
          %v1048 = vadd.f32 0.0, %v1047
          %v1049 = vpop.f32.mrf.mxu0
          %v1050 = vpop.f32.mrf.mxu0
          %v1051 = vadd.f32 0.0, %v1050
          %v1052 = vpop.f32.mrf.mxu0
          %1053 = vdwg.mxu0
          %v1054 = vpack.c.bf16 %v1043, %v1040
          %v1055 = vpack.c.bf16 %v1051, %v1048
          %s1056 = smul.u32 %s622, 16
          %s1057 = scalar_lea.vmem %s8, %s1056
          %v1058 = vld [vmem:[%s1057] sm:$0xff]
          %v1059 = vld [vmem:[%s1057 + $0x8] sm:$0xff]
          %1061 = vset.pattern.permute.xlu0 0
          %1062 = vperm.xlu0 %1061, %v610
          %v1063 = vpop.permute.xlu0 %1062
          %1066 = vset.pattern.permute.xlu0 0
          %1067 = vperm.xlu0 %1066, %v611
          %v1068 = vpop.permute.xlu0 %1067
          %1071 = vset.pattern.permute.xlu0 0
          %1072 = vperm.xlu0 %1071, %v612
          %v1073 = vpop.permute.xlu0 %1072
          %1076 = vset.pattern.permute.xlu0 0
          %1077 = vperm.xlu0 %1076, %v613
          %v1078 = vpop.permute.xlu0 %1077
          %v1080 = vlaneseq
          %v1081 = vshrl.u32 %v1080, 7
          %v1082 = vsub.s32 0, %v1081
          %v1083 = vrot.slane %v1058, %v1082
          %v1084 = vmul.f32 %v1063, %v1083
          %v1085 = vmul.f32 %v1068, %v1083
          %v1086 = vmul.f32 %v1073, %v1083
          %v1087 = vmul.f32 %v1078, %v1083
          %1088 = vset.pattern.permute.xlu0 1
          %1089 = vperm.xlu0 %1088, %v610
          %v1090 = vpop.permute.xlu0 %1089
          %1092 = vset.pattern.permute.xlu0 1
          %1093 = vperm.xlu0 %1092, %v611
          %v1094 = vpop.permute.xlu0 %1093
          %1096 = vset.pattern.permute.xlu0 1
          %1097 = vperm.xlu0 %1096, %v612
          %v1098 = vpop.permute.xlu0 %1097
          %1100 = vset.pattern.permute.xlu0 1
          %1101 = vperm.xlu0 %1100, %v613
          %v1102 = vpop.permute.xlu0 %1101
          %v1104 = vlaneseq
          %v1105 = vshrl.u32 %v1104, 7
          %v1106 = vsub.s32 1, %v1105
          %v1107 = vrot.slane %v1058, %v1106
          %v1108 = vmul.f32 %v1090, %v1107
          %v1109 = vmul.f32 %v1094, %v1107
          %v1110 = vmul.f32 %v1098, %v1107
          %v1111 = vmul.f32 %v1102, %v1107
          %v1112 = vadd.f32 %v1084, %v1108
          %v1113 = vadd.f32 %v1085, %v1109
          %v1114 = vadd.f32 %v1086, %v1110
          %v1115 = vadd.f32 %v1087, %v1111
          %1116 = vset.pattern.permute.xlu0 2
          %1117 = vperm.xlu0 %1116, %v610
          %v1118 = vpop.permute.xlu0 %1117
          %1120 = vset.pattern.permute.xlu0 2
          %1121 = vperm.xlu0 %1120, %v611
          %v1122 = vpop.permute.xlu0 %1121
          %1124 = vset.pattern.permute.xlu0 2
          %1125 = vperm.xlu0 %1124, %v612
          %v1126 = vpop.permute.xlu0 %1125
          %1128 = vset.pattern.permute.xlu0 2
          %1129 = vperm.xlu0 %1128, %v613
          %v1130 = vpop.permute.xlu0 %1129
          %v1132 = vlaneseq
          %v1133 = vshrl.u32 %v1132, 7
          %v1134 = vsub.s32 2, %v1133
          %v1135 = vrot.slane %v1058, %v1134
          %v1136 = vmul.f32 %v1118, %v1135
          %v1137 = vmul.f32 %v1122, %v1135
          %v1138 = vmul.f32 %v1126, %v1135
          %v1139 = vmul.f32 %v1130, %v1135
          %v1140 = vadd.f32 %v1112, %v1136
          %v1141 = vadd.f32 %v1113, %v1137
          %v1142 = vadd.f32 %v1114, %v1138
          %v1143 = vadd.f32 %v1115, %v1139
          %s1144 = smul.addr %s622, 4
          %s1145 = scalar_lea.vmem [#allocation4], %s1144
          %v1146 = vld [vmem:[%s1145] sm:$0xf]
          %v1148 = vsel %vm858, %v1054, 0
          %v1151 = vsel %vm858, %v1055, 0
          %v1154 = vsel %vm1001, %v1146, 0
          %1156 = vmatprep.subr.bf16.mxu0 0
          %1157 = vmatpush1.bf16.msra.mxu0 0
          %1158 = vmatprep.subr.bf16.mxu0 0
          %1159 = vmatpush1.bf16.msra.mxu0 0
          %1160 = vmatprep.subr.bf16.mxu0 0
          %1161 = vmatpush1.bf16.msra.mxu0 0
          %1162 = vmatprep.subr.bf16.mxu0 0
          %1163 = vmatpush1.bf16.msra.mxu0 0
          %1164 = vmatprep.subr.bf16.mxu0 0
          %1165 = vmatpush1.bf16.msra.mxu0 0
          %1166 = vmatprep.subr.bf16.mxu0 0
          %1167 = vmatpush1.bf16.msra.mxu0 0
          %1168 = vmatprep.subr.bf16.mxu0 0
          %1169 = vmatpush1.bf16.msra.mxu0 0
          %1170 = vmatprep.subr.bf16.mxu0 0
          %1171 = vmatpush1.bf16.msra.mxu0 %v1154
          %1172 = vmatprep.subr.bf16.mxu0 0
          %1173 = vmatpush2.bf16.msra.mxu0 0
          %1174 = vmatprep.subr.bf16.mxu0 0
          %1175 = vmatpush2.bf16.msra.mxu0 0
          %1176 = vmatprep.subr.bf16.mxu0 0
          %1177 = vmatpush2.bf16.msra.mxu0 0
          %1178 = vmatprep.subr.bf16.mxu0 0
          %1179 = vmatpush2.bf16.msra.mxu0 0
          %1180 = vmatprep.subr.bf16.mxu0 0
          %1181 = vmatpush2.bf16.msra.mxu0 0
          %1182 = vmatprep.subr.bf16.mxu0 0
          %1183 = vmatpush2.bf16.msra.mxu0 0
          %1184 = vmatprep.subr.bf16.mxu0 0
          %1185 = vmatpush2.bf16.msra.mxu0 0
          %1186 = vmatprep.subr.bf16.mxu0 0
          %1187 = vmatpush2.bf16.msra.mxu0 0
          %1188 = vmatprep.mubr.bf16.mxu0 0
          %1189 = vmatmul.mubr.bf16.gmra.mxu0 %v1148
          %v1190 = vpop.f32.mrf.mxu0
          %v1191 = vadd.f32 0.0, %v1190
          %v1192 = vpop.f32.mrf.mxu0
          %v1193 = vpop.f32.mrf.mxu0
          %v1194 = vadd.f32 0.0, %v1193
          %v1195 = vpop.f32.mrf.mxu0
          %1196 = vmatprep.mubr.bf16.mxu0 0
          %1197 = vmatmul.mubr.bf16.gmra.mxu0 %v1151
          %v1198 = vpop.f32.mrf.mxu0
          %v1199 = vadd.f32 0.0, %v1198
          %v1200 = vpop.f32.mrf.mxu0
          %v1201 = vpop.f32.mrf.mxu0
          %v1202 = vadd.f32 0.0, %v1201
          %v1203 = vpop.f32.mrf.mxu0
          %1204 = vdwg.mxu0
          %v1205 = vadd.f32 %v1140, %v1191
          %v1206 = vadd.f32 %v1141, %v1194
          %v1207 = vadd.f32 %v1142, %v1199
          %v1208 = vadd.f32 %v1143, %v1202
          %s1209 = smul.addr %s1056, 4
          %s1210 = scalar_lea.vmem %s6, %s1209
          %v1211 = vld [vmem:[%s1210] sm:$0xf]
          %v1212 = vld [vmem:[%s1210 + $0x4] sm:$0xf]
          %v1213 = vld [vmem:[%s1210 + $0x8] sm:$0xf]
          %v1214 = vld [vmem:[%s1210 + $0xc] sm:$0xf]
          %v1215 = vld [vmem:[%s1210 + $0x10] sm:$0xf]
          %v1216 = vld [vmem:[%s1210 + $0x14] sm:$0xf]
          %v1217 = vld [vmem:[%s1210 + $0x18] sm:$0xf]
          %v1218 = vld [vmem:[%s1210 + $0x1c] sm:$0xf]
          %v1219 = vld [vmem:[%s1210 + $0x20] sm:$0xf]
          %v1220 = vld [vmem:[%s1210 + $0x24] sm:$0xf]
          %v1221 = vld [vmem:[%s1210 + $0x28] sm:$0xf]
          %v1222 = vld [vmem:[%s1210 + $0x2c] sm:$0xf]
          %v1223 = vld [vmem:[%s1210 + $0x30] sm:$0xf]
          %v1224 = vld [vmem:[%s1210 + $0x34] sm:$0xf]
          %v1225 = vld [vmem:[%s1210 + $0x38] sm:$0xf]
          %v1226 = vld [vmem:[%s1210 + $0x3c] sm:$0xf]
          %v1227 = vlaneseq
          %v1228 = vshrl.u32 %v1227, 7
          %v1229 = vsub.s32 4, %v1228
          %v1230 = vrot.slane %v1058, %v1229
          %v1231 = vadd.f32 %v1205, %v1230
          %v1232 = vadd.f32 %v1206, %v1230
          %v1233 = vadd.f32 %v1207, %v1230
          %v1234 = vadd.f32 %v1208, %v1230
          %1235 = vadd.xlane.f32.xlu0 %v1231
          %v1236 = vpop.xlane.xlu0 %1235
          %1237 = vadd.xlane.f32.xlu0 %v1232
          %v1238 = vpop.xlane.xlu0 %1237
          %1239 = vadd.xlane.f32.xlu0 %v1233
          %v1240 = vpop.xlane.xlu0 %1239
          %1241 = vadd.xlane.f32.xlu0 %v1234
          %v1242 = vpop.xlane.xlu0 %1241
          %v1243 = vmul.f32 %v1236, 0.09090909
          %v1244 = vmul.f32 %v1238, 0.09090909
          %v1245 = vmul.f32 %v1240, 0.09090909
          %v1246 = vmul.f32 %v1242, 0.09090909
          %v1247 = vmul.f32 %v1231, %v1231
          %v1248 = vmul.f32 %v1232, %v1232
          %v1249 = vmul.f32 %v1233, %v1233
          %v1250 = vmul.f32 %v1234, %v1234
          %1251 = vadd.xlane.f32.xlu0 %v1247
          %v1252 = vpop.xlane.xlu0 %1251
          %1253 = vadd.xlane.f32.xlu0 %v1248
          %v1254 = vpop.xlane.xlu0 %1253
          %1255 = vadd.xlane.f32.xlu0 %v1249
          %v1256 = vpop.xlane.xlu0 %1255
          %1257 = vadd.xlane.f32.xlu0 %v1250
          %v1258 = vpop.xlane.xlu0 %1257
          %v1259 = vmul.f32 %v1252, 0.09090909
          %v1260 = vmul.f32 %v1254, 0.09090909
          %v1261 = vmul.f32 %v1256, 0.09090909
          %v1262 = vmul.f32 %v1258, 0.09090909
          %v1263 = vmul.f32 %v1243, %v1243
          %v1264 = vmul.f32 %v1244, %v1244
          %v1265 = vmul.f32 %v1245, %v1245
          %v1266 = vmul.f32 %v1246, %v1246
          %v1267 = vsub.f32 %v1259, %v1263
          %v1268 = vsub.f32 %v1260, %v1264
          %v1269 = vsub.f32 %v1261, %v1265
          %v1270 = vsub.f32 %v1262, %v1266
          %v1271 = vmax.f32 %v1267, 0.0
          %v1272 = vmax.f32 %v1268, 0.0
          %v1273 = vmax.f32 %v1269, 0.0
          %v1274 = vmax.f32 %v1270, 0.0
          %v1275 = vsub.f32 %v1231, %v1243
          %v1276 = vsub.f32 %v1232, %v1244
          %v1277 = vsub.f32 %v1233, %v1245
          %v1278 = vsub.f32 %v1234, %v1246
          %v1279 = vadd.f32 %v1271, 1e-05
          %v1280 = vadd.f32 %v1272, 1e-05
          %v1281 = vadd.f32 %v1273, 1e-05
          %v1282 = vadd.f32 %v1274, 1e-05
          %v1283 = vrsqrt.pop %v1279
          %v1284 = vrsqrt.pop %v1280
          %v1285 = vrsqrt.pop %v1281
          %v1286 = vrsqrt.pop %v1282
          %v1287 = vmul.f32 %v1275, %v1283
          %v1288 = vmul.f32 %v1276, %v1284
          %v1289 = vmul.f32 %v1277, %v1285
          %v1290 = vmul.f32 %v1278, %v1286
          %v1291 = vlaneseq
          %v1292 = vshrl.u32 %v1291, 7
          %v1293 = vsub.s32 5, %v1292
          %v1294 = vrot.slane %v1058, %v1293
          %v1295 = vmul.f32 %v1287, %v1294
          %v1296 = vmul.f32 %v1288, %v1294
          %v1297 = vmul.f32 %v1289, %v1294
          %v1298 = vmul.f32 %v1290, %v1294
          %v1299 = vlaneseq
          %v1300 = vshrl.u32 %v1299, 7
          %v1301 = vsub.s32 6, %v1300
          %v1302 = vrot.slane %v1058, %v1301
          %v1303 = vadd.f32 %v1295, %v1302
          %v1304 = vadd.f32 %v1296, %v1302
          %v1305 = vadd.f32 %v1297, %v1302
          %v1306 = vadd.f32 %v1298, %v1302
          %vm1307 = vcmp.gt.f32.partialorder %v1303, 0.0
          %vm1308 = vcmp.gt.f32.partialorder %v1304, 0.0
          %vm1309 = vcmp.gt.f32.partialorder %v1305, 0.0
          %vm1310 = vcmp.gt.f32.partialorder %v1306, 0.0
          %v1311 = vmul.f32 %v1303, 0.1
          %v1312 = vmul.f32 %v1304, 0.1
          %v1313 = vmul.f32 %v1305, 0.1
          %v1314 = vmul.f32 %v1306, 0.1
          %v1315 = vsel %vm1307, %v1303, %v1311
          %v1316 = vsel %vm1308, %v1304, %v1312
          %v1317 = vsel %vm1309, %v1305, %v1313
          %v1318 = vsel %vm1310, %v1306, %v1314
          %v1319 = vpack.c.bf16 %v1316, %v1315
          %v1320 = vpack.c.bf16 %v1318, %v1317
          %v1321 = vlaneseq
          %v1322 = vshrl.u32 %v1321, 7
          %v1323 = vsub.s32 7, %v1322
          %v1324 = vrot.slane %v1058, %v1323
          %v1341 = vunpack.c.l.b16 %v1211
          %v1342 = vunpack.c.l.b16 %v1212
          %v1343 = vunpack.c.l.b16 %v1213
          %v1344 = vunpack.c.l.b16 %v1214
          %v1345 = vunpack.c.l.b16 %v1215
          %v1346 = vunpack.c.l.b16 %v1216
          %v1347 = vunpack.c.l.b16 %v1217
          %v1348 = vunpack.c.l.b16 %v1218
          %v1349 = vunpack.c.l.b16 %v1219
          %v1350 = vunpack.c.l.b16 %v1220
          %v1351 = vunpack.c.l.b16 %v1221
          %v1352 = vunpack.c.l.b16 %v1222
          %v1353 = vunpack.c.l.b16 %v1223
          %v1354 = vunpack.c.l.b16 %v1224
          %v1355 = vunpack.c.l.b16 %v1225
          %v1356 = vunpack.c.l.b16 %v1226
          %v1357 = vpack.c.b16 %v1342, %v1341
          %v1358 = vpack.c.b16 %v1344, %v1343
          %v1359 = vpack.c.b16 %v1346, %v1345
          %v1360 = vpack.c.b16 %v1348, %v1347
          %v1361 = vpack.c.b16 %v1350, %v1349
          %v1362 = vpack.c.b16 %v1352, %v1351
          %v1363 = vpack.c.b16 %v1354, %v1353
          %v1364 = vpack.c.b16 %v1356, %v1355
          %1373 = vmatprep.subr.bf16.mxu0 0
          %1374 = vmatpush1.bf16.msra.mxu0 %v1364
          %1375 = vmatprep.subr.bf16.mxu0 0
          %1376 = vmatpush1.bf16.msra.mxu0 %v1363
          %1377 = vmatprep.subr.bf16.mxu0 0
          %1378 = vmatpush1.bf16.msra.mxu0 %v1362
          %1379 = vmatprep.subr.bf16.mxu0 0
          %1380 = vmatpush1.bf16.msra.mxu0 %v1361
          %1381 = vmatprep.subr.bf16.mxu0 0
          %1382 = vmatpush1.bf16.msra.mxu0 %v1360
          %1383 = vmatprep.subr.bf16.mxu0 0
          %1384 = vmatpush1.bf16.msra.mxu0 %v1359
          %1385 = vmatprep.subr.bf16.mxu0 0
          %1386 = vmatpush1.bf16.msra.mxu0 %v1358
          %1387 = vmatprep.subr.bf16.mxu0 0
          %1388 = vmatpush1.bf16.msra.mxu0 %v1357
          %1389 = vmatprep.subr.bf16.mxu0 0
          %1390 = vmatpush2.bf16.msra.mxu0 0
          %1391 = vmatprep.subr.bf16.mxu0 0
          %1392 = vmatpush2.bf16.msra.mxu0 0
          %1393 = vmatprep.subr.bf16.mxu0 0
          %1394 = vmatpush2.bf16.msra.mxu0 0
          %1395 = vmatprep.subr.bf16.mxu0 0
          %1396 = vmatpush2.bf16.msra.mxu0 0
          %1397 = vmatprep.subr.bf16.mxu0 0
          %1398 = vmatpush2.bf16.msra.mxu0 0
          %1399 = vmatprep.subr.bf16.mxu0 0
          %1400 = vmatpush2.bf16.msra.mxu0 0
          %1401 = vmatprep.subr.bf16.mxu0 0
          %1402 = vmatpush2.bf16.msra.mxu0 0
          %1403 = vmatprep.subr.bf16.mxu0 0
          %1404 = vmatpush2.bf16.msra.mxu0 0
          %1405 = vmatprep.mubr.bf16.mxu0 0
          %1406 = vmatmul.mubr.bf16.gmra.mxu0 %v1319
          %v1407 = vpop.f32.mrf.mxu0
          %v1408 = vadd.f32 %v1324, %v1407
          %v1409 = vpop.f32.mrf.mxu0
          %v1410 = vpop.f32.mrf.mxu0
          %v1411 = vadd.f32 %v1324, %v1410
          %v1412 = vpop.f32.mrf.mxu0
          %1413 = vmatprep.mubr.bf16.mxu0 0
          %1414 = vmatmul.mubr.bf16.gmra.mxu0 %v1320
          %v1415 = vpop.f32.mrf.mxu0
          %v1416 = vadd.f32 %v1324, %v1415
          %v1417 = vpop.f32.mrf.mxu0
          %v1418 = vpop.f32.mrf.mxu0
          %v1419 = vadd.f32 %v1324, %v1418
          %v1420 = vpop.f32.mrf.mxu0
          %1421 = vdwg.mxu0
          %1422 = vadd.xlane.f32.xlu0 %v1408
          %v1423 = vpop.xlane.xlu0 %1422
          %1424 = vadd.xlane.f32.xlu0 %v1411
          %v1425 = vpop.xlane.xlu0 %1424
          %1426 = vadd.xlane.f32.xlu0 %v1416
          %v1427 = vpop.xlane.xlu0 %1426
          %1428 = vadd.xlane.f32.xlu0 %v1419
          %v1429 = vpop.xlane.xlu0 %1428
          %v1430 = vmul.f32 %v1423, 0.09090909
          %v1431 = vmul.f32 %v1425, 0.09090909
          %v1432 = vmul.f32 %v1427, 0.09090909
          %v1433 = vmul.f32 %v1429, 0.09090909
          %v1434 = vmul.f32 %v1408, %v1408
          %v1435 = vmul.f32 %v1411, %v1411
          %v1436 = vmul.f32 %v1416, %v1416
          %v1437 = vmul.f32 %v1419, %v1419
          %1438 = vadd.xlane.f32.xlu0 %v1434
          %v1439 = vpop.xlane.xlu0 %1438
          %1440 = vadd.xlane.f32.xlu0 %v1435
          %v1441 = vpop.xlane.xlu0 %1440
          %1442 = vadd.xlane.f32.xlu0 %v1436
          %v1443 = vpop.xlane.xlu0 %1442
          %1444 = vadd.xlane.f32.xlu0 %v1437
          %v1445 = vpop.xlane.xlu0 %1444
          %v1446 = vmul.f32 %v1439, 0.09090909
          %v1447 = vmul.f32 %v1441, 0.09090909
          %v1448 = vmul.f32 %v1443, 0.09090909
          %v1449 = vmul.f32 %v1445, 0.09090909
          %v1450 = vmul.f32 %v1430, %v1430
          %v1451 = vmul.f32 %v1431, %v1431
          %v1452 = vmul.f32 %v1432, %v1432
          %v1453 = vmul.f32 %v1433, %v1433
          %v1454 = vsub.f32 %v1446, %v1450
          %v1455 = vsub.f32 %v1447, %v1451
          %v1456 = vsub.f32 %v1448, %v1452
          %v1457 = vsub.f32 %v1449, %v1453
          %v1458 = vmax.f32 %v1454, 0.0
          %v1459 = vmax.f32 %v1455, 0.0
          %v1460 = vmax.f32 %v1456, 0.0
          %v1461 = vmax.f32 %v1457, 0.0
          %v1462 = vsub.f32 %v1408, %v1430
          %v1463 = vsub.f32 %v1411, %v1431
          %v1464 = vsub.f32 %v1416, %v1432
          %v1465 = vsub.f32 %v1419, %v1433
          %v1466 = vadd.f32 %v1458, 1e-05
          %v1467 = vadd.f32 %v1459, 1e-05
          %v1468 = vadd.f32 %v1460, 1e-05
          %v1469 = vadd.f32 %v1461, 1e-05
          %v1470 = vrsqrt.pop %v1466
          %v1471 = vrsqrt.pop %v1467
          %v1472 = vrsqrt.pop %v1468
          %v1473 = vrsqrt.pop %v1469
          %v1474 = vmul.f32 %v1462, %v1470
          %v1475 = vmul.f32 %v1463, %v1471
          %v1476 = vmul.f32 %v1464, %v1472
          %v1477 = vmul.f32 %v1465, %v1473
          %v1478 = vlaneseq
          %v1479 = vshrl.u32 %v1478, 7
          %v1480 = vsub.s32 0, %v1479
          %v1481 = vrot.slane %v1059, %v1480
          %v1482 = vmul.f32 %v1474, %v1481
          %v1483 = vmul.f32 %v1475, %v1481
          %v1484 = vmul.f32 %v1476, %v1481
          %v1485 = vmul.f32 %v1477, %v1481
          %v1486 = vlaneseq
          %v1487 = vshrl.u32 %v1486, 7
          %v1488 = vsub.s32 1, %v1487
          %v1489 = vrot.slane %v1059, %v1488
          %v1490 = vadd.f32 %v1482, %v1489
          %v1491 = vadd.f32 %v1483, %v1489
          %v1492 = vadd.f32 %v1484, %v1489
          %v1493 = vadd.f32 %v1485, %v1489
          %vm1494 = vcmp.gt.f32.partialorder %v1490, 0.0
          %vm1495 = vcmp.gt.f32.partialorder %v1491, 0.0
          %vm1496 = vcmp.gt.f32.partialorder %v1492, 0.0
          %vm1497 = vcmp.gt.f32.partialorder %v1493, 0.0
          %v1498 = vmul.f32 %v1490, 0.1
          %v1499 = vmul.f32 %v1491, 0.1
          %v1500 = vmul.f32 %v1492, 0.1
          %v1501 = vmul.f32 %v1493, 0.1
          %v1502 = vsel %vm1494, %v1490, %v1498
          %v1503 = vsel %vm1495, %v1491, %v1499
          %v1504 = vsel %vm1496, %v1492, %v1500
          %v1505 = vsel %vm1497, %v1493, %v1501
          %v1506 = vpack.c.bf16 %v1503, %v1502
          %v1507 = vpack.c.bf16 %v1505, %v1504
          %s1508 = smul.addr %s1056, 4
          %s1509 = scalar_lea.vmem %s7, %s1508
          %v1510 = vld [vmem:[%s1509] sm:$0xf]
          %v1511 = vld [vmem:[%s1509 + $0x4] sm:$0xf]
          %v1512 = vld [vmem:[%s1509 + $0x8] sm:$0xf]
          %v1513 = vld [vmem:[%s1509 + $0xc] sm:$0xf]
          %v1514 = vld [vmem:[%s1509 + $0x10] sm:$0xf]
          %v1515 = vld [vmem:[%s1509 + $0x14] sm:$0xf]
          %v1516 = vld [vmem:[%s1509 + $0x18] sm:$0xf]
          %v1517 = vld [vmem:[%s1509 + $0x1c] sm:$0xf]
          %v1518 = vld [vmem:[%s1509 + $0x20] sm:$0xf]
          %v1519 = vld [vmem:[%s1509 + $0x24] sm:$0xf]
          %v1520 = vld [vmem:[%s1509 + $0x28] sm:$0xf]
          %v1521 = vld [vmem:[%s1509 + $0x2c] sm:$0xf]
          %v1522 = vld [vmem:[%s1509 + $0x30] sm:$0xf]
          %v1523 = vld [vmem:[%s1509 + $0x34] sm:$0xf]
          %v1524 = vld [vmem:[%s1509 + $0x38] sm:$0xf]
          %v1525 = vld [vmem:[%s1509 + $0x3c] sm:$0xf]
          %v1526 = vlaneseq
          %v1527 = vshrl.u32 %v1526, 7
          %v1528 = vsub.s32 2, %v1527
          %v1529 = vrot.slane %v1059, %v1528
          %v1546 = vunpack.c.l.b16 %v1510
          %v1547 = vunpack.c.l.b16 %v1511
          %v1548 = vunpack.c.l.b16 %v1512
          %v1549 = vunpack.c.l.b16 %v1513
          %v1550 = vunpack.c.l.b16 %v1514
          %v1551 = vunpack.c.l.b16 %v1515
          %v1552 = vunpack.c.l.b16 %v1516
          %v1553 = vunpack.c.l.b16 %v1517
          %v1554 = vunpack.c.l.b16 %v1518
          %v1555 = vunpack.c.l.b16 %v1519
          %v1556 = vunpack.c.l.b16 %v1520
          %v1557 = vunpack.c.l.b16 %v1521
          %v1558 = vunpack.c.l.b16 %v1522
          %v1559 = vunpack.c.l.b16 %v1523
          %v1560 = vunpack.c.l.b16 %v1524
          %v1561 = vunpack.c.l.b16 %v1525
          %v1562 = vpack.c.b16 %v1547, %v1546
          %v1563 = vpack.c.b16 %v1549, %v1548
          %v1564 = vpack.c.b16 %v1551, %v1550
          %v1565 = vpack.c.b16 %v1553, %v1552
          %v1566 = vpack.c.b16 %v1555, %v1554
          %v1567 = vpack.c.b16 %v1557, %v1556
          %v1568 = vpack.c.b16 %v1559, %v1558
          %v1569 = vpack.c.b16 %v1561, %v1560
          %1578 = vmatprep.subr.bf16.mxu0 0
          %1579 = vmatpush1.bf16.msra.mxu0 %v1569
          %1580 = vmatprep.subr.bf16.mxu0 0
          %1581 = vmatpush1.bf16.msra.mxu0 %v1568
          %1582 = vmatprep.subr.bf16.mxu0 0
          %1583 = vmatpush1.bf16.msra.mxu0 %v1567
          %1584 = vmatprep.subr.bf16.mxu0 0
          %1585 = vmatpush1.bf16.msra.mxu0 %v1566
          %1586 = vmatprep.subr.bf16.mxu0 0
          %1587 = vmatpush1.bf16.msra.mxu0 %v1565
          %1588 = vmatprep.subr.bf16.mxu0 0
          %1589 = vmatpush1.bf16.msra.mxu0 %v1564
          %1590 = vmatprep.subr.bf16.mxu0 0
          %1591 = vmatpush1.bf16.msra.mxu0 %v1563
          %1592 = vmatprep.subr.bf16.mxu0 0
          %1593 = vmatpush1.bf16.msra.mxu0 %v1562
          %1594 = vmatprep.subr.bf16.mxu0 0
          %1595 = vmatpush2.bf16.msra.mxu0 0
          %1596 = vmatprep.subr.bf16.mxu0 0
          %1597 = vmatpush2.bf16.msra.mxu0 0
          %1598 = vmatprep.subr.bf16.mxu0 0
          %1599 = vmatpush2.bf16.msra.mxu0 0
          %1600 = vmatprep.subr.bf16.mxu0 0
          %1601 = vmatpush2.bf16.msra.mxu0 0
          %1602 = vmatprep.subr.bf16.mxu0 0
          %1603 = vmatpush2.bf16.msra.mxu0 0
          %1604 = vmatprep.subr.bf16.mxu0 0
          %1605 = vmatpush2.bf16.msra.mxu0 0
          %1606 = vmatprep.subr.bf16.mxu0 0
          %1607 = vmatpush2.bf16.msra.mxu0 0
          %1608 = vmatprep.subr.bf16.mxu0 0
          %1609 = vmatpush2.bf16.msra.mxu0 0
          %1610 = vmatprep.mubr.bf16.mxu0 0
          %1611 = vmatmul.mubr.bf16.gmra.mxu0 %v1506
          %v1612 = vpop.f32.mrf.mxu0
          %v1613 = vadd.f32 %v1529, %v1612
          %v1614 = vpop.f32.mrf.mxu0
          %v1615 = vpop.f32.mrf.mxu0
          %v1616 = vadd.f32 %v1529, %v1615
          %v1617 = vpop.f32.mrf.mxu0
          %1618 = vmatprep.mubr.bf16.mxu0 0
          %1619 = vmatmul.mubr.bf16.gmra.mxu0 %v1507
          %v1620 = vpop.f32.mrf.mxu0
          %v1621 = vadd.f32 %v1529, %v1620
          %v1622 = vpop.f32.mrf.mxu0
          %v1623 = vpop.f32.mrf.mxu0
          %v1624 = vadd.f32 %v1529, %v1623
          %v1625 = vpop.f32.mrf.mxu0
          %1626 = vdwg.mxu0
          %1627 = vset.pattern.permute.xlu0 3
          %1628 = vperm.xlu0 %1627, %v610
          %v1629 = vpop.permute.xlu0 %1628
          %1631 = vset.pattern.permute.xlu0 3
          %1632 = vperm.xlu0 %1631, %v611
          %v1633 = vpop.permute.xlu0 %1632
          %1635 = vset.pattern.permute.xlu0 3
          %1636 = vperm.xlu0 %1635, %v612
          %v1637 = vpop.permute.xlu0 %1636
          %1639 = vset.pattern.permute.xlu0 3
          %1640 = vperm.xlu0 %1639, %v613
          %v1641 = vpop.permute.xlu0 %1640
          %v1643 = vmul.f32 %v1613, %v1629
          %v1644 = vmul.f32 %v1616, %v1633
          %v1645 = vmul.f32 %v1621, %v1637
          %v1646 = vmul.f32 %v1624, %v1641
          %v1647 = vpack.c.bf16 %v1644, %v1643
          %v1648 = vpack.c.bf16 %v1646, %v1645
          %vm1649 = vcmask 261120
          %v1651 = vsel %vm1649, %v620, 0
          %1653 = vmatprep.subr.bf16.mxu0 0
          %1654 = vmatpush1.bf16.msra.mxu0 0
          %1655 = vmatprep.subr.bf16.mxu0 0
          %1656 = vmatpush1.bf16.msra.mxu0 0
          %1657 = vmatprep.subr.bf16.mxu0 0
          %1658 = vmatpush1.bf16.msra.mxu0 0
          %1659 = vmatprep.subr.bf16.mxu0 0
          %1660 = vmatpush1.bf16.msra.mxu0 0
          %1661 = vmatprep.subr.bf16.mxu0 0
          %1662 = vmatpush1.bf16.msra.mxu0 0
          %1663 = vmatprep.subr.bf16.mxu0 0
          %1664 = vmatpush1.bf16.msra.mxu0 0
          %1665 = vmatprep.subr.bf16.mxu0 0
          %1666 = vmatpush1.bf16.msra.mxu0 %v1648
          %1667 = vmatprep.subr.bf16.mxu0 0
          %1668 = vmatpush1.bf16.msra.mxu0 %v1647
          %1669 = vmatprep.subr.bf16.mxu0 0
          %1670 = vmatpush2.bf16.msra.mxu0 0
          %1671 = vmatprep.subr.bf16.mxu0 0
          %1672 = vmatpush2.bf16.msra.mxu0 0
          %1673 = vmatprep.subr.bf16.mxu0 0
          %1674 = vmatpush2.bf16.msra.mxu0 0
          %1675 = vmatprep.subr.bf16.mxu0 0
          %1676 = vmatpush2.bf16.msra.mxu0 0
          %1677 = vmatprep.subr.bf16.mxu0 0
          %1678 = vmatpush2.bf16.msra.mxu0 0
          %1679 = vmatprep.subr.bf16.mxu0 0
          %1680 = vmatpush2.bf16.msra.mxu0 0
          %1681 = vmatprep.subr.bf16.mxu0 0
          %1682 = vmatpush2.bf16.msra.mxu0 0
          %1683 = vmatprep.subr.bf16.mxu0 0
          %1684 = vmatpush2.bf16.msra.mxu0 0
          %1685 = vmatprep.mubr.bf16.mxu0 0
          %1686 = vmatmul.mubr.bf16.gmra.mxu0 %v1651
          %v1687 = vpop.f32.mrf.mxu0
          %v1688 = vadd.f32 0.0, %v1687
          %v1689 = vpop.f32.mrf.mxu0
          %v1690 = vpop.f32.mrf.mxu0
          %v1691 = vpop.f32.mrf.mxu0
          %1692 = vdwg.mxu0
          %1694 = vset.pattern.permute.xlu0 4
          %1695 = vperm.xlu0 %1694, %v609
          %v1696 = vpop.permute.xlu0 %1695
          %v1698 = vmul.f32 %v1688, %v1696
          %v1699 = vpack.c.bf16 %v1698, %v1698
          %s1700 = smul.u32 %s622, 3
          %s1701 = smul.addr %s1700, 4
          %s1702 = scalar_lea.vmem %s9, %s1701
          %v1703 = vld [vmem:[%s1702] sm:$0xff]
          %v1704 = vld [vmem:[%s1702 + $0x8] sm:$0xf]
          %1706 = vset.pattern.permute.xlu0 2
          %1707 = vperm.xlu0 %1706, %v627
          %v1708 = vpop.permute.xlu0 %1707
          %v1712 = vlaneseq
          %v1713 = vshrl.u32 %v1712, 7
          %v1714 = vsub.s32 0, %v1713
          %v1715 = vrot.slane %v1703, %v1714
          %v1716 = vlaneseq
          %v1717 = vshrl.u32 %v1716, 7
          %v1718 = vsub.s32 4, %v1717
          %v1719 = vrot.slane %v1703, %v1718
          %v1720 = vlaneseq
          %v1721 = vshrl.u32 %v1720, 7
          %v1722 = vsub.s32 0, %v1721
          %v1723 = vrot.slane %v1704, %v1722
          %v1727 = vlaneseq
          %v1728 = vshrl.u32 %v1727, 7
          %v1729 = vsub.s32 0, %v1728
          %v1730 = vrot.slane %v1715, %v1729
          %v1731 = vlaneseq
          %v1732 = vshrl.u32 %v1731, 7
          %v1733 = vsub.s32 0, %v1732
          %v1734 = vrot.slane %v1719, %v1733
          %v1735 = vlaneseq
          %v1736 = vshrl.u32 %v1735, 7
          %v1737 = vsub.s32 0, %v1736
          %v1738 = vrot.slane %v1723, %v1737
          %v1739 = vmul.f32 %v1708, %v1730
          %v1740 = vmul.f32 %v1708, %v1734
          %v1741 = vmul.f32 %v1708, %v1738
          %1743 = vset.pattern.permute.xlu0 3
          %1744 = vperm.xlu0 %1743, %v628
          %v1745 = vpop.permute.xlu0 %1744
          %v1747 = vlaneseq
          %v1748 = vshrl.u32 %v1747, 7
          %v1749 = vsub.s32 1, %v1748
          %v1750 = vrot.slane %v1703, %v1749
          %v1751 = vlaneseq
          %v1752 = vshrl.u32 %v1751, 7
          %v1753 = vsub.s32 5, %v1752
          %v1754 = vrot.slane %v1703, %v1753
          %v1755 = vlaneseq
          %v1756 = vshrl.u32 %v1755, 7
          %v1757 = vsub.s32 1, %v1756
          %v1758 = vrot.slane %v1704, %v1757
          %v1762 = vlaneseq
          %v1763 = vshrl.u32 %v1762, 7
          %v1764 = vsub.s32 1, %v1763
          %v1765 = vrot.slane %v1750, %v1764
          %v1766 = vlaneseq
          %v1767 = vshrl.u32 %v1766, 7
          %v1768 = vsub.s32 1, %v1767
          %v1769 = vrot.slane %v1754, %v1768
          %v1770 = vlaneseq
          %v1771 = vshrl.u32 %v1770, 7
          %v1772 = vsub.s32 1, %v1771
          %v1773 = vrot.slane %v1758, %v1772
          %v1774 = vmul.f32 %v1745, %v1765
          %v1775 = vmul.f32 %v1745, %v1769
          %v1776 = vmul.f32 %v1745, %v1773
          %v1777 = vadd.f32 %v1739, %v1774
          %v1778 = vadd.f32 %v1740, %v1775
          %v1779 = vadd.f32 %v1741, %v1776
          %1781 = vset.pattern.permute.xlu0 5
          %1782 = vperm.xlu0 %1781, %v973
          %v1783 = vpop.permute.xlu0 %1782
          %v1785 = vlaneseq
          %v1786 = vshrl.u32 %v1785, 7
          %v1787 = vsub.s32 2, %v1786
          %v1788 = vrot.slane %v1703, %v1787
          %v1789 = vlaneseq
          %v1790 = vshrl.u32 %v1789, 7
          %v1791 = vsub.s32 6, %v1790
          %v1792 = vrot.slane %v1703, %v1791
          %v1793 = vlaneseq
          %v1794 = vshrl.u32 %v1793, 7
          %v1795 = vsub.s32 2, %v1794
          %v1796 = vrot.slane %v1704, %v1795
          %v1800 = vlaneseq
          %v1801 = vshrl.u32 %v1800, 7
          %v1802 = vsub.s32 2, %v1801
          %v1803 = vrot.slane %v1788, %v1802
          %v1804 = vlaneseq
          %v1805 = vshrl.u32 %v1804, 7
          %v1806 = vsub.s32 2, %v1805
          %v1807 = vrot.slane %v1792, %v1806
          %v1808 = vlaneseq
          %v1809 = vshrl.u32 %v1808, 7
          %v1810 = vsub.s32 2, %v1809
          %v1811 = vrot.slane %v1796, %v1810
          %v1812 = vmul.f32 %v1783, %v1803
          %v1813 = vmul.f32 %v1783, %v1807
          %v1814 = vmul.f32 %v1783, %v1811
          %v1815 = vadd.f32 %v1777, %v1812
          %v1816 = vadd.f32 %v1778, %v1813
          %v1817 = vadd.f32 %v1779, %v1814
          %1819 = vset.pattern.permute.xlu0 6
          %1820 = vperm.xlu0 %1819, %v983
          %v1821 = vpop.permute.xlu0 %1820
          %v1823 = vlaneseq
          %v1824 = vshrl.u32 %v1823, 7
          %v1825 = vsub.s32 3, %v1824
          %v1826 = vrot.slane %v1703, %v1825
          %v1827 = vlaneseq
          %v1828 = vshrl.u32 %v1827, 7
          %v1829 = vsub.s32 7, %v1828
          %v1830 = vrot.slane %v1703, %v1829
          %v1831 = vlaneseq
          %v1832 = vshrl.u32 %v1831, 7
          %v1833 = vsub.s32 3, %v1832
          %v1834 = vrot.slane %v1704, %v1833
          %v1838 = vlaneseq
          %v1839 = vshrl.u32 %v1838, 7
          %v1840 = vsub.s32 3, %v1839
          %v1841 = vrot.slane %v1826, %v1840
          %v1842 = vlaneseq
          %v1843 = vshrl.u32 %v1842, 7
          %v1844 = vsub.s32 3, %v1843
          %v1845 = vrot.slane %v1830, %v1844
          %v1846 = vlaneseq
          %v1847 = vshrl.u32 %v1846, 7
          %v1848 = vsub.s32 3, %v1847
          %v1849 = vrot.slane %v1834, %v1848
          %v1850 = vmul.f32 %v1821, %v1841
          %v1851 = vmul.f32 %v1821, %v1845
          %v1852 = vmul.f32 %v1821, %v1849
          %v1853 = vadd.f32 %v1815, %v1850
          %v1854 = vadd.f32 %v1816, %v1851
          %v1855 = vadd.f32 %v1817, %v1852
          %s1856 = smul.addr %s1700, 4
          %s1857 = scalar_lea.vmem %s10, %s1856
          %v1858 = vld [vmem:[%s1857] sm:$0xff]
          %v1859 = vld [vmem:[%s1857 + $0x8] sm:$0xf]
          %v1862 = vunpack.c.l.b16 %v1858
          %v1863 = vunpack.c.h.b16 %v1858
          %v1864 = vunpack.c.l.b16 %v1859
          %v1865 = vpack.c.b16 %v1862, %v1862
          %v1866 = vpack.c.b16 %v1863, %v1863
          %v1867 = vpack.c.b16 %v1864, %v1864
          %v1868 = vsel %vm858, %v984, 0
          %v1871 = vsel %vm1001, %v1865, 0
          %v1874 = vsel %vm1001, %v1866, 0
          %v1877 = vsel %vm1001, %v1867, 0
          %1879 = vmatprep.subr.bf16.mxu0 0
          %1880 = vmatpush1.bf16.msra.mxu0 0
          %1881 = vmatprep.subr.bf16.mxu0 0
          %1882 = vmatpush1.bf16.msra.mxu0 0
          %1883 = vmatprep.subr.bf16.mxu0 0
          %1884 = vmatpush1.bf16.msra.mxu0 0
          %1885 = vmatprep.subr.bf16.mxu0 0
          %1886 = vmatpush1.bf16.msra.mxu0 0
          %1887 = vmatprep.subr.bf16.mxu0 0
          %1888 = vmatpush1.bf16.msra.mxu0 0
          %1889 = vmatprep.subr.bf16.mxu0 0
          %1890 = vmatpush1.bf16.msra.mxu0 0
          %1891 = vmatprep.subr.bf16.mxu0 0
          %1892 = vmatpush1.bf16.msra.mxu0 0
          %1893 = vmatprep.subr.bf16.mxu0 %v1874
          %1894 = vmatpush1.bf16.msra.mxu0 %v1871
          %1895 = vmatprep.subr.bf16.mxu0 0
          %1896 = vmatpush2.bf16.msra.mxu0 0
          %1897 = vmatprep.subr.bf16.mxu0 0
          %1898 = vmatpush2.bf16.msra.mxu0 0
          %1899 = vmatprep.subr.bf16.mxu0 0
          %1900 = vmatpush2.bf16.msra.mxu0 0
          %1901 = vmatprep.subr.bf16.mxu0 0
          %1902 = vmatpush2.bf16.msra.mxu0 0
          %1903 = vmatprep.subr.bf16.mxu0 0
          %1904 = vmatpush2.bf16.msra.mxu0 0
          %1905 = vmatprep.subr.bf16.mxu0 0
          %1906 = vmatpush2.bf16.msra.mxu0 0
          %1907 = vmatprep.subr.bf16.mxu0 0
          %1908 = vmatpush2.bf16.msra.mxu0 0
          %1909 = vmatprep.subr.bf16.mxu0 0
          %1910 = vmatpush2.bf16.msra.mxu0 0
          %1911 = vmatprep.mubr.bf16.mxu0 0
          %1912 = vmatmul.mubr.bf16.gmra.mxu0 %v1868
          %v1913 = vpop.f32.mrf.mxu0
          %v1914 = vadd.f32 0.0, %v1913
          %v1915 = vpop.f32.mrf.mxu0
          %v1916 = vadd.f32 0.0, %v1915
          %v1917 = vpop.f32.mrf.mxu0
          %v1918 = vpop.f32.mrf.mxu0
          %1919 = vdwg.mxu0
          %1920 = vmatprep.subr.bf16.mxu0 0
          %1921 = vmatpush1.bf16.msra.mxu0 0
          %1922 = vmatprep.subr.bf16.mxu0 0
          %1923 = vmatpush1.bf16.msra.mxu0 0
          %1924 = vmatprep.subr.bf16.mxu0 0
          %1925 = vmatpush1.bf16.msra.mxu0 0
          %1926 = vmatprep.subr.bf16.mxu0 0
          %1927 = vmatpush1.bf16.msra.mxu0 0
          %1928 = vmatprep.subr.bf16.mxu0 0
          %1929 = vmatpush1.bf16.msra.mxu0 0
          %1930 = vmatprep.subr.bf16.mxu0 0
          %1931 = vmatpush1.bf16.msra.mxu0 0
          %1932 = vmatprep.subr.bf16.mxu0 0
          %1933 = vmatpush1.bf16.msra.mxu0 0
          %1934 = vmatprep.subr.bf16.mxu0 0
          %1935 = vmatpush1.bf16.msra.mxu0 %v1877
          %1936 = vmatprep.subr.bf16.mxu0 0
          %1937 = vmatpush2.bf16.msra.mxu0 0
          %1938 = vmatprep.subr.bf16.mxu0 0
          %1939 = vmatpush2.bf16.msra.mxu0 0
          %1940 = vmatprep.subr.bf16.mxu0 0
          %1941 = vmatpush2.bf16.msra.mxu0 0
          %1942 = vmatprep.subr.bf16.mxu0 0
          %1943 = vmatpush2.bf16.msra.mxu0 0
          %1944 = vmatprep.subr.bf16.mxu0 0
          %1945 = vmatpush2.bf16.msra.mxu0 0
          %1946 = vmatprep.subr.bf16.mxu0 0
          %1947 = vmatpush2.bf16.msra.mxu0 0
          %1948 = vmatprep.subr.bf16.mxu0 0
          %1949 = vmatpush2.bf16.msra.mxu0 0
          %1950 = vmatprep.subr.bf16.mxu0 0
          %1951 = vmatpush2.bf16.msra.mxu0 0
          %1952 = vmatprep.mubr.bf16.mxu0 0
          %1953 = vmatmul.mubr.bf16.gmra.mxu0 %v1868
          %v1954 = vpop.f32.mrf.mxu0
          %v1955 = vadd.f32 0.0, %v1954
          %v1956 = vpop.f32.mrf.mxu0
          %v1957 = vpop.f32.mrf.mxu0
          %v1958 = vpop.f32.mrf.mxu0
          %1959 = vdwg.mxu0
          %v1960 = vadd.f32 %v1853, %v1914
          %v1961 = vadd.f32 %v1854, %v1916
          %v1962 = vadd.f32 %v1855, %v1955
          %s1963 = smul.addr %s1700, 4
          %s1964 = scalar_lea.vmem %s11, %s1963
          %v1965 = vld [vmem:[%s1964] sm:$0xff]
          %v1966 = vld [vmem:[%s1964 + $0x8] sm:$0xf]
          %v1969 = vunpack.c.l.b16 %v1965
          %v1970 = vunpack.c.h.b16 %v1965
          %v1971 = vunpack.c.l.b16 %v1966
          %v1972 = vpack.c.b16 %v1969, %v1969
          %v1973 = vpack.c.b16 %v1970, %v1970
          %v1974 = vpack.c.b16 %v1971, %v1971
          %v1976 = vsel %vm858, %v1699, 0
          %v1979 = vsel %vm1001, %v1972, 0
          %v1982 = vsel %vm1001, %v1973, 0
          %v1985 = vsel %vm1001, %v1974, 0
          %1987 = vmatprep.subr.bf16.mxu0 0
          %1988 = vmatpush1.bf16.msra.mxu0 0
          %1989 = vmatprep.subr.bf16.mxu0 0
          %1990 = vmatpush1.bf16.msra.mxu0 0
          %1991 = vmatprep.subr.bf16.mxu0 0
          %1992 = vmatpush1.bf16.msra.mxu0 0
          %1993 = vmatprep.subr.bf16.mxu0 0
          %1994 = vmatpush1.bf16.msra.mxu0 0
          %1995 = vmatprep.subr.bf16.mxu0 0
          %1996 = vmatpush1.bf16.msra.mxu0 0
          %1997 = vmatprep.subr.bf16.mxu0 0
          %1998 = vmatpush1.bf16.msra.mxu0 0
          %1999 = vmatprep.subr.bf16.mxu0 0
          %2000 = vmatpush1.bf16.msra.mxu0 0
          %2001 = vmatprep.subr.bf16.mxu0 %v1982
          %2002 = vmatpush1.bf16.msra.mxu0 %v1979
          %2003 = vmatprep.subr.bf16.mxu0 0
          %2004 = vmatpush2.bf16.msra.mxu0 0
          %2005 = vmatprep.subr.bf16.mxu0 0
          %2006 = vmatpush2.bf16.msra.mxu0 0
          %2007 = vmatprep.subr.bf16.mxu0 0
          %2008 = vmatpush2.bf16.msra.mxu0 0
          %2009 = vmatprep.subr.bf16.mxu0 0
          %2010 = vmatpush2.bf16.msra.mxu0 0
          %2011 = vmatprep.subr.bf16.mxu0 0
          %2012 = vmatpush2.bf16.msra.mxu0 0
          %2013 = vmatprep.subr.bf16.mxu0 0
          %2014 = vmatpush2.bf16.msra.mxu0 0
          %2015 = vmatprep.subr.bf16.mxu0 0
          %2016 = vmatpush2.bf16.msra.mxu0 0
          %2017 = vmatprep.subr.bf16.mxu0 0
          %2018 = vmatpush2.bf16.msra.mxu0 0
          %2019 = vmatprep.mubr.bf16.mxu0 0
          %2020 = vmatmul.mubr.bf16.gmra.mxu0 %v1976
          %v2021 = vpop.f32.mrf.mxu0
          %v2022 = vadd.f32 0.0, %v2021
          %v2023 = vpop.f32.mrf.mxu0
          %v2024 = vadd.f32 0.0, %v2023
          %v2025 = vpop.f32.mrf.mxu0
          %v2026 = vpop.f32.mrf.mxu0
          %2027 = vdwg.mxu0
          %2028 = vmatprep.subr.bf16.mxu0 0
          %2029 = vmatpush1.bf16.msra.mxu0 0
          %2030 = vmatprep.subr.bf16.mxu0 0
          %2031 = vmatpush1.bf16.msra.mxu0 0
          %2032 = vmatprep.subr.bf16.mxu0 0
          %2033 = vmatpush1.bf16.msra.mxu0 0
          %2034 = vmatprep.subr.bf16.mxu0 0
          %2035 = vmatpush1.bf16.msra.mxu0 0
          %2036 = vmatprep.subr.bf16.mxu0 0
          %2037 = vmatpush1.bf16.msra.mxu0 0
          %2038 = vmatprep.subr.bf16.mxu0 0
          %2039 = vmatpush1.bf16.msra.mxu0 0
          %2040 = vmatprep.subr.bf16.mxu0 0
          %2041 = vmatpush1.bf16.msra.mxu0 0
          %2042 = vmatprep.subr.bf16.mxu0 0
          %2043 = vmatpush1.bf16.msra.mxu0 %v1985
          %2044 = vmatprep.subr.bf16.mxu0 0
          %2045 = vmatpush2.bf16.msra.mxu0 0
          %2046 = vmatprep.subr.bf16.mxu0 0
          %2047 = vmatpush2.bf16.msra.mxu0 0
          %2048 = vmatprep.subr.bf16.mxu0 0
          %2049 = vmatpush2.bf16.msra.mxu0 0
          %2050 = vmatprep.subr.bf16.mxu0 0
          %2051 = vmatpush2.bf16.msra.mxu0 0
          %2052 = vmatprep.subr.bf16.mxu0 0
          %2053 = vmatpush2.bf16.msra.mxu0 0
          %2054 = vmatprep.subr.bf16.mxu0 0
          %2055 = vmatpush2.bf16.msra.mxu0 0
          %2056 = vmatprep.subr.bf16.mxu0 0
          %2057 = vmatpush2.bf16.msra.mxu0 0
          %2058 = vmatprep.subr.bf16.mxu0 0
          %2059 = vmatpush2.bf16.msra.mxu0 0
          %2060 = vmatprep.mubr.bf16.mxu0 0
          %2061 = vmatmul.mubr.bf16.gmra.mxu0 %v1976
          %v2062 = vpop.f32.mrf.mxu0
          %v2063 = vadd.f32 0.0, %v2062
          %v2064 = vpop.f32.mrf.mxu0
          %v2065 = vpop.f32.mrf.mxu0
          %v2066 = vpop.f32.mrf.mxu0
          %2067 = vdwg.mxu0
          %v2068 = vadd.f32 %v1960, %v2022
          %v2069 = vadd.f32 %v1961, %v2024
          %v2070 = vadd.f32 %v1962, %v2063
          %s2071 = smul.u32 %s1700, 16
          %s2072 = scalar_lea.vmem %s14, %s2071
          %v2073 = vld [vmem:[%s2072] sm:$0xff]
          %v2074 = vld [vmem:[%s2072 + $0x8] sm:$0xff]
          %s2075 = smul.addr %s2071, 4
          %s2076 = scalar_lea.vmem [#allocation6], %s2075
          %v2077 = vld [vmem:[%s2076] sm:$0xf]
          %v2078 = vld [vmem:[%s2076 + $0x4] sm:$0xf]
          %v2079 = vld [vmem:[%s2076 + $0x8] sm:$0xf]
          %v2080 = vld [vmem:[%s2076 + $0xc] sm:$0xf]
          %v2081 = vld [vmem:[%s2076 + $0x10] sm:$0xf]
          %v2082 = vld [vmem:[%s2076 + $0x14] sm:$0xf]
          %v2083 = vld [vmem:[%s2076 + $0x18] sm:$0xf]
          %v2084 = vld [vmem:[%s2076 + $0x1c] sm:$0xf]
          %v2085 = vld [vmem:[%s2076 + $0x20] sm:$0xf]
          %v2086 = vld [vmem:[%s2076 + $0x24] sm:$0xf]
          %v2087 = vld [vmem:[%s2076 + $0x28] sm:$0xf]
          %v2088 = vld [vmem:[%s2076 + $0x2c] sm:$0xf]
          %v2089 = vld [vmem:[%s2076 + $0x30] sm:$0xf]
          %v2090 = vld [vmem:[%s2076 + $0x34] sm:$0xf]
          %v2091 = vld [vmem:[%s2076 + $0x38] sm:$0xf]
          %v2092 = vld [vmem:[%s2076 + $0x3c] sm:$0xf]
          %v2093 = vlaneseq
          %v2094 = vshrl.u32 %v2093, 7
          %v2095 = vsub.s32 4, %v2094
          %v2096 = vrot.slane %v2073, %v2095
          %v2097 = vadd.f32 %v2068, %v2096
          %2098 = vadd.xlane.f32.xlu0 %v2097
          %v2099 = vpop.xlane.xlu0 %2098
          %v2100 = vmul.f32 %v2099, 0.05
          %v2101 = vmul.f32 %v2097, %v2097
          %2102 = vadd.xlane.f32.xlu0 %v2101
          %v2103 = vpop.xlane.xlu0 %2102
          %v2104 = vmul.f32 %v2103, 0.05
          %v2105 = vmul.f32 %v2100, %v2100
          %v2106 = vsub.f32 %v2104, %v2105
          %v2107 = vmax.f32 %v2106, 0.0
          %v2108 = vsub.f32 %v2097, %v2100
          %v2109 = vadd.f32 %v2107, 1e-05
          %v2110 = vrsqrt.pop %v2109
          %v2111 = vmul.f32 %v2108, %v2110
          %v2112 = vlaneseq
          %v2113 = vshrl.u32 %v2112, 7
          %v2114 = vsub.s32 5, %v2113
          %v2115 = vrot.slane %v2073, %v2114
          %v2116 = vmul.f32 %v2111, %v2115
          %v2117 = vlaneseq
          %v2118 = vshrl.u32 %v2117, 7
          %v2119 = vsub.s32 6, %v2118
          %v2120 = vrot.slane %v2073, %v2119
          %v2121 = vadd.f32 %v2116, %v2120
          %vm2122 = vcmp.gt.f32.partialorder %v2121, 0.0
          %v2123 = vmul.f32 %v2121, 0.1
          %v2124 = vsel %vm2122, %v2121, %v2123
          %v2125 = vpack.c.bf16 %v2124, %v2124
          %v2126 = vlaneseq
          %v2127 = vshrl.u32 %v2126, 7
          %v2128 = vsub.s32 7, %v2127
          %v2129 = vrot.slane %v2073, %v2128
          %v2146 = vunpack.c.l.b16 %v2077
          %v2147 = vunpack.c.l.b16 %v2078
          %v2148 = vunpack.c.l.b16 %v2079
          %v2149 = vunpack.c.l.b16 %v2080
          %v2150 = vunpack.c.l.b16 %v2081
          %v2151 = vunpack.c.l.b16 %v2082
          %v2152 = vunpack.c.l.b16 %v2083
          %v2153 = vunpack.c.l.b16 %v2084
          %v2154 = vunpack.c.l.b16 %v2085
          %v2155 = vunpack.c.l.b16 %v2086
          %v2156 = vunpack.c.l.b16 %v2087
          %v2157 = vunpack.c.l.b16 %v2088
          %v2158 = vunpack.c.l.b16 %v2089
          %v2159 = vunpack.c.l.b16 %v2090
          %v2160 = vunpack.c.l.b16 %v2091
          %v2161 = vunpack.c.l.b16 %v2092
          %v2162 = vpack.c.b16 %v2147, %v2146
          %v2163 = vpack.c.b16 %v2149, %v2148
          %v2164 = vpack.c.b16 %v2151, %v2150
          %v2165 = vpack.c.b16 %v2153, %v2152
          %v2166 = vpack.c.b16 %v2155, %v2154
          %v2167 = vpack.c.b16 %v2157, %v2156
          %v2168 = vpack.c.b16 %v2159, %v2158
          %v2169 = vpack.c.b16 %v2161, %v2160
          %2178 = vmatprep.subr.bf16.mxu0 0
          %2179 = vmatpush1.bf16.msra.mxu0 %v2169
          %2180 = vmatprep.subr.bf16.mxu0 0
          %2181 = vmatpush1.bf16.msra.mxu0 %v2168
          %2182 = vmatprep.subr.bf16.mxu0 0
          %2183 = vmatpush1.bf16.msra.mxu0 %v2167
          %2184 = vmatprep.subr.bf16.mxu0 0
          %2185 = vmatpush1.bf16.msra.mxu0 %v2166
          %2186 = vmatprep.subr.bf16.mxu0 0
          %2187 = vmatpush1.bf16.msra.mxu0 %v2165
          %2188 = vmatprep.subr.bf16.mxu0 0
          %2189 = vmatpush1.bf16.msra.mxu0 %v2164
          %2190 = vmatprep.subr.bf16.mxu0 0
          %2191 = vmatpush1.bf16.msra.mxu0 %v2163
          %2192 = vmatprep.subr.bf16.mxu0 0
          %2193 = vmatpush1.bf16.msra.mxu0 %v2162
          %2194 = vmatprep.subr.bf16.mxu0 0
          %2195 = vmatpush2.bf16.msra.mxu0 0
          %2196 = vmatprep.subr.bf16.mxu0 0
          %2197 = vmatpush2.bf16.msra.mxu0 0
          %2198 = vmatprep.subr.bf16.mxu0 0
          %2199 = vmatpush2.bf16.msra.mxu0 0
          %2200 = vmatprep.subr.bf16.mxu0 0
          %2201 = vmatpush2.bf16.msra.mxu0 0
          %2202 = vmatprep.subr.bf16.mxu0 0
          %2203 = vmatpush2.bf16.msra.mxu0 0
          %2204 = vmatprep.subr.bf16.mxu0 0
          %2205 = vmatpush2.bf16.msra.mxu0 0
          %2206 = vmatprep.subr.bf16.mxu0 0
          %2207 = vmatpush2.bf16.msra.mxu0 0
          %2208 = vmatprep.subr.bf16.mxu0 0
          %2209 = vmatpush2.bf16.msra.mxu0 0
          %2210 = vmatprep.mubr.bf16.mxu0 0
          %2211 = vmatmul.mubr.bf16.gmra.mxu0 %v2125
          %v2212 = vpop.f32.mrf.mxu0
          %v2213 = vadd.f32 %v2129, %v2212
          %v2214 = vpop.f32.mrf.mxu0
          %v2215 = vpop.f32.mrf.mxu0
          %v2216 = vpop.f32.mrf.mxu0
          %2217 = vdwg.mxu0
          %2218 = vadd.xlane.f32.xlu0 %v2213
          %v2219 = vpop.xlane.xlu0 %2218
          %v2220 = vmul.f32 %v2219, 0.05
          %v2221 = vmul.f32 %v2213, %v2213
          %2222 = vadd.xlane.f32.xlu0 %v2221
          %v2223 = vpop.xlane.xlu0 %2222
          %v2224 = vmul.f32 %v2223, 0.05
          %v2225 = vmul.f32 %v2220, %v2220
          %v2226 = vsub.f32 %v2224, %v2225
          %v2227 = vmax.f32 %v2226, 0.0
          %v2228 = vsub.f32 %v2213, %v2220
          %v2229 = vadd.f32 %v2227, 1e-05
          %v2230 = vrsqrt.pop %v2229
          %v2231 = vmul.f32 %v2228, %v2230
          %v2232 = vlaneseq
          %v2233 = vshrl.u32 %v2232, 7
          %v2234 = vsub.s32 0, %v2233
          %v2235 = vrot.slane %v2074, %v2234
          %v2236 = vmul.f32 %v2231, %v2235
          %v2237 = vlaneseq
          %v2238 = vshrl.u32 %v2237, 7
          %v2239 = vsub.s32 1, %v2238
          %v2240 = vrot.slane %v2074, %v2239
          %v2241 = vadd.f32 %v2236, %v2240
          %vm2242 = vcmp.gt.f32.partialorder %v2241, 0.0
          %v2243 = vmul.f32 %v2241, 0.1
          %v2244 = vsel %vm2242, %v2241, %v2243
          %s2245 = sadd.s32 %s1700, 1
          %s2246 = smul.u32 %s2245, 16
          %s2247 = scalar_lea.vmem %s14, %s2246
          %v2248 = vld [vmem:[%s2247] sm:$0xff]
          %v2249 = vld [vmem:[%s2247 + $0x8] sm:$0xff]
          %s2250 = smul.addr %s2246, 4
          %s2251 = scalar_lea.vmem [#allocation6], %s2250
          %v2252 = vld [vmem:[%s2251] sm:$0xf]
          %v2253 = vld [vmem:[%s2251 + $0x4] sm:$0xf]
          %v2254 = vld [vmem:[%s2251 + $0x8] sm:$0xf]
          %v2255 = vld [vmem:[%s2251 + $0xc] sm:$0xf]
          %v2256 = vld [vmem:[%s2251 + $0x10] sm:$0xf]
          %v2257 = vld [vmem:[%s2251 + $0x14] sm:$0xf]
          %v2258 = vld [vmem:[%s2251 + $0x18] sm:$0xf]
          %v2259 = vld [vmem:[%s2251 + $0x1c] sm:$0xf]
          %v2260 = vld [vmem:[%s2251 + $0x20] sm:$0xf]
          %v2261 = vld [vmem:[%s2251 + $0x24] sm:$0xf]
          %v2262 = vld [vmem:[%s2251 + $0x28] sm:$0xf]
          %v2263 = vld [vmem:[%s2251 + $0x2c] sm:$0xf]
          %v2264 = vld [vmem:[%s2251 + $0x30] sm:$0xf]
          %v2265 = vld [vmem:[%s2251 + $0x34] sm:$0xf]
          %v2266 = vld [vmem:[%s2251 + $0x38] sm:$0xf]
          %v2267 = vld [vmem:[%s2251 + $0x3c] sm:$0xf]
          %v2268 = vlaneseq
          %v2269 = vshrl.u32 %v2268, 7
          %v2270 = vsub.s32 4, %v2269
          %v2271 = vrot.slane %v2248, %v2270
          %v2272 = vadd.f32 %v2069, %v2271
          %2273 = vadd.xlane.f32.xlu0 %v2272
          %v2274 = vpop.xlane.xlu0 %2273
          %v2275 = vmul.f32 %v2274, 0.05
          %v2276 = vmul.f32 %v2272, %v2272
          %2277 = vadd.xlane.f32.xlu0 %v2276
          %v2278 = vpop.xlane.xlu0 %2277
          %v2279 = vmul.f32 %v2278, 0.05
          %v2280 = vmul.f32 %v2275, %v2275
          %v2281 = vsub.f32 %v2279, %v2280
          %v2282 = vmax.f32 %v2281, 0.0
          %v2283 = vsub.f32 %v2272, %v2275
          %v2284 = vadd.f32 %v2282, 1e-05
          %v2285 = vrsqrt.pop %v2284
          %v2286 = vmul.f32 %v2283, %v2285
          %v2287 = vlaneseq
          %v2288 = vshrl.u32 %v2287, 7
          %v2289 = vsub.s32 5, %v2288
          %v2290 = vrot.slane %v2248, %v2289
          %v2291 = vmul.f32 %v2286, %v2290
          %v2292 = vlaneseq
          %v2293 = vshrl.u32 %v2292, 7
          %v2294 = vsub.s32 6, %v2293
          %v2295 = vrot.slane %v2248, %v2294
          %v2296 = vadd.f32 %v2291, %v2295
          %vm2297 = vcmp.gt.f32.partialorder %v2296, 0.0
          %v2298 = vmul.f32 %v2296, 0.1
          %v2299 = vsel %vm2297, %v2296, %v2298
          %v2300 = vpack.c.bf16 %v2299, %v2299
          %v2301 = vlaneseq
          %v2302 = vshrl.u32 %v2301, 7
          %v2303 = vsub.s32 7, %v2302
          %v2304 = vrot.slane %v2248, %v2303
          %v2321 = vunpack.c.l.b16 %v2252
          %v2322 = vunpack.c.l.b16 %v2253
          %v2323 = vunpack.c.l.b16 %v2254
          %v2324 = vunpack.c.l.b16 %v2255
          %v2325 = vunpack.c.l.b16 %v2256
          %v2326 = vunpack.c.l.b16 %v2257
          %v2327 = vunpack.c.l.b16 %v2258
          %v2328 = vunpack.c.l.b16 %v2259
          %v2329 = vunpack.c.l.b16 %v2260
          %v2330 = vunpack.c.l.b16 %v2261
          %v2331 = vunpack.c.l.b16 %v2262
          %v2332 = vunpack.c.l.b16 %v2263
          %v2333 = vunpack.c.l.b16 %v2264
          %v2334 = vunpack.c.l.b16 %v2265
          %v2335 = vunpack.c.l.b16 %v2266
          %v2336 = vunpack.c.l.b16 %v2267
          %v2337 = vpack.c.b16 %v2322, %v2321
          %v2338 = vpack.c.b16 %v2324, %v2323
          %v2339 = vpack.c.b16 %v2326, %v2325
          %v2340 = vpack.c.b16 %v2328, %v2327
          %v2341 = vpack.c.b16 %v2330, %v2329
          %v2342 = vpack.c.b16 %v2332, %v2331
          %v2343 = vpack.c.b16 %v2334, %v2333
          %v2344 = vpack.c.b16 %v2336, %v2335
          %2353 = vmatprep.subr.bf16.mxu0 0
          %2354 = vmatpush1.bf16.msra.mxu0 %v2344
          %2355 = vmatprep.subr.bf16.mxu0 0
          %2356 = vmatpush1.bf16.msra.mxu0 %v2343
          %2357 = vmatprep.subr.bf16.mxu0 0
          %2358 = vmatpush1.bf16.msra.mxu0 %v2342
          %2359 = vmatprep.subr.bf16.mxu0 0
          %2360 = vmatpush1.bf16.msra.mxu0 %v2341
          %2361 = vmatprep.subr.bf16.mxu0 0
          %2362 = vmatpush1.bf16.msra.mxu0 %v2340
          %2363 = vmatprep.subr.bf16.mxu0 0
          %2364 = vmatpush1.bf16.msra.mxu0 %v2339
          %2365 = vmatprep.subr.bf16.mxu0 0
          %2366 = vmatpush1.bf16.msra.mxu0 %v2338
          %2367 = vmatprep.subr.bf16.mxu0 0
          %2368 = vmatpush1.bf16.msra.mxu0 %v2337
          %2369 = vmatprep.subr.bf16.mxu0 0
          %2370 = vmatpush2.bf16.msra.mxu0 0
          %2371 = vmatprep.subr.bf16.mxu0 0
          %2372 = vmatpush2.bf16.msra.mxu0 0
          %2373 = vmatprep.subr.bf16.mxu0 0
          %2374 = vmatpush2.bf16.msra.mxu0 0
          %2375 = vmatprep.subr.bf16.mxu0 0
          %2376 = vmatpush2.bf16.msra.mxu0 0
          %2377 = vmatprep.subr.bf16.mxu0 0
          %2378 = vmatpush2.bf16.msra.mxu0 0
          %2379 = vmatprep.subr.bf16.mxu0 0
          %2380 = vmatpush2.bf16.msra.mxu0 0
          %2381 = vmatprep.subr.bf16.mxu0 0
          %2382 = vmatpush2.bf16.msra.mxu0 0
          %2383 = vmatprep.subr.bf16.mxu0 0
          %2384 = vmatpush2.bf16.msra.mxu0 0
          %2385 = vmatprep.mubr.bf16.mxu0 0
          %2386 = vmatmul.mubr.bf16.gmra.mxu0 %v2300
          %v2387 = vpop.f32.mrf.mxu0
          %v2388 = vadd.f32 %v2304, %v2387
          %v2389 = vpop.f32.mrf.mxu0
          %v2390 = vpop.f32.mrf.mxu0
          %v2391 = vpop.f32.mrf.mxu0
          %2392 = vdwg.mxu0
          %2393 = vadd.xlane.f32.xlu0 %v2388
          %v2394 = vpop.xlane.xlu0 %2393
          %v2395 = vmul.f32 %v2394, 0.05
          %v2396 = vmul.f32 %v2388, %v2388
          %2397 = vadd.xlane.f32.xlu0 %v2396
          %v2398 = vpop.xlane.xlu0 %2397
          %v2399 = vmul.f32 %v2398, 0.05
          %v2400 = vmul.f32 %v2395, %v2395
          %v2401 = vsub.f32 %v2399, %v2400
          %v2402 = vmax.f32 %v2401, 0.0
          %v2403 = vsub.f32 %v2388, %v2395
          %v2404 = vadd.f32 %v2402, 1e-05
          %v2405 = vrsqrt.pop %v2404
          %v2406 = vmul.f32 %v2403, %v2405
          %v2407 = vlaneseq
          %v2408 = vshrl.u32 %v2407, 7
          %v2409 = vsub.s32 0, %v2408
          %v2410 = vrot.slane %v2249, %v2409
          %v2411 = vmul.f32 %v2406, %v2410
          %v2412 = vlaneseq
          %v2413 = vshrl.u32 %v2412, 7
          %v2414 = vsub.s32 1, %v2413
          %v2415 = vrot.slane %v2249, %v2414
          %v2416 = vadd.f32 %v2411, %v2415
          %vm2417 = vcmp.gt.f32.partialorder %v2416, 0.0
          %v2418 = vmul.f32 %v2416, 0.1
          %v2419 = vsel %vm2417, %v2416, %v2418
          %s2420 = sadd.s32 %s1700, 2
          %s2421 = smul.u32 %s2420, 16
          %s2422 = scalar_lea.vmem %s14, %s2421
          %v2423 = vld [vmem:[%s2422] sm:$0xff]
          %v2424 = vld [vmem:[%s2422 + $0x8] sm:$0xff]
          %s2425 = smul.addr %s2421, 4
          %s2426 = scalar_lea.vmem [#allocation6], %s2425
          %v2427 = vld [vmem:[%s2426] sm:$0xf]
          %v2428 = vld [vmem:[%s2426 + $0x4] sm:$0xf]
          %v2429 = vld [vmem:[%s2426 + $0x8] sm:$0xf]
          %v2430 = vld [vmem:[%s2426 + $0xc] sm:$0xf]
          %v2431 = vld [vmem:[%s2426 + $0x10] sm:$0xf]
          %v2432 = vld [vmem:[%s2426 + $0x14] sm:$0xf]
          %v2433 = vld [vmem:[%s2426 + $0x18] sm:$0xf]
          %v2434 = vld [vmem:[%s2426 + $0x1c] sm:$0xf]
          %v2435 = vld [vmem:[%s2426 + $0x20] sm:$0xf]
          %v2436 = vld [vmem:[%s2426 + $0x24] sm:$0xf]
          %v2437 = vld [vmem:[%s2426 + $0x28] sm:$0xf]
          %v2438 = vld [vmem:[%s2426 + $0x2c] sm:$0xf]
          %v2439 = vld [vmem:[%s2426 + $0x30] sm:$0xf]
          %v2440 = vld [vmem:[%s2426 + $0x34] sm:$0xf]
          %v2441 = vld [vmem:[%s2426 + $0x38] sm:$0xf]
          %v2442 = vld [vmem:[%s2426 + $0x3c] sm:$0xf]
          %v2443 = vlaneseq
          %v2444 = vshrl.u32 %v2443, 7
          %v2445 = vsub.s32 4, %v2444
          %v2446 = vrot.slane %v2423, %v2445
          %v2447 = vadd.f32 %v2070, %v2446
          %2448 = vadd.xlane.f32.xlu0 %v2447
          %v2449 = vpop.xlane.xlu0 %2448
          %v2450 = vmul.f32 %v2449, 0.05
          %v2451 = vmul.f32 %v2447, %v2447
          %2452 = vadd.xlane.f32.xlu0 %v2451
          %v2453 = vpop.xlane.xlu0 %2452
          %v2454 = vmul.f32 %v2453, 0.05
          %v2455 = vmul.f32 %v2450, %v2450
          %v2456 = vsub.f32 %v2454, %v2455
          %v2457 = vmax.f32 %v2456, 0.0
          %v2458 = vsub.f32 %v2447, %v2450
          %v2459 = vadd.f32 %v2457, 1e-05
          %v2460 = vrsqrt.pop %v2459
          %v2461 = vmul.f32 %v2458, %v2460
          %v2462 = vlaneseq
          %v2463 = vshrl.u32 %v2462, 7
          %v2464 = vsub.s32 5, %v2463
          %v2465 = vrot.slane %v2423, %v2464
          %v2466 = vmul.f32 %v2461, %v2465
          %v2467 = vlaneseq
          %v2468 = vshrl.u32 %v2467, 7
          %v2469 = vsub.s32 6, %v2468
          %v2470 = vrot.slane %v2423, %v2469
          %v2471 = vadd.f32 %v2466, %v2470
          %vm2472 = vcmp.gt.f32.partialorder %v2471, 0.0
          %v2473 = vmul.f32 %v2471, 0.1
          %v2474 = vsel %vm2472, %v2471, %v2473
          %v2475 = vpack.c.bf16 %v2474, %v2474
          %v2476 = vlaneseq
          %v2477 = vshrl.u32 %v2476, 7
          %v2478 = vsub.s32 7, %v2477
          %v2479 = vrot.slane %v2423, %v2478
          %v2496 = vunpack.c.l.b16 %v2427
          %v2497 = vunpack.c.l.b16 %v2428
          %v2498 = vunpack.c.l.b16 %v2429
          %v2499 = vunpack.c.l.b16 %v2430
          %v2500 = vunpack.c.l.b16 %v2431
          %v2501 = vunpack.c.l.b16 %v2432
          %v2502 = vunpack.c.l.b16 %v2433
          %v2503 = vunpack.c.l.b16 %v2434
          %v2504 = vunpack.c.l.b16 %v2435
          %v2505 = vunpack.c.l.b16 %v2436
          %v2506 = vunpack.c.l.b16 %v2437
          %v2507 = vunpack.c.l.b16 %v2438
          %v2508 = vunpack.c.l.b16 %v2439
          %v2509 = vunpack.c.l.b16 %v2440
          %v2510 = vunpack.c.l.b16 %v2441
          %v2511 = vunpack.c.l.b16 %v2442
          %v2512 = vpack.c.b16 %v2497, %v2496
          %v2513 = vpack.c.b16 %v2499, %v2498
          %v2514 = vpack.c.b16 %v2501, %v2500
          %v2515 = vpack.c.b16 %v2503, %v2502
          %v2516 = vpack.c.b16 %v2505, %v2504
          %v2517 = vpack.c.b16 %v2507, %v2506
          %v2518 = vpack.c.b16 %v2509, %v2508
          %v2519 = vpack.c.b16 %v2511, %v2510
          %2528 = vmatprep.subr.bf16.mxu0 0
          %2529 = vmatpush1.bf16.msra.mxu0 %v2519
          %2530 = vmatprep.subr.bf16.mxu0 0
          %2531 = vmatpush1.bf16.msra.mxu0 %v2518
          %2532 = vmatprep.subr.bf16.mxu0 0
          %2533 = vmatpush1.bf16.msra.mxu0 %v2517
          %2534 = vmatprep.subr.bf16.mxu0 0
          %2535 = vmatpush1.bf16.msra.mxu0 %v2516
          %2536 = vmatprep.subr.bf16.mxu0 0
          %2537 = vmatpush1.bf16.msra.mxu0 %v2515
          %2538 = vmatprep.subr.bf16.mxu0 0
          %2539 = vmatpush1.bf16.msra.mxu0 %v2514
          %2540 = vmatprep.subr.bf16.mxu0 0
          %2541 = vmatpush1.bf16.msra.mxu0 %v2513
          %2542 = vmatprep.subr.bf16.mxu0 0
          %2543 = vmatpush1.bf16.msra.mxu0 %v2512
          %2544 = vmatprep.subr.bf16.mxu0 0
          %2545 = vmatpush2.bf16.msra.mxu0 0
          %2546 = vmatprep.subr.bf16.mxu0 0
          %2547 = vmatpush2.bf16.msra.mxu0 0
          %2548 = vmatprep.subr.bf16.mxu0 0
          %2549 = vmatpush2.bf16.msra.mxu0 0
          %2550 = vmatprep.subr.bf16.mxu0 0
          %2551 = vmatpush2.bf16.msra.mxu0 0
          %2552 = vmatprep.subr.bf16.mxu0 0
          %2553 = vmatpush2.bf16.msra.mxu0 0
          %2554 = vmatprep.subr.bf16.mxu0 0
          %2555 = vmatpush2.bf16.msra.mxu0 0
          %2556 = vmatprep.subr.bf16.mxu0 0
          %2557 = vmatpush2.bf16.msra.mxu0 0
          %2558 = vmatprep.subr.bf16.mxu0 0
          %2559 = vmatpush2.bf16.msra.mxu0 0
          %2560 = vmatprep.mubr.bf16.mxu0 0
          %2561 = vmatmul.mubr.bf16.gmra.mxu0 %v2475
          %v2562 = vpop.f32.mrf.mxu0
          %v2563 = vadd.f32 %v2479, %v2562
          %v2564 = vpop.f32.mrf.mxu0
          %v2565 = vpop.f32.mrf.mxu0
          %v2566 = vpop.f32.mrf.mxu0
          %2567 = vdwg.mxu0
          %2568 = vadd.xlane.f32.xlu0 %v2563
          %v2569 = vpop.xlane.xlu0 %2568
          %v2570 = vmul.f32 %v2569, 0.05
          %v2571 = vmul.f32 %v2563, %v2563
          %2572 = vadd.xlane.f32.xlu0 %v2571
          %v2573 = vpop.xlane.xlu0 %2572
          %v2574 = vmul.f32 %v2573, 0.05
          %v2575 = vmul.f32 %v2570, %v2570
          %v2576 = vsub.f32 %v2574, %v2575
          %v2577 = vmax.f32 %v2576, 0.0
          %v2578 = vsub.f32 %v2563, %v2570
          %v2579 = vadd.f32 %v2577, 1e-05
          %v2580 = vrsqrt.pop %v2579
          %v2581 = vmul.f32 %v2578, %v2580
          %v2582 = vlaneseq
          %v2583 = vshrl.u32 %v2582, 7
          %v2584 = vsub.s32 0, %v2583
          %v2585 = vrot.slane %v2424, %v2584
          %v2586 = vmul.f32 %v2581, %v2585
          %v2587 = vlaneseq
          %v2588 = vshrl.u32 %v2587, 7
          %v2589 = vsub.s32 1, %v2588
          %v2590 = vrot.slane %v2424, %v2589
          %v2591 = vadd.f32 %v2586, %v2590
          %vm2592 = vcmp.gt.f32.partialorder %v2591, 0.0
          %v2593 = vmul.f32 %v2591, 0.1
          %v2594 = vsel %vm2592, %v2591, %v2593
          %v2595 = vlaneseq
          %v2596 = vshrl.u32 %v2595, 7
          %v2597 = vsub.s32 3, %v2596
          %v2598 = vrot.slane %v2074, %v2597
          %v2599 = vmul.f32 %v2244, %v2598
          %2600 = vadd.xlane.f32.xlu0 %v2599
          %v2601 = vpop.xlane.xlu0 %2600
          %v2602 = vlaneseq
          %v2603 = vshrl.u32 %v2602, 7
          %v2604 = vsub.s32 2, %v2603
          %v2605 = vrot.slane %v2074, %v2604
          %v2606 = vadd.f32 %v2601, %v2605
          %v2607 = vlaneseq
          %v2608 = vshrl.u32 %v2607, 7
          %v2609 = vsub.s32 3, %v2608
          %v2610 = vrot.slane %v2249, %v2609
          %v2611 = vmul.f32 %v2419, %v2610
          %2612 = vadd.xlane.f32.xlu0 %v2611
          %v2613 = vpop.xlane.xlu0 %2612
          %v2614 = vlaneseq
          %v2615 = vshrl.u32 %v2614, 7
          %v2616 = vsub.s32 2, %v2615
          %v2617 = vrot.slane %v2249, %v2616
          %v2618 = vadd.f32 %v2613, %v2617
          %v2619 = vpack.c.bf16 %v2594, %v2594
          %s2620 = smul.addr %s1056, 4
          %s2621 = scalar_lea.vmem %s13, %s2620
          %v2622 = vld [vmem:[%s2621] sm:$0xf]
          %v2623 = vld [vmem:[%s2621 + $0x4] sm:$0xf]
          %v2624 = vld [vmem:[%s2621 + $0x8] sm:$0xf]
          %v2625 = vld [vmem:[%s2621 + $0xc] sm:$0xf]
          %v2626 = vld [vmem:[%s2621 + $0x10] sm:$0xf]
          %v2627 = vld [vmem:[%s2621 + $0x14] sm:$0xf]
          %v2628 = vld [vmem:[%s2621 + $0x18] sm:$0xf]
          %v2629 = vld [vmem:[%s2621 + $0x1c] sm:$0xf]
          %v2630 = vld [vmem:[%s2621 + $0x20] sm:$0xf]
          %v2631 = vld [vmem:[%s2621 + $0x24] sm:$0xf]
          %v2632 = vld [vmem:[%s2621 + $0x28] sm:$0xf]
          %v2633 = vld [vmem:[%s2621 + $0x2c] sm:$0xf]
          %v2634 = vld [vmem:[%s2621 + $0x30] sm:$0xf]
          %v2635 = vld [vmem:[%s2621 + $0x34] sm:$0xf]
          %v2636 = vld [vmem:[%s2621 + $0x38] sm:$0xf]
          %v2637 = vld [vmem:[%s2621 + $0x3c] sm:$0xf]
          %v2638 = vlaneseq
          %v2639 = vshrl.u32 %v2638, 7
          %v2640 = vsub.s32 2, %v2639
          %v2641 = vrot.slane %v2424, %v2640
          %v2658 = vunpack.c.l.b16 %v2622
          %v2659 = vunpack.c.l.b16 %v2623
          %v2660 = vunpack.c.l.b16 %v2624
          %v2661 = vunpack.c.l.b16 %v2625
          %v2662 = vunpack.c.l.b16 %v2626
          %v2663 = vunpack.c.l.b16 %v2627
          %v2664 = vunpack.c.l.b16 %v2628
          %v2665 = vunpack.c.l.b16 %v2629
          %v2666 = vunpack.c.l.b16 %v2630
          %v2667 = vunpack.c.l.b16 %v2631
          %v2668 = vunpack.c.l.b16 %v2632
          %v2669 = vunpack.c.l.b16 %v2633
          %v2670 = vunpack.c.l.b16 %v2634
          %v2671 = vunpack.c.l.b16 %v2635
          %v2672 = vunpack.c.l.b16 %v2636
          %v2673 = vunpack.c.l.b16 %v2637
          %v2674 = vpack.c.b16 %v2659, %v2658
          %v2675 = vpack.c.b16 %v2661, %v2660
          %v2676 = vpack.c.b16 %v2663, %v2662
          %v2677 = vpack.c.b16 %v2665, %v2664
          %v2678 = vpack.c.b16 %v2667, %v2666
          %v2679 = vpack.c.b16 %v2669, %v2668
          %v2680 = vpack.c.b16 %v2671, %v2670
          %v2681 = vpack.c.b16 %v2673, %v2672
          %2690 = vmatprep.subr.bf16.mxu0 0
          %2691 = vmatpush1.bf16.msra.mxu0 %v2681
          %2692 = vmatprep.subr.bf16.mxu0 0
          %2693 = vmatpush1.bf16.msra.mxu0 %v2680
          %2694 = vmatprep.subr.bf16.mxu0 0
          %2695 = vmatpush1.bf16.msra.mxu0 %v2679
          %2696 = vmatprep.subr.bf16.mxu0 0
          %2697 = vmatpush1.bf16.msra.mxu0 %v2678
          %2698 = vmatprep.subr.bf16.mxu0 0
          %2699 = vmatpush1.bf16.msra.mxu0 %v2677
          %2700 = vmatprep.subr.bf16.mxu0 0
          %2701 = vmatpush1.bf16.msra.mxu0 %v2676
          %2702 = vmatprep.subr.bf16.mxu0 0
          %2703 = vmatpush1.bf16.msra.mxu0 %v2675
          %2704 = vmatprep.subr.bf16.mxu0 0
          %2705 = vmatpush1.bf16.msra.mxu0 %v2674
          %2706 = vmatprep.subr.bf16.mxu0 0
          %2707 = vmatpush2.bf16.msra.mxu0 0
          %2708 = vmatprep.subr.bf16.mxu0 0
          %2709 = vmatpush2.bf16.msra.mxu0 0
          %2710 = vmatprep.subr.bf16.mxu0 0
          %2711 = vmatpush2.bf16.msra.mxu0 0
          %2712 = vmatprep.subr.bf16.mxu0 0
          %2713 = vmatpush2.bf16.msra.mxu0 0
          %2714 = vmatprep.subr.bf16.mxu0 0
          %2715 = vmatpush2.bf16.msra.mxu0 0
          %2716 = vmatprep.subr.bf16.mxu0 0
          %2717 = vmatpush2.bf16.msra.mxu0 0
          %2718 = vmatprep.subr.bf16.mxu0 0
          %2719 = vmatpush2.bf16.msra.mxu0 0
          %2720 = vmatprep.subr.bf16.mxu0 0
          %2721 = vmatpush2.bf16.msra.mxu0 0
          %2722 = vmatprep.mubr.bf16.mxu0 0
          %2723 = vmatmul.mubr.bf16.gmra.mxu0 %v2619
          %v2724 = vpop.f32.mrf.mxu0
          %v2725 = vadd.f32 %v2641, %v2724
          %v2726 = vpop.f32.mrf.mxu0
          %v2727 = vpop.f32.mrf.mxu0
          %v2728 = vpop.f32.mrf.mxu0
          %2729 = vdwg.mxu0
          %v2730 = vtanh.pop %v2725
          %v2731 = vsel %vm858, %v2730, 0.0
          %2732 = vadd.xlane.f32.xlu0 %v2731
          %v2733 = vpop.xlane.xlu0 %2732
          %v2734 = vrcp.pop 8.0
          %v2735 = vmul.f32 %v2733, %v2734
          %v2736 = vmul.f32 %v2730, %v2730
          %v2737 = vsel %vm858, %v2736, 0.0
          %2738 = vadd.xlane.f32.xlu0 %v2737
          %v2739 = vpop.xlane.xlu0 %2738
          %v2740 = vmul.f32 %v2739, %v2734
          %v2741 = vmul.f32 %v2735, %v2735
          %v2742 = vsub.f32 %v2740, %v2741
          %v2743 = vmax.f32 %v2742, 0.0
          %v2744 = vsub.f32 %v2730, %v2735
          %v2745 = vadd.f32 %v2743, 1e-05
          %v2746 = vrsqrt.pop %v2745
          %v2747 = vmul.f32 %v2744, %v2746
          %2749 = vrot.lane.b32.xlu0 %v2606, 5
          %v2750 = vpop.permute.xlu0 %2749
          %v2752 = vsel %vm963, 0.0, %v2750
          %2754 = vrot.lane.b32.xlu0 %v2618, 6
          %v2755 = vpop.permute.xlu0 %2754
          %v2757 = vsel %vm963, 0.0, %v2755
          %2759 = vrot.lane.b32.xlu0 %v2752, 126
          %v2760 = vpop.permute.xlu0 %2759
          %v2762 = vadd.f32 %v628, %v2760
          %v2763 = vadd.f32 %v2762, 3.1415927
          %v2764 = vand.u32 2147483647, %v2763
          %v2765 = vrcp.pop 6.2831855
          %v2766 = vmul.f32 %v2764, %v2765
          %v2767 = vfloor.f32 %v2766
          %v2768 = vmul.f32 %v2767, 6.2831855
          %v2769 = vsub.f32 %v2764, %v2768
          %vm2770 = vcmp.eq.f32.partialorder %v2769, 6.2831855
          %v2771 = vsel %vm2770, 0.0, %v2769
          %v2772 = vand.u32 2147483647, %v2771
          %v2773 = vand.u32 %v2763, 2147483648
          %v2774 = vor.u32 %v2772, %v2773
          %vm2775 = vcmp.ne.f32.partialorder %v2774, 0.0
          %vm2776 = vcmp.lt.f32.partialorder %v2774, 0.0
          %vm2777 = vmand %vm2776, %vm2775
          %v2778 = vadd.f32 %v2774, 6.2831855
          %v2779 = vsel %vm2777, %v2778, %v2774
          %v2780 = vsub.f32 %v2779, 3.1415927
          %2782 = vrot.lane.b32.xlu0 %v2757, 124
          %v2783 = vpop.permute.xlu0 %2782
          %v2785 = vadd.f32 %v627, %v2783
          %v2786 = vmax.f32 %v2785, 0.4
          %v2787 = vmin.f32 %v2786, 1.2
          %v2788 = vadd.f32 %v629, %v2747
          %v2789 = vmul.f32 %v630, 0.96
          %v2790 = vmul.f32 %v973, %v973
          %v2791 = vmul.f32 %v983, %v983
          %2793 = vrot.lane.b32.xlu0 %v2791, 127
          %v2794 = vpop.permute.xlu0 %2793
          %v2796 = vadd.f32 %v2790, %v2794
          %2798 = vrot.lane.b32.xlu0 %v2796, 123
          %v2799 = vpop.permute.xlu0 %2798
          %v2801 = vsel %vm856, %v2799, 0.0
          %2802 = vadd.xlane.f32.xlu0 %v2801
          %v2803 = vpop.xlane.xlu0 %2802
          %v2804 = vrot.slane %v2803, 4
          %v2805 = vadd.f32 %v2803, %v2804
          %v2806 = vrot.slane %v2805, 2
          %v2807 = vadd.f32 %v2805, %v2806
          %v2808 = vrot.slane %v2807, 1
          %v2809 = vadd.f32 %v2807, %v2808
          %s2810 = vtos %v2809
          %v2811 = vstv %s2810
          %v2812 = vadd.f32 %v2789, %v2811
        $region97: #{tpu_custom_call.1} parent=79 // loop_footer
          %s626 = sadd.s32 1, %s622
        $region98: #{tpu_custom_call.1} parent=79 // loop_footer_branch
          %621 = sbr.rel target = $region94
        $region99: #{tpu_custom_call.1} parent=79 // loop_exit
          _
        %2814 = vrot.lane.b32.xlu0 %v627, 126
        %v2815 = vpop.permute.xlu0 %2814
        %2818 = vrot.lane.b32.xlu0 %v628, 126
        %v2819 = vpop.permute.xlu0 %2818
        %vm2821 = vcmask 7168
        %v2822 = vsel %vm2821, %v2815, %v2819
        %vm2823 = vcmask 15360
        %2824 = vst.msk [vmem:[%s604] sm:$0xff] %vm2823, %v2822
        %vm2825 = vcmask 0
        %2826 = vst.msk [vmem:[%s607] sm:$0x1] %vm2825, %v630
        %p2827 = scmp.lt.s32.totalorder %s30, 1
        %s2828 = scalar_select %p2827, %s30, 1
        %s2829 = smul.addr %s2828, 8
        %s2830 = scalar_lea.vmem %s15, %s2829
        %p2831 = scmp.lt.s32.totalorder %s30, 1
        %s2832 = scalar_select %p2831, %s30, 1
        %s2833 = scalar_lea.vmem %s16, %s2832
        // Predicated region
        $region100: #{tpu_custom_call.1} parent=79 // pred_check
          %p2834 = pneg %p378
        $region101: #{tpu_custom_call.1} parent=79 // pred_check_branch
          %2836 = sbr.rel (%p2834) target = $region103
        $region102: #{tpu_custom_call.1} parent=79 // pred_region
          _
        $region103: #{tpu_custom_call.1} parent=79 // pred_fallthru
          _
        // Predicated region
        $region104: #{tpu_custom_call.1} parent=79 // pred_check
          %p2837 = pneg %p404
        $region105: #{tpu_custom_call.1} parent=79 // pred_check_branch
          %2839 = sbr.rel (%p2837) target = $region107
        $region106: #{tpu_custom_call.1} parent=79 // pred_region
          _
        $region107: #{tpu_custom_call.1} parent=79 // pred_fallthru
          _
      $region80: #{tpu_custom_call.1} parent=5 // pred_fallthru
        _
      %p2840 = scmp.le.s32.totalorder 2, %s25
      // Predicated region
      $region108: #{tpu_custom_call.1} parent=5 // pred_check
        %p2841 = pneg %p2840
      $region109: #{tpu_custom_call.1} parent=5 // pred_check_branch
        %2843 = sbr.rel (%p2841) target = $region111
      $region110: #{tpu_custom_call.1} parent=5 // pred_region
        %s2844 = ssub.s32 %s25, 2
        // Predicated region
        $region112: #{tpu_custom_call.1} parent=110 // pred_check
          %p2845 = pneg %p384
        $region113: #{tpu_custom_call.1} parent=110 // pred_check_branch
          %2847 = sbr.rel (%p2845) target = $region115
        $region114: #{tpu_custom_call.1} parent=110 // pred_region
          %p2848 = scmp.lt.s32.totalorder %s31, 1
          %s2849 = scalar_select %p2848, %s31, 1
          %s2850 = smul.addr %s2849, 8
          %s2851 = scalar_lea.vmem %s15, %s2850
        $region115: #{tpu_custom_call.1} parent=110 // pred_fallthru
          _
        // Predicated region
        $region116: #{tpu_custom_call.1} parent=110 // pred_check
          %p2852 = pneg %p410
        $region117: #{tpu_custom_call.1} parent=110 // pred_check_branch
          %2854 = sbr.rel (%p2852) target = $region119
        $region118: #{tpu_custom_call.1} parent=110 // pred_region
          %p2855 = scmp.lt.s32.totalorder %s31, 1
          %s2856 = scalar_select %p2855, %s31, 1
          %s2857 = scalar_lea.vmem %s16, %s2856
        $region119: #{tpu_custom_call.1} parent=110 // pred_fallthru
          _
      $region111: #{tpu_custom_call.1} parent=5 // pred_fallthru
        _
    $region6: #{tpu_custom_call.1} parent=1 // loop_footer
      %s29 = sadd.s32 1, %s25
    $region7: #{tpu_custom_call.1} parent=1 // loop_footer_branch
      %24 = sbr.rel target = $region3
    $region8: #{tpu_custom_call.1} parent=1 // loop_exit
      _
    %2858 = vsyncpa [#allocation3], 1
    %s2859 = scalar_lea.sflag [#allocation3], 1
    %2860 = vsyncpa %s2859, 1
    %2861 = vsyncpa [#allocation5], 1

</llo_original>
